<compile_context>
chip_gen: v7x
topology: tpu7x:2x2x1
jax: 0.10.0
libtpu: 0.0.40
codegen_flags: <defaults>
</compile_context>

<pallas_src>
import functools

import jax
import jax.numpy as jnp
from jax import lax
from jax.experimental import pallas as pl
from jax.experimental.pallas import tpu as pltpu

EPS = 1e-5  # PyTorch BatchNorm2d default


def _vmem_capacity_bytes():
    try:
        info = pltpu.get_tpu_info()
        cap = int(getattr(info, "vmem_capacity_bytes", 0))
        if cap > 0:
            return cap
    except Exception:
        pass
    return 64 * 1024 * 1024  # conservative fallback (v7x-sized)


_VMEM_CAP = _vmem_capacity_bytes()
_VMEM_LIMIT = int(_VMEM_CAP * 0.85)   # headroom for Mosaic internal scratch
_VMEM_BUDGET = int(_VMEM_CAP * 0.50)  # sizing budget for the H-row tile


def _store_width(c):
    """Channel storage width: unpadded for small C, 128-multiple otherwise."""
    return c if c <= 128 else ((c + 127) // 128) * 128


def _pick_tile_rows(H, W, s_in, c_out, budget_bytes):
    """Largest divisor-of-H row tile fitting the VMEM budget.

    Prefers >= 4 row tiles per sample (megacore load balance at small N) as
    long as the per-matmul M = TH*W stays >= 512 (MXU fill/drain efficiency).
    """
    k = 3 * s_in

    def footprint(th):
        x_blk = th * W * s_in * 2          # bf16 input block
        halo = 2 * W * s_in * 2            # bf16 halo rows
        y_blk = th * W * c_out * 2         # bf16 output block
        col = (th + 2) * W * k * 2         # bf16 im2col scratch (single)
        acc = 2 * th * W * c_out * 4       # f32 accumulator + temp
        mm_in = th * W * k * 2             # per-dy LHS slice
        wts = 3 * k * c_out * 2            # bf16 packed weights
        misc = 8 * max(s_in, c_out) * 4
        return 2 * (x_blk + halo + y_blk + wts + misc) + col + acc + mm_in

    divisors = [d for d in range(1, H + 1) if H % d == 0]
    fits = [d for d in divisors if footprint(d) <= budget_bytes]
    if not fits:
        return divisors[0]
    good = [d for d in fits if (H // d) >= 4 and d * W >= 512]
    return max(good) if good else max(fits)


# --------------------------------------------------------------------------
# Kernel 1: (optional fused ReLU(BN(prev)) on the input) + Conv3x3 + bias,
#           emitting per-(sample, row-tile) BN partial stats (sum, sum-of-sq).
# --------------------------------------------------------------------------
def conv3x3_stats_kernel(x_ref, xtop_ref, xbot_ref, scale_ref, shift_ref,
                         w_ref, b_ref, y_ref, stats_ref, col_ref,
                         *, apply_input_act):
    _, TH, W, S = x_ref.shape
    Couts = y_ref.shape[-1]
    K = col_ref.shape[-1]                     # == 3 * S
    h = pl.program_id(1)
    nh = pl.num_programs(1)

    if apply_input_act:
        sc = scale_ref[...].reshape(1, 1, S)
        sh = shift_ref[...].reshape(1, 1, S)

        def act(v):   # fused ReLU(BN(prev)) on the conv input; f32 math only
            return jnp.maximum(v.astype(jnp.float32) * sc + sh,
                               0.0).astype(jnp.bfloat16)
    else:
        def act(v):
            return v.astype(jnp.bfloat16)

    # Halo rows: the BlockSpec clamps their row index inside the image; zero
    # them (after the fused activation!) on the first / last row tile so the
    # conv sees the standard zero padding.
    main = act(x_ref[0])                                       # (TH, W, S)
    top = act(xtop_ref[0]) * (h != 0).astype(jnp.bfloat16)     # (1, W, S)
    bot = act(xbot_ref[0]) * (h != nh - 1).astype(jnp.bfloat16)
    prows = jnp.concatenate([top, main, bot], axis=0)          # (TH+2, W, S)

    # Single bf16 im2col: pack the 3 dx taps along the channel (lane) dim.
    # Only the two border columns get zero stores (no full scratch zero-fill).
    # TODO(synk): the +/-1 column shifts could use pltpu.roll (XLU) instead of
    #             the shifted stores below for a small extra win.
    zcol = jnp.zeros((TH + 2, 1, S), jnp.bfloat16)
    col_ref[:, 0:1, 0:S] = zcol                           # left tap, x == 0
    col_ref[:, 1:W, 0:S] = prows[:, 0:W - 1, :]           # input at x-1
    col_ref[:, :, S:2 * S] = prows                        # input at x
    col_ref[:, 0:W - 1, 2 * S:3 * S] = prows[:, 1:W, :]   # input at x+1
    col_ref[:, W - 1:W, 2 * S:3 * S] = zcol               # right tap, x == W-1

    # 3 accumulating MXU matmuls over dy; LHS row slices start at dy*W
    # (sublane-aligned when W % 8 == 0).  bf16 operands, f32 accumulation.
    acc = jnp.zeros((TH * W, Couts), jnp.float32)
    for dy in range(3):
        a = col_ref[dy:dy + TH].reshape(TH * W, K)
        acc = acc + jnp.dot(a, w_ref[dy], preferred_element_type=jnp.float32)
    acc = acc + b_ref[...]                                # conv bias

    # BatchNorm partials, reduced across (N, row tiles) outside the kernel.
    stats_ref[0, 0, 0:1, :] = jnp.sum(acc, axis=0, keepdims=True)
    stats_ref[0, 0, 1:2, :] = jnp.sum(acc * acc, axis=0, keepdims=True)

    y_ref[0] = acc.reshape(TH, W, Couts).astype(y_ref.dtype)


def _conv3x3_stats(x, scale, shift, w_packed, b_row, th, *, apply_input_act):
    N, H, W, S = x.shape
    _, K, Couts = w_packed.shape
    nh = H // th
    kernel = functools.partial(conv3x3_stats_kernel,
                               apply_input_act=apply_input_act)
    return pl.pallas_call(
        kernel,
        grid=(N, nh),
        in_specs=[
            pl.BlockSpec((1, th, W, S), lambda n, h: (n, h, 0, 0)),
            # 1-row top/bottom halo blocks; row index clamped to the image
            # (the kernel zeroes them at the image border).
            pl.BlockSpec((1, 1, W, S),
                         lambda n, h: (n, jnp.maximum(h * th - 1, 0), 0, 0)),
            pl.BlockSpec((1, 1, W, S),
                         lambda n, h: (n, jnp.minimum(h * th + th, H - 1), 0, 0)),
            pl.BlockSpec((1, S), lambda n, h: (0, 0)),
            pl.BlockSpec((1, S), lambda n, h: (0, 0)),
            pl.BlockSpec((3, K, Couts), lambda n, h: (0, 0, 0)),
            pl.BlockSpec((1, Couts), lambda n, h: (0, 0)),
        ],
        out_specs=(
            pl.BlockSpec((1, th, W, Couts), lambda n, h: (n, h, 0, 0)),
            pl.BlockSpec((1, 1, 2, Couts), lambda n, h: (n, h, 0, 0)),
        ),
        out_shape=(
            jax.ShapeDtypeStruct((N, H, W, Couts), jnp.bfloat16),
            jax.ShapeDtypeStruct((N, nh, 2, Couts), jnp.float32),
        ),
        scratch_shapes=[pltpu.VMEM((th + 2, W, K), jnp.bfloat16)],
        compiler_params=pltpu.CompilerParams(
            dimension_semantics=("parallel", "parallel"),
            vmem_limit_bytes=_VMEM_LIMIT,
        ),
    )(x, x, x, scale, shift, w_packed, b_row)


# --------------------------------------------------------------------------
# Kernel 2: final per-channel affine (BatchNorm apply) + ReLU, bf16 output.
# --------------------------------------------------------------------------
def bn_relu_kernel(y_ref, scale_ref, shift_ref, o_ref):
    S = y_ref.shape[-1]
    y = y_ref[0].astype(jnp.float32)
    sc = scale_ref[...].reshape(1, 1, S)
    sh = shift_ref[...].reshape(1, 1, S)
    o_ref[0] = jnp.maximum(y * sc + sh, 0.0).astype(o_ref.dtype)


def _bn_relu_apply(y, scale, shift, th):
    N, H, W, S = y.shape
    return pl.pallas_call(
        bn_relu_kernel,
        grid=(N, H // th),
        in_specs=[
            pl.BlockSpec((1, th, W, S), lambda n, h: (n, h, 0, 0)),
            pl.BlockSpec((1, S), lambda n, h: (0, 0)),
            pl.BlockSpec((1, S), lambda n, h: (0, 0)),
        ],
        out_specs=pl.BlockSpec((1, th, W, S), lambda n, h: (n, h, 0, 0)),
        out_shape=jax.ShapeDtypeStruct((N, H, W, S), jnp.bfloat16),
        compiler_params=pltpu.CompilerParams(
            dimension_semantics=("parallel", "parallel"),
            vmem_limit_bytes=_VMEM_LIMIT,
        ),
    )(y, scale, shift)


# --------------------------------------------------------------------------
# Host-side glue: BN statistics reduction and parameter packing.
# --------------------------------------------------------------------------
def _bn_scale_shift(stats, gamma_row, beta_row, count):
    """stats: (N, HT, 2, C) partial (sum, sumsq) -> per-channel scale/shift."""
    s = jnp.sum(stats[:, :, 0, :], axis=(0, 1))
    sq = jnp.sum(stats[:, :, 1, :], axis=(0, 1))
    mean = s / count
    var = jnp.maximum(sq / count - mean * mean, 0.0)      # biased batch var
    scale = gamma_row[0] * lax.rsqrt(var + EPS)
    shift = beta_row[0] - mean * scale
    return scale[None, :], shift[None, :]                 # (1, C)


def _pack_conv_params(w, b, gamma, beta, s_in, s_out):
    """HWIO (3,3,Cin,Cout) -> bf16 (3, 3*s_in, s_out) dx-packed + f32 rows."""
    _, _, cin, cout = w.shape
    wp = jnp.zeros((3, 3, s_in, s_out), jnp.float32)
    wp = wp.at[:, :, :cin, :cout].set(w)
    wp = wp.reshape(3, 3 * s_in, s_out).astype(jnp.bfloat16)

    def row(v):
        return jnp.zeros((1, s_out), jnp.float32).at[:, :cout].set(
            v.reshape(1, -1))

    return wp, row(b), row(gamma), row(beta)


def init_double_conv_params(key, in_channels, out_channels, mid_channels=None):
    if not mid_channels:
        mid_channels = out_channels
    ks = jax.random.split(key, 8)
    scale1 = 1.0 / jnp.sqrt(in_channels * 9.0)
    scale2 = 1.0 / jnp.sqrt(mid_channels * 9.0)
    return {
        # HWIO conv weights (PyTorch stores OIHW; same math, other layout).
        "w1": jax.random.normal(ks[0], (3, 3, in_channels, mid_channels), jnp.float32) * scale1,
        "b1": jax.random.normal(ks[1], (1, mid_channels), jnp.float32) * scale1,
        "g1": 1.0 + 0.1 * jax.random.normal(ks[2], (1, mid_channels), jnp.float32),
        "be1": 0.1 * jax.random.normal(ks[3], (1, mid_channels), jnp.float32),
        "w2": jax.random.normal(ks[4], (3, 3, mid_channels, out_channels), jnp.float32) * scale2,
        "b2": jax.random.normal(ks[5], (1, out_channels), jnp.float32) * scale2,
        "g2": 1.0 + 0.1 * jax.random.normal(ks[6], (1, out_channels), jnp.float32),
        "be2": 0.1 * jax.random.normal(ks[7], (1, out_channels), jnp.float32),
    }


@jax.jit
def double_conv_forward(x_nchw, params):
    N, Cin, H, W = x_nchw.shape
    Cmid = params["w1"].shape[-1]
    Cout = params["w2"].shape[-1]
    s_in, s_mid, s_out = _store_width(Cin), _store_width(Cmid), _store_width(Cout)

    # NCHW (PyTorch) -> NHWC, bf16 MXU operands (f32 accumulation in-kernel).
    # Channels padded to a 128 multiple only when they already exceed 128.
    x = jnp.transpose(x_nchw, (0, 2, 3, 1))
    if s_in > Cin:
        x = jnp.pad(x, ((0, 0), (0, 0), (0, 0), (0, s_in - Cin)))
    x = x.astype(jnp.bfloat16)

    w1p, b1p, g1p, be1p = _pack_conv_params(params["w1"], params["b1"],
                                            params["g1"], params["be1"],
                                            s_in, s_mid)
    w2p, b2p, g2p, be2p = _pack_conv_params(params["w2"], params["b2"],
                                            params["g2"], params["be2"],
                                            s_mid, s_out)

    count = N * H * W
    th1 = _pick_tile_rows(H, W, s_in, s_mid, _VMEM_BUDGET)
    th2 = _pick_tile_rows(H, W, s_mid, s_out, _VMEM_BUDGET)

    one = jnp.ones((1, s_in), jnp.float32)
    zero = jnp.zeros((1, s_in), jnp.float32)

    # Stage 1: conv1 + bias, BN1 batch-stat partials (apply fused into stage 2).
    y1, st1 = _conv3x3_stats(x, one, zero, w1p, b1p, th1, apply_input_act=False)
    sc1, sh1 = _bn_scale_shift(st1, g1p, be1p, count)

    # Stage 2: fused ReLU(BN1(y1)) -> conv2 + bias -> BN2 partials.
    y2, st2 = _conv3x3_stats(y1, sc1, sh1, w2p, b2p, th2, apply_input_act=True)
    sc2, sh2 = _bn_scale_shift(st2, g2p, be2p, count)

    # Final BN2 + ReLU2 apply (bf16 writeback; elide when composed further).
    out = _bn_relu_apply(y2, sc2, sh2, th2)               # (N, H, W, s_out) bf16
    out = out[:, :, :, :Cout]                             # drop channel padding
    return jnp.transpose(out, (0, 3, 1, 2)).astype(jnp.float32)   # NHWC -> NCHW


# --------------------------------------------------------------------------
# Pure-JAX reference with matching numerics (bf16 operands, f32 accumulation).
# --------------------------------------------------------------------------
@jax.jit
def _ref_double_conv(x_nchw, params):
    def conv(a, w, b):
        y = lax.conv_general_dilated(
            a.astype(jnp.bfloat16), w.astype(jnp.bfloat16),
            window_strides=(1, 1), padding="SAME",
            dimension_numbers=("NHWC", "HWIO", "NHWC"),
            preferred_element_type=jnp.float32)
        return y + b.reshape(1, 1, 1, -1)

    def bn_relu(y, gamma, beta):
        mean = jnp.mean(y, axis=(0, 1, 2))
        var = jnp.maximum(jnp.mean(y * y, axis=(0, 1, 2)) - mean * mean, 0.0)
        scale = gamma.reshape(-1) * lax.rsqrt(var + EPS)
        shift = beta.reshape(-1) - mean * scale
        o = jnp.maximum(
            y.astype(jnp.bfloat16).astype(jnp.float32) * scale + shift, 0.0)
        return o.astype(jnp.bfloat16)

    x = jnp.transpose(x_nchw, (0, 2, 3, 1)).astype(jnp.bfloat16)
    y1 = conv(x, params["w1"], params["b1"])
    a2 = bn_relu(y1, params["g1"], params["be1"])
    y2 = conv(a2, params["w2"], params["b2"])
    out = bn_relu(y2, params["g2"], params["be2"])
    return jnp.transpose(out, (0, 3, 1, 2)).astype(jnp.float32)


if __name__ == "__main__":
    key = jax.random.PRNGKey(0)
    k_x, k_p = jax.random.split(key)

    in_channels, out_channels = 4, 8
    N, H, W = 2, 16, 16

    x = jax.random.normal(k_x, (N, in_channels, H, W), jnp.float32)
    params = init_double_conv_params(k_p, in_channels, out_channels)

    out = double_conv_forward(x, params)
    out = jax.block_until_ready(out)

    assert out.shape == (N, out_channels, H, W), out.shape
    assert bool(jnp.all(out >= 0.0))                      # ReLU output
    assert bool(jnp.all(jnp.isfinite(out)))

    # Tolerance check vs. an XLA reference with matching bf16/f32 numerics
    # (loose bounds absorb rare bf16 rounding-boundary disagreements).
    ref = jax.block_until_ready(_ref_double_conv(x, params))
    mean_err = float(jnp.mean(jnp.abs(out - ref)))
    max_err = float(jnp.max(jnp.abs(out - ref)))
    assert mean_err < 2e-2 and max_err < 2.5e-1, (mean_err, max_err)

    print("KERNEL_OK")
</pallas_src>

<mosaic_0001>
module attributes {stable_mosaic.version = 11 : i64} {
  func.func @conv3x3_stats_kernel(%arg0: i32, %arg1: i32, %arg2: memref<1x16x16x8xbf16, #tpu.memory_space<vmem>>, %arg3: memref<1x1x16x8xbf16, #tpu.memory_space<vmem>>, %arg4: memref<1x1x16x8xbf16, #tpu.memory_space<vmem>>, %arg5: memref<1x8xf32, #tpu.memory_space<vmem>>, %arg6: memref<1x8xf32, #tpu.memory_space<vmem>>, %arg7: memref<3x24x8xbf16, #tpu.memory_space<vmem>>, %arg8: memref<1x8xf32, #tpu.memory_space<vmem>>, %arg9: memref<1x16x16x8xbf16, #tpu.memory_space<vmem>>, %arg10: memref<1x1x2x8xf32, #tpu.memory_space<vmem>>, %arg11: memref<18x16x24xbf16, #tpu.memory_space<vmem>>) attributes {dimension_semantics = [#tpu.dimension_semantics<parallel>, #tpu.dimension_semantics<parallel>], iteration_bounds = array<i64: 2, 1>, scalar_prefetch = 0 : i64, scratch_operands = 1 : i64, tpu.core_type = #tpu.core_type<tc>, window_params = [{transform_indices = @transform_0, window_bounds = array<i64: 1, 16, 16, 8>}, {transform_indices = @transform_1, window_bounds = array<i64: 1, 1, 16, 8>}, {transform_indices = @transform_2, window_bounds = array<i64: 1, 1, 16, 8>}, {pipeline_mode = #tpu.pipeline_mode<synchronous>, transform_indices = @transform_3, window_bounds = array<i64: 1, 8>}, {pipeline_mode = #tpu.pipeline_mode<synchronous>, transform_indices = @transform_4, window_bounds = array<i64: 1, 8>}, {pipeline_mode = #tpu.pipeline_mode<synchronous>, transform_indices = @transform_5, window_bounds = array<i64: 3, 24, 8>}, {pipeline_mode = #tpu.pipeline_mode<synchronous>, transform_indices = @transform_6, window_bounds = array<i64: 1, 8>}, {transform_indices = @transform_7, window_bounds = array<i64: 1, 16, 16, 8>}, {transform_indices = @transform_8, window_bounds = array<i64: 1, 1, 2, 8>}]} {
    %c0 = arith.constant 0 : index
    %c0_0 = arith.constant 0 : index
    %0 = vector.load %arg5[%c0, %c0_0] : memref<1x8xf32, #tpu.memory_space<vmem>>, vector<1x8xf32>
    %1 = vector.shape_cast %0 : vector<1x8xf32> to vector<1x1x8xf32>
    %c0_1 = arith.constant 0 : index
    %c0_2 = arith.constant 0 : index
    %2 = vector.load %arg6[%c0_1, %c0_2] : memref<1x8xf32, #tpu.memory_space<vmem>>, vector<1x8xf32>
    %3 = vector.shape_cast %2 : vector<1x8xf32> to vector<1x1x8xf32>
    %c0_3 = arith.constant 0 : index
    %c0_4 = arith.constant 0 : index
    %c0_5 = arith.constant 0 : index
    %c0_6 = arith.constant 0 : index
    %4 = vector.load %arg2[%c0_3, %c0_4, %c0_5, %c0_6] : memref<1x16x16x8xbf16, #tpu.memory_space<vmem>>, vector<1x16x16x8xbf16>
    %5 = vector.shape_cast %4 : vector<1x16x16x8xbf16> to vector<16x16x8xbf16>
    %6 = arith.extf %5 : vector<16x16x8xbf16> to vector<16x16x8xf32>
    %7 = vector.broadcast %1 : vector<1x1x8xf32> to vector<16x16x8xf32>
    %8 = arith.mulf %6, %7 : vector<16x16x8xf32>
    %9 = vector.broadcast %3 : vector<1x1x8xf32> to vector<16x16x8xf32>
    %10 = arith.addf %8, %9 : vector<16x16x8xf32>
    %cst = arith.constant 0.000000e+00 : f32
    %11 = vector.broadcast %cst : f32 to vector<16x16x8xf32>
    %12 = arith.maximumf %10, %11 : vector<16x16x8xf32>
    %13 = arith.truncf %12 : vector<16x16x8xf32> to vector<16x16x8xbf16>
    %c0_7 = arith.constant 0 : index
    %c0_8 = arith.constant 0 : index
    %c0_9 = arith.constant 0 : index
    %c0_10 = arith.constant 0 : index
    %14 = vector.load %arg3[%c0_7, %c0_8, %c0_9, %c0_10] : memref<1x1x16x8xbf16, #tpu.memory_space<vmem>>, vector<1x1x16x8xbf16>
    %15 = vector.shape_cast %14 : vector<1x1x16x8xbf16> to vector<1x16x8xbf16>
    %16 = arith.extf %15 : vector<1x16x8xbf16> to vector<1x16x8xf32>
    %17 = vector.broadcast %1 : vector<1x1x8xf32> to vector<1x16x8xf32>
    %18 = arith.mulf %16, %17 : vector<1x16x8xf32>
    %19 = vector.broadcast %3 : vector<1x1x8xf32> to vector<1x16x8xf32>
    %20 = arith.addf %18, %19 : vector<1x16x8xf32>
    %cst_11 = arith.constant 0.000000e+00 : f32
    %21 = vector.broadcast %cst_11 : f32 to vector<1x16x8xf32>
    %22 = arith.maximumf %20, %21 : vector<1x16x8xf32>
    %23 = arith.truncf %22 : vector<1x16x8xf32> to vector<1x16x8xbf16>
    %c0_i32 = arith.constant 0 : i32
    %24 = arith.cmpi ne, %arg1, %c0_i32 : i32
    %25 = arith.extui %24 : i1 to i32
    %26 = arith.sitofp %25 : i32 to f32
    %27 = arith.truncf %26 : f32 to bf16
    %28 = vector.broadcast %27 : bf16 to vector<1x16x8xbf16>
    %29 = arith.mulf %23, %28 : vector<1x16x8xbf16>
    %c0_12 = arith.constant 0 : index
    %c0_13 = arith.constant 0 : index
    %c0_14 = arith.constant 0 : index
    %c0_15 = arith.constant 0 : index
    %30 = vector.load %arg4[%c0_12, %c0_13, %c0_14, %c0_15] : memref<1x1x16x8xbf16, #tpu.memory_space<vmem>>, vector<1x1x16x8xbf16>
    %31 = vector.shape_cast %30 : vector<1x1x16x8xbf16> to vector<1x16x8xbf16>
    %32 = arith.extf %31 : vector<1x16x8xbf16> to vector<1x16x8xf32>
    %33 = vector.broadcast %1 : vector<1x1x8xf32> to vector<1x16x8xf32>
    %34 = arith.mulf %32, %33 : vector<1x16x8xf32>
    %35 = vector.broadcast %3 : vector<1x1x8xf32> to vector<1x16x8xf32>
    %36 = arith.addf %34, %35 : vector<1x16x8xf32>
    %cst_16 = arith.constant 0.000000e+00 : f32
    %37 = vector.broadcast %cst_16 : f32 to vector<1x16x8xf32>
    %38 = arith.maximumf %36, %37 : vector<1x16x8xf32>
    %39 = arith.truncf %38 : vector<1x16x8xf32> to vector<1x16x8xbf16>
    %c0_i32_17 = arith.constant 0 : i32
    %40 = arith.cmpi ne, %arg1, %c0_i32_17 : i32
    %41 = arith.extui %40 : i1 to i32
    %42 = arith.sitofp %41 : i32 to f32
    %43 = arith.truncf %42 : f32 to bf16
    %44 = vector.broadcast %43 : bf16 to vector<1x16x8xbf16>
    %45 = arith.mulf %39, %44 : vector<1x16x8xbf16>
    %46 = tpu.concatenate %29, %13, %45 in 0 : vector<1x16x8xbf16>, vector<16x16x8xbf16>, vector<1x16x8xbf16> -> vector<18x16x8xbf16>
    %cst_18 = arith.constant 0.000000e+00 : bf16
    %47 = vector.broadcast %cst_18 : bf16 to vector<18x1x8xbf16>
    %c0_19 = arith.constant 0 : index
    %c0_20 = arith.constant 0 : index
    %c0_21 = arith.constant 0 : index
    %48 = vector.load %arg11[%c0_19, %c0_20, %c0_21] : memref<18x16x24xbf16, #tpu.memory_space<vmem>>, vector<18x1x8xbf16>
    tpu.vector_store %arg11[%c0_19, %c0_20, %c0_21], %47 {strides = array<i32>} : memref<18x16x24xbf16, #tpu.memory_space<vmem>>, vector<18x1x8xbf16>,
    %49 = vector.extract_strided_slice %46 {offsets = [0, 0, 0], sizes = [18, 15, 8], strides = [1, 1, 1]} : vector<18x16x8xbf16> to vector<18x15x8xbf16>
    %c0_22 = arith.constant 0 : index
    %c1 = arith.constant 1 : index
    %c0_23 = arith.constant 0 : index
    %50 = vector.load %arg11[%c0_22, %c1, %c0_23] : memref<18x16x24xbf16, #tpu.memory_space<vmem>>, vector<18x15x8xbf16>
    tpu.vector_store %arg11[%c0_22, %c1, %c0_23], %49 {strides = array<i32>} : memref<18x16x24xbf16, #tpu.memory_space<vmem>>, vector<18x15x8xbf16>,
    %c0_24 = arith.constant 0 : index
    %c0_25 = arith.constant 0 : index
    %c8 = arith.constant 8 : index
    %51 = vector.load %arg11[%c0_24, %c0_25, %c8] : memref<18x16x24xbf16, #tpu.memory_space<vmem>>, vector<18x16x8xbf16>
    tpu.vector_store %arg11[%c0_24, %c0_25, %c8], %46 {strides = array<i32>} : memref<18x16x24xbf16, #tpu.memory_space<vmem>>, vector<18x16x8xbf16>,
    %52 = vector.extract_strided_slice %46 {offsets = [0, 1, 0], sizes = [18, 15, 8], strides = [1, 1, 1]} : vector<18x16x8xbf16> to vector<18x15x8xbf16>
    %c0_26 = arith.constant 0 : index
    %c0_27 = arith.constant 0 : index
    %c16 = arith.constant 16 : index
    %53 = vector.load %arg11[%c0_26, %c0_27, %c16] : memref<18x16x24xbf16, #tpu.memory_space<vmem>>, vector<18x15x8xbf16>
    tpu.vector_store %arg11[%c0_26, %c0_27, %c16], %52 {strides = array<i32>} : memref<18x16x24xbf16, #tpu.memory_space<vmem>>, vector<18x15x8xbf16>,
    %c0_28 = arith.constant 0 : index
    %c15 = arith.constant 15 : index
    %c16_29 = arith.constant 16 : index
    %54 = vector.load %arg11[%c0_28, %c15, %c16_29] : memref<18x16x24xbf16, #tpu.memory_space<vmem>>, vector<18x1x8xbf16>
    tpu.vector_store %arg11[%c0_28, %c15, %c16_29], %47 {strides = array<i32>} : memref<18x16x24xbf16, #tpu.memory_space<vmem>>, vector<18x1x8xbf16>,
    %cst_30 = arith.constant 0.000000e+00 : f32
    %55 = vector.broadcast %cst_30 : f32 to vector<256x8xf32>
    %c0_31 = arith.constant 0 : index
    %c0_32 = arith.constant 0 : index
    %c0_33 = arith.constant 0 : index
    %56 = vector.load %arg11[%c0_31, %c0_32, %c0_33] : memref<18x16x24xbf16, #tpu.memory_space<vmem>>, vector<16x16x24xbf16>
    %57 = vector.shape_cast %56 : vector<16x16x24xbf16> to vector<256x24xbf16>
    %c0_34 = arith.constant 0 : index
    %c0_35 = arith.constant 0 : index
    %c0_36 = arith.constant 0 : index
    %58 = vector.load %arg7[%c0_34, %c0_35, %c0_36] : memref<3x24x8xbf16, #tpu.memory_space<vmem>>, vector<1x24x8xbf16>
    %59 = vector.shape_cast %58 : vector<1x24x8xbf16> to vector<24x8xbf16>
    %cst_37 = arith.constant dense<0.000000e+00> : vector<256x8xf32>
    %60 = tpu.matmul %57, %59, %cst_37 {dimension_numbers = #tpu.dot_dimension_numbers<[1], [0], [0], [1], [0, 0, 1, 1], [], []>} : vector<256x24xbf16>, vector<24x8xbf16>, vector<256x8xf32> -> vector<256x8xf32>
    %61 = arith.addf %55, %60 : vector<256x8xf32>
    %c1_38 = arith.constant 1 : index
    %c0_39 = arith.constant 0 : index
    %c0_40 = arith.constant 0 : index
    %62 = vector.load %arg11[%c1_38, %c0_39, %c0_40] : memref<18x16x24xbf16, #tpu.memory_space<vmem>>, vector<16x16x24xbf16>
    %63 = vector.shape_cast %62 : vector<16x16x24xbf16> to vector<256x24xbf16>
    %c1_41 = arith.constant 1 : index
    %c0_42 = arith.constant 0 : index
    %c0_43 = arith.constant 0 : index
    %64 = vector.load %arg7[%c1_41, %c0_42, %c0_43] : memref<3x24x8xbf16, #tpu.memory_space<vmem>>, vector<1x24x8xbf16>
    %65 = vector.shape_cast %64 : vector<1x24x8xbf16> to vector<24x8xbf16>
    %cst_44 = arith.constant dense<0.000000e+00> : vector<256x8xf32>
    %66 = tpu.matmul %63, %65, %cst_44 {dimension_numbers = #tpu.dot_dimension_numbers<[1], [0], [0], [1], [0, 0, 1, 1], [], []>} : vector<256x24xbf16>, vector<24x8xbf16>, vector<256x8xf32> -> vector<256x8xf32>
    %67 = arith.addf %61, %66 : vector<256x8xf32>
    %c2 = arith.constant 2 : index
    %c0_45 = arith.constant 0 : index
    %c0_46 = arith.constant 0 : index
    %68 = vector.load %arg11[%c2, %c0_45, %c0_46] : memref<18x16x24xbf16, #tpu.memory_space<vmem>>, vector<16x16x24xbf16>
    %69 = vector.shape_cast %68 : vector<16x16x24xbf16> to vector<256x24xbf16>
    %c2_47 = arith.constant 2 : index
    %c0_48 = arith.constant 0 : index
    %c0_49 = arith.constant 0 : index
    %70 = vector.load %arg7[%c2_47, %c0_48, %c0_49] : memref<3x24x8xbf16, #tpu.memory_space<vmem>>, vector<1x24x8xbf16>
    %71 = vector.shape_cast %70 : vector<1x24x8xbf16> to vector<24x8xbf16>
    %cst_50 = arith.constant dense<0.000000e+00> : vector<256x8xf32>
    %72 = tpu.matmul %69, %71, %cst_50 {dimension_numbers = #tpu.dot_dimension_numbers<[1], [0], [0], [1], [0, 0, 1, 1], [], []>} : vector<256x24xbf16>, vector<24x8xbf16>, vector<256x8xf32> -> vector<256x8xf32>
    %73 = arith.addf %67, %72 : vector<256x8xf32>
    %c0_51 = arith.constant 0 : index
    %c0_52 = arith.constant 0 : index
    %74 = vector.load %arg8[%c0_51, %c0_52] : memref<1x8xf32, #tpu.memory_space<vmem>>, vector<1x8xf32>
    %75 = vector.broadcast %74 : vector<1x8xf32> to vector<256x8xf32>
    %76 = arith.addf %73, %75 : vector<256x8xf32>
    %cst_53 = arith.constant dense<0.000000e+00> : vector<8xf32>
    %77 = vector.multi_reduction <add>, %76, %cst_53 [0] : vector<256x8xf32> to vector<8xf32>
    %78 = vector.shape_cast %77 : vector<8xf32> to vector<1x8xf32>
    %c0_54 = arith.constant 0 : index
    %c0_55 = arith.constant 0 : index
    %c0_56 = arith.constant 0 : index
    %c0_57 = arith.constant 0 : index
    %79 = vector.load %arg10[%c0_54, %c0_55, %c0_56, %c0_57] : memref<1x1x2x8xf32, #tpu.memory_space<vmem>>, vector<1x1x1x8xf32>
    %80 = vector.shape_cast %79 : vector<1x1x1x8xf32> to vector<1x8xf32>
    %81 = vector.shape_cast %78 : vector<1x8xf32> to vector<1x1x1x8xf32>
    tpu.vector_store %arg10[%c0_54, %c0_55, %c0_56, %c0_57], %81 {strides = array<i32>} : memref<1x1x2x8xf32, #tpu.memory_space<vmem>>, vector<1x1x1x8xf32>,
    %82 = arith.mulf %76, %76 : vector<256x8xf32>
    %cst_58 = arith.constant dense<0.000000e+00> : vector<8xf32>
    %83 = vector.multi_reduction <add>, %82, %cst_58 [0] : vector<256x8xf32> to vector<8xf32>
    %84 = vector.shape_cast %83 : vector<8xf32> to vector<1x8xf32>
    %c0_59 = arith.constant 0 : index
    %c0_60 = arith.constant 0 : index
    %c1_61 = arith.constant 1 : index
    %c0_62 = arith.constant 0 : index
    %85 = vector.load %arg10[%c0_59, %c0_60, %c1_61, %c0_62] : memref<1x1x2x8xf32, #tpu.memory_space<vmem>>, vector<1x1x1x8xf32>
    %86 = vector.shape_cast %85 : vector<1x1x1x8xf32> to vector<1x8xf32>
    %87 = vector.shape_cast %84 : vector<1x8xf32> to vector<1x1x1x8xf32>
    tpu.vector_store %arg10[%c0_59, %c0_60, %c1_61, %c0_62], %87 {strides = array<i32>} : memref<1x1x2x8xf32, #tpu.memory_space<vmem>>, vector<1x1x1x8xf32>,
    %88 = vector.shape_cast %76 : vector<256x8xf32> to vector<16x16x8xf32>
    %89 = arith.truncf %88 : vector<16x16x8xf32> to vector<16x16x8xbf16>
    %c0_63 = arith.constant 0 : index
    %c0_64 = arith.constant 0 : index
    %c0_65 = arith.constant 0 : index
    %c0_66 = arith.constant 0 : index
    %90 = vector.load %arg9[%c0_63, %c0_64, %c0_65, %c0_66] : memref<1x16x16x8xbf16, #tpu.memory_space<vmem>>, vector<1x16x16x8xbf16>
    %91 = vector.shape_cast %90 : vector<1x16x16x8xbf16> to vector<16x16x8xbf16>
    %92 = vector.shape_cast %89 : vector<16x16x8xbf16> to vector<1x16x16x8xbf16>
    tpu.vector_store %arg9[%c0_63, %c0_64, %c0_65, %c0_66], %92 {strides = array<i32>} : memref<1x16x16x8xbf16, #tpu.memory_space<vmem>>, vector<1x16x16x8xbf16>,
    return
  }
  func.func @transform_0(%arg0: i32, %arg1: i32) -> (i32, i32, i32, i32) {
    %c0_i32 = arith.constant 0 : i32
    %c0_i32_0 = arith.constant 0 : i32
    %c0_i32_1 = arith.constant 0 : i32
    return %arg0, %arg1, %c0_i32, %c0_i32_0 : i32, i32, i32, i32
  }
  func.func @transform_1(%arg0: i32, %arg1: i32) -> (i32, i32, i32, i32) {
    %c16_i32 = arith.constant 16 : i32
    %0 = arith.muli %arg1, %c16_i32 : i32
    %c1_i32 = arith.constant 1 : i32
    %1 = arith.subi %0, %c1_i32 : i32
    %c0_i32 = arith.constant 0 : i32
    %2 = arith.maxsi %1, %c0_i32 : i32
    %c0_i32_0 = arith.constant 0 : i32
    %c0_i32_1 = arith.constant 0 : i32
    %c0_i32_2 = arith.constant 0 : i32
    return %arg0, %2, %c0_i32_0, %c0_i32_1 : i32, i32, i32, i32
  }
  func.func @transform_2(%arg0: i32, %arg1: i32) -> (i32, i32, i32, i32) {
    %c16_i32 = arith.constant 16 : i32
    %0 = arith.muli %arg1, %c16_i32 : i32
    %c16_i32_0 = arith.constant 16 : i32
    %1 = arith.addi %0, %c16_i32_0 : i32
    %c15_i32 = arith.constant 15 : i32
    %2 = arith.minsi %1, %c15_i32 : i32
    %c0_i32 = arith.constant 0 : i32
    %c0_i32_1 = arith.constant 0 : i32
    %c0_i32_2 = arith.constant 0 : i32
    return %arg0, %2, %c0_i32, %c0_i32_1 : i32, i32, i32, i32
  }
  func.func @transform_3(%arg0: i32, %arg1: i32) -> (i32, i32) {
    %c0_i32 = arith.constant 0 : i32
    %c0_i32_0 = arith.constant 0 : i32
    %c0_i32_1 = arith.constant 0 : i32
    return %c0_i32, %c0_i32_0 : i32, i32
  }
  func.func @transform_4(%arg0: i32, %arg1: i32) -> (i32, i32) {
    %c0_i32 = arith.constant 0 : i32
    %c0_i32_0 = arith.constant 0 : i32
    %c0_i32_1 = arith.constant 0 : i32
    return %c0_i32, %c0_i32_0 : i32, i32
  }
  func.func @transform_5(%arg0: i32, %arg1: i32) -> (i32, i32, i32) {
    %c0_i32 = arith.constant 0 : i32
    %c0_i32_0 = arith.constant 0 : i32
    %c0_i32_1 = arith.constant 0 : i32
    %c0_i32_2 = arith.constant 0 : i32
    return %c0_i32, %c0_i32_0, %c0_i32_1 : i32, i32, i32
  }
  func.func @transform_6(%arg0: i32, %arg1: i32) -> (i32, i32) {
    %c0_i32 = arith.constant 0 : i32
    %c0_i32_0 = arith.constant 0 : i32
    %c0_i32_1 = arith.constant 0 : i32
    return %c0_i32, %c0_i32_0 : i32, i32
  }
  func.func @transform_7(%arg0: i32, %arg1: i32) -> (i32, i32, i32, i32) {
    %c0_i32 = arith.constant 0 : i32
    %c0_i32_0 = arith.constant 0 : i32
    %c0_i32_1 = arith.constant 0 : i32
    return %arg0, %arg1, %c0_i32, %c0_i32_0 : i32, i32, i32, i32
  }
  func.func @transform_8(%arg0: i32, %arg1: i32) -> (i32, i32, i32, i32) {
    %c0_i32 = arith.constant 0 : i32
    %c0_i32_0 = arith.constant 0 : i32
    %c0_i32_1 = arith.constant 0 : i32
    return %arg0, %arg1, %c0_i32, %c0_i32_0 : i32, i32, i32, i32
  }
}

module attributes {stable_mosaic.version = 11 : i64} {
  func.func @bn_relu_kernel(%arg0: i32, %arg1: i32, %arg2: memref<1x16x16x8xbf16, #tpu.memory_space<vmem>>, %arg3: memref<1x8xf32, #tpu.memory_space<vmem>>, %arg4: memref<1x8xf32, #tpu.memory_space<vmem>>, %arg5: memref<1x16x16x8xbf16, #tpu.memory_space<vmem>>) attributes {dimension_semantics = [#tpu.dimension_semantics<parallel>, #tpu.dimension_semantics<parallel>], iteration_bounds = array<i64: 2, 1>, scalar_prefetch = 0 : i64, scratch_operands = 0 : i64, tpu.core_type = #tpu.core_type<tc>, window_params = [{transform_indices = @transform_0, window_bounds = array<i64: 1, 16, 16, 8>}, {pipeline_mode = #tpu.pipeline_mode<synchronous>, transform_indices = @transform_1, window_bounds = array<i64: 1, 8>}, {pipeline_mode = #tpu.pipeline_mode<synchronous>, transform_indices = @transform_2, window_bounds = array<i64: 1, 8>}, {transform_indices = @transform_3, window_bounds = array<i64: 1, 16, 16, 8>}]} {
    %c0 = arith.constant 0 : index
    %c0_0 = arith.constant 0 : index
    %c0_1 = arith.constant 0 : index
    %c0_2 = arith.constant 0 : index
    %0 = vector.load %arg2[%c0, %c0_0, %c0_1, %c0_2] : memref<1x16x16x8xbf16, #tpu.memory_space<vmem>>, vector<1x16x16x8xbf16>
    %1 = vector.shape_cast %0 : vector<1x16x16x8xbf16> to vector<16x16x8xbf16>
    %2 = arith.extf %1 : vector<16x16x8xbf16> to vector<16x16x8xf32>
    %c0_3 = arith.constant 0 : index
    %c0_4 = arith.constant 0 : index
    %3 = vector.load %arg3[%c0_3, %c0_4] : memref<1x8xf32, #tpu.memory_space<vmem>>, vector<1x8xf32>
    %4 = vector.shape_cast %3 : vector<1x8xf32> to vector<1x1x8xf32>
    %c0_5 = arith.constant 0 : index
    %c0_6 = arith.constant 0 : index
    %5 = vector.load %arg4[%c0_5, %c0_6] : memref<1x8xf32, #tpu.memory_space<vmem>>, vector<1x8xf32>
    %6 = vector.shape_cast %5 : vector<1x8xf32> to vector<1x1x8xf32>
    %7 = vector.broadcast %4 : vector<1x1x8xf32> to vector<16x16x8xf32>
    %8 = arith.mulf %2, %7 : vector<16x16x8xf32>
    %9 = vector.broadcast %6 : vector<1x1x8xf32> to vector<16x16x8xf32>
    %10 = arith.addf %8, %9 : vector<16x16x8xf32>
    %cst = arith.constant 0.000000e+00 : f32
    %11 = vector.broadcast %cst : f32 to vector<16x16x8xf32>
    %12 = arith.maximumf %10, %11 : vector<16x16x8xf32>
    %13 = arith.truncf %12 : vector<16x16x8xf32> to vector<16x16x8xbf16>
    %c0_7 = arith.constant 0 : index
    %c0_8 = arith.constant 0 : index
    %c0_9 = arith.constant 0 : index
    %c0_10 = arith.constant 0 : index
    %14 = vector.load %arg5[%c0_7, %c0_8, %c0_9, %c0_10] : memref<1x16x16x8xbf16, #tpu.memory_space<vmem>>, vector<1x16x16x8xbf16>
    %15 = vector.shape_cast %14 : vector<1x16x16x8xbf16> to vector<16x16x8xbf16>
    %16 = vector.shape_cast %13 : vector<16x16x8xbf16> to vector<1x16x16x8xbf16>
    tpu.vector_store %arg5[%c0_7, %c0_8, %c0_9, %c0_10], %16 {strides = array<i32>} : memref<1x16x16x8xbf16, #tpu.memory_space<vmem>>, vector<1x16x16x8xbf16>,
    return
  }
  func.func @transform_0(%arg0: i32, %arg1: i32) -> (i32, i32, i32, i32) {
    %c0_i32 = arith.constant 0 : i32
    %c0_i32_0 = arith.constant 0 : i32
    %c0_i32_1 = arith.constant 0 : i32
    return %arg0, %arg1, %c0_i32, %c0_i32_0 : i32, i32, i32, i32
  }
  func.func @transform_1(%arg0: i32, %arg1: i32) -> (i32, i32) {
    %c0_i32 = arith.constant 0 : i32
    %c0_i32_0 = arith.constant 0 : i32
    %c0_i32_1 = arith.constant 0 : i32
    return %c0_i32, %c0_i32_0 : i32, i32
  }
  func.func @transform_2(%arg0: i32, %arg1: i32) -> (i32, i32) {
    %c0_i32 = arith.constant 0 : i32
    %c0_i32_0 = arith.constant 0 : i32
    %c0_i32_1 = arith.constant 0 : i32
    return %c0_i32, %c0_i32_0 : i32, i32
  }
  func.func @transform_3(%arg0: i32, %arg1: i32) -> (i32, i32, i32, i32) {
    %c0_i32 = arith.constant 0 : i32
    %c0_i32_0 = arith.constant 0 : i32
    %c0_i32_1 = arith.constant 0 : i32
    return %arg0, %arg1, %c0_i32, %c0_i32_0 : i32, i32, i32, i32
  }
}

module attributes {stable_mosaic.version = 11 : i64} {
  func.func @conv3x3_stats_kernel(%arg0: i32, %arg1: i32, %arg2: memref<1x16x16x4xbf16, #tpu.memory_space<vmem>>, %arg3: memref<1x1x16x4xbf16, #tpu.memory_space<vmem>>, %arg4: memref<1x1x16x4xbf16, #tpu.memory_space<vmem>>, %arg5: memref<1x4xf32, #tpu.memory_space<vmem>>, %arg6: memref<1x4xf32, #tpu.memory_space<vmem>>, %arg7: memref<3x12x8xbf16, #tpu.memory_space<vmem>>, %arg8: memref<1x8xf32, #tpu.memory_space<vmem>>, %arg9: memref<1x16x16x8xbf16, #tpu.memory_space<vmem>>, %arg10: memref<1x1x2x8xf32, #tpu.memory_space<vmem>>, %arg11: memref<18x16x12xbf16, #tpu.memory_space<vmem>>) attributes {dimension_semantics = [#tpu.dimension_semantics<parallel>, #tpu.dimension_semantics<parallel>], iteration_bounds = array<i64: 2, 1>, scalar_prefetch = 0 : i64, scratch_operands = 1 : i64, tpu.core_type = #tpu.core_type<tc>, window_params = [{transform_indices = @transform_0, window_bounds = array<i64: 1, 16, 16, 4>}, {transform_indices = @transform_1, window_bounds = array<i64: 1, 1, 16, 4>}, {transform_indices = @transform_2, window_bounds = array<i64: 1, 1, 16, 4>}, {pipeline_mode = #tpu.pipeline_mode<synchronous>, transform_indices = @transform_3, window_bounds = array<i64: 1, 4>}, {pipeline_mode = #tpu.pipeline_mode<synchronous>, transform_indices = @transform_4, window_bounds = array<i64: 1, 4>}, {pipeline_mode = #tpu.pipeline_mode<synchronous>, transform_indices = @transform_5, window_bounds = array<i64: 3, 12, 8>}, {pipeline_mode = #tpu.pipeline_mode<synchronous>, transform_indices = @transform_6, window_bounds = array<i64: 1, 8>}, {transform_indices = @transform_7, window_bounds = array<i64: 1, 16, 16, 8>}, {transform_indices = @transform_8, window_bounds = array<i64: 1, 1, 2, 8>}]} {
    %c0 = arith.constant 0 : index
    %c0_0 = arith.constant 0 : index
    %c0_1 = arith.constant 0 : index
    %c0_2 = arith.constant 0 : index
    %0 = vector.load %arg2[%c0, %c0_0, %c0_1, %c0_2] : memref<1x16x16x4xbf16, #tpu.memory_space<vmem>>, vector<1x16x16x4xbf16>
    %1 = vector.shape_cast %0 : vector<1x16x16x4xbf16> to vector<16x16x4xbf16>
    %c0_3 = arith.constant 0 : index
    %c0_4 = arith.constant 0 : index
    %c0_5 = arith.constant 0 : index
    %c0_6 = arith.constant 0 : index
    %2 = vector.load %arg3[%c0_3, %c0_4, %c0_5, %c0_6] : memref<1x1x16x4xbf16, #tpu.memory_space<vmem>>, vector<1x1x16x4xbf16>
    %3 = vector.shape_cast %2 : vector<1x1x16x4xbf16> to vector<1x16x4xbf16>
    %c0_i32 = arith.constant 0 : i32
    %4 = arith.cmpi ne, %arg1, %c0_i32 : i32
    %5 = arith.extui %4 : i1 to i32
    %6 = arith.sitofp %5 : i32 to f32
    %7 = arith.truncf %6 : f32 to bf16
    %8 = vector.broadcast %7 : bf16 to vector<1x16x4xbf16>
    %9 = arith.mulf %3, %8 : vector<1x16x4xbf16>
    %c0_7 = arith.constant 0 : index
    %c0_8 = arith.constant 0 : index
    %c0_9 = arith.constant 0 : index
    %c0_10 = arith.constant 0 : index
    %10 = vector.load %arg4[%c0_7, %c0_8, %c0_9, %c0_10] : memref<1x1x16x4xbf16, #tpu.memory_space<vmem>>, vector<1x1x16x4xbf16>
    %11 = vector.shape_cast %10 : vector<1x1x16x4xbf16> to vector<1x16x4xbf16>
    %c0_i32_11 = arith.constant 0 : i32
    %12 = arith.cmpi ne, %arg1, %c0_i32_11 : i32
    %13 = arith.extui %12 : i1 to i32
    %14 = arith.sitofp %13 : i32 to f32
    %15 = arith.truncf %14 : f32 to bf16
    %16 = vector.broadcast %15 : bf16 to vector<1x16x4xbf16>
    %17 = arith.mulf %11, %16 : vector<1x16x4xbf16>
    %18 = tpu.concatenate %9, %1, %17 in 0 : vector<1x16x4xbf16>, vector<16x16x4xbf16>, vector<1x16x4xbf16> -> vector<18x16x4xbf16>
    %cst = arith.constant 0.000000e+00 : bf16
    %19 = vector.broadcast %cst : bf16 to vector<18x1x4xbf16>
    %c0_12 = arith.constant 0 : index
    %c0_13 = arith.constant 0 : index
    %c0_14 = arith.constant 0 : index
    %20 = vector.load %arg11[%c0_12, %c0_13, %c0_14] : memref<18x16x12xbf16, #tpu.memory_space<vmem>>, vector<18x1x4xbf16>
    tpu.vector_store %arg11[%c0_12, %c0_13, %c0_14], %19 {strides = array<i32>} : memref<18x16x12xbf16, #tpu.memory_space<vmem>>, vector<18x1x4xbf16>,
    %21 = vector.extract_strided_slice %18 {offsets = [0, 0, 0], sizes = [18, 15, 4], strides = [1, 1, 1]} : vector<18x16x4xbf16> to vector<18x15x4xbf16>
    %c0_15 = arith.constant 0 : index
    %c1 = arith.constant 1 : index
    %c0_16 = arith.constant 0 : index
    %22 = vector.load %arg11[%c0_15, %c1, %c0_16] : memref<18x16x12xbf16, #tpu.memory_space<vmem>>, vector<18x15x4xbf16>
    tpu.vector_store %arg11[%c0_15, %c1, %c0_16], %21 {strides = array<i32>} : memref<18x16x12xbf16, #tpu.memory_space<vmem>>, vector<18x15x4xbf16>,
    %c0_17 = arith.constant 0 : index
    %c0_18 = arith.constant 0 : index
    %c4 = arith.constant 4 : index
    %23 = vector.load %arg11[%c0_17, %c0_18, %c4] : memref<18x16x12xbf16, #tpu.memory_space<vmem>>, vector<18x16x4xbf16>
    tpu.vector_store %arg11[%c0_17, %c0_18, %c4], %18 {strides = array<i32>} : memref<18x16x12xbf16, #tpu.memory_space<vmem>>, vector<18x16x4xbf16>,
    %24 = vector.extract_strided_slice %18 {offsets = [0, 1, 0], sizes = [18, 15, 4], strides = [1, 1, 1]} : vector<18x16x4xbf16> to vector<18x15x4xbf16>
    %c0_19 = arith.constant 0 : index
    %c0_20 = arith.constant 0 : index
    %c8 = arith.constant 8 : index
    %25 = vector.load %arg11[%c0_19, %c0_20, %c8] : memref<18x16x12xbf16, #tpu.memory_space<vmem>>, vector<18x15x4xbf16>
    tpu.vector_store %arg11[%c0_19, %c0_20, %c8], %24 {strides = array<i32>} : memref<18x16x12xbf16, #tpu.memory_space<vmem>>, vector<18x15x4xbf16>,
    %c0_21 = arith.constant 0 : index
    %c15 = arith.constant 15 : index
    %c8_22 = arith.constant 8 : index
    %26 = vector.load %arg11[%c0_21, %c15, %c8_22] : memref<18x16x12xbf16, #tpu.memory_space<vmem>>, vector<18x1x4xbf16>
    tpu.vector_store %arg11[%c0_21, %c15, %c8_22], %19 {strides = array<i32>} : memref<18x16x12xbf16, #tpu.memory_space<vmem>>, vector<18x1x4xbf16>,
    %cst_23 = arith.constant 0.000000e+00 : f32
    %27 = vector.broadcast %cst_23 : f32 to vector<256x8xf32>
    %c0_24 = arith.constant 0 : index
    %c0_25 = arith.constant 0 : index
    %c0_26 = arith.constant 0 : index
    %28 = vector.load %arg11[%c0_24, %c0_25, %c0_26] : memref<18x16x12xbf16, #tpu.memory_space<vmem>>, vector<16x16x12xbf16>
    %29 = vector.shape_cast %28 : vector<16x16x12xbf16> to vector<256x12xbf16>
    %c0_27 = arith.constant 0 : index
    %c0_28 = arith.constant 0 : index
    %c0_29 = arith.constant 0 : index
    %30 = vector.load %arg7[%c0_27, %c0_28, %c0_29] : memref<3x12x8xbf16, #tpu.memory_space<vmem>>, vector<1x12x8xbf16>
    %31 = vector.shape_cast %30 : vector<1x12x8xbf16> to vector<12x8xbf16>
    %cst_30 = arith.constant dense<0.000000e+00> : vector<256x8xf32>
    %32 = tpu.matmul %29, %31, %cst_30 {dimension_numbers = #tpu.dot_dimension_numbers<[1], [0], [0], [1], [0, 0, 1, 1], [], []>} : vector<256x12xbf16>, vector<12x8xbf16>, vector<256x8xf32> -> vector<256x8xf32>
    %33 = arith.addf %27, %32 : vector<256x8xf32>
    %c1_31 = arith.constant 1 : index
    %c0_32 = arith.constant 0 : index
    %c0_33 = arith.constant 0 : index
    %34 = vector.load %arg11[%c1_31, %c0_32, %c0_33] : memref<18x16x12xbf16, #tpu.memory_space<vmem>>, vector<16x16x12xbf16>
    %35 = vector.shape_cast %34 : vector<16x16x12xbf16> to vector<256x12xbf16>
    %c1_34 = arith.constant 1 : index
    %c0_35 = arith.constant 0 : index
    %c0_36 = arith.constant 0 : index
    %36 = vector.load %arg7[%c1_34, %c0_35, %c0_36] : memref<3x12x8xbf16, #tpu.memory_space<vmem>>, vector<1x12x8xbf16>
    %37 = vector.shape_cast %36 : vector<1x12x8xbf16> to vector<12x8xbf16>
    %cst_37 = arith.constant dense<0.000000e+00> : vector<256x8xf32>
    %38 = tpu.matmul %35, %37, %cst_37 {dimension_numbers = #tpu.dot_dimension_numbers<[1], [0], [0], [1], [0, 0, 1, 1], [], []>} : vector<256x12xbf16>, vector<12x8xbf16>, vector<256x8xf32> -> vector<256x8xf32>
    %39 = arith.addf %33, %38 : vector<256x8xf32>
    %c2 = arith.constant 2 : index
    %c0_38 = arith.constant 0 : index
    %c0_39 = arith.constant 0 : index
    %40 = vector.load %arg11[%c2, %c0_38, %c0_39] : memref<18x16x12xbf16, #tpu.memory_space<vmem>>, vector<16x16x12xbf16>
    %41 = vector.shape_cast %40 : vector<16x16x12xbf16> to vector<256x12xbf16>
    %c2_40 = arith.constant 2 : index
    %c0_41 = arith.constant 0 : index
    %c0_42 = arith.constant 0 : index
    %42 = vector.load %arg7[%c2_40, %c0_41, %c0_42] : memref<3x12x8xbf16, #tpu.memory_space<vmem>>, vector<1x12x8xbf16>
    %43 = vector.shape_cast %42 : vector<1x12x8xbf16> to vector<12x8xbf16>
    %cst_43 = arith.constant dense<0.000000e+00> : vector<256x8xf32>
    %44 = tpu.matmul %41, %43, %cst_43 {dimension_numbers = #tpu.dot_dimension_numbers<[1], [0], [0], [1], [0, 0, 1, 1], [], []>} : vector<256x12xbf16>, vector<12x8xbf16>, vector<256x8xf32> -> vector<256x8xf32>
    %45 = arith.addf %39, %44 : vector<256x8xf32>
    %c0_44 = arith.constant 0 : index
    %c0_45 = arith.constant 0 : index
    %46 = vector.load %arg8[%c0_44, %c0_45] : memref<1x8xf32, #tpu.memory_space<vmem>>, vector<1x8xf32>
    %47 = vector.broadcast %46 : vector<1x8xf32> to vector<256x8xf32>
    %48 = arith.addf %45, %47 : vector<256x8xf32>
    %cst_46 = arith.constant dense<0.000000e+00> : vector<8xf32>
    %49 = vector.multi_reduction <add>, %48, %cst_46 [0] : vector<256x8xf32> to vector<8xf32>
    %50 = vector.shape_cast %49 : vector<8xf32> to vector<1x8xf32>
    %c0_47 = arith.constant 0 : index
    %c0_48 = arith.constant 0 : index
    %c0_49 = arith.constant 0 : index
    %c0_50 = arith.constant 0 : index
    %51 = vector.load %arg10[%c0_47, %c0_48, %c0_49, %c0_50] : memref<1x1x2x8xf32, #tpu.memory_space<vmem>>, vector<1x1x1x8xf32>
    %52 = vector.shape_cast %51 : vector<1x1x1x8xf32> to vector<1x8xf32>
    %53 = vector.shape_cast %50 : vector<1x8xf32> to vector<1x1x1x8xf32>
    tpu.vector_store %arg10[%c0_47, %c0_48, %c0_49, %c0_50], %53 {strides = array<i32>} : memref<1x1x2x8xf32, #tpu.memory_space<vmem>>, vector<1x1x1x8xf32>,
    %54 = arith.mulf %48, %48 : vector<256x8xf32>
    %cst_51 = arith.constant dense<0.000000e+00> : vector<8xf32>
    %55 = vector.multi_reduction <add>, %54, %cst_51 [0] : vector<256x8xf32> to vector<8xf32>
    %56 = vector.shape_cast %55 : vector<8xf32> to vector<1x8xf32>
    %c0_52 = arith.constant 0 : index
    %c0_53 = arith.constant 0 : index
    %c1_54 = arith.constant 1 : index
    %c0_55 = arith.constant 0 : index
    %57 = vector.load %arg10[%c0_52, %c0_53, %c1_54, %c0_55] : memref<1x1x2x8xf32, #tpu.memory_space<vmem>>, vector<1x1x1x8xf32>
    %58 = vector.shape_cast %57 : vector<1x1x1x8xf32> to vector<1x8xf32>
    %59 = vector.shape_cast %56 : vector<1x8xf32> to vector<1x1x1x8xf32>
    tpu.vector_store %arg10[%c0_52, %c0_53, %c1_54, %c0_55], %59 {strides = array<i32>} : memref<1x1x2x8xf32, #tpu.memory_space<vmem>>, vector<1x1x1x8xf32>,
    %60 = vector.shape_cast %48 : vector<256x8xf32> to vector<16x16x8xf32>
    %61 = arith.truncf %60 : vector<16x16x8xf32> to vector<16x16x8xbf16>
    %c0_56 = arith.constant 0 : index
    %c0_57 = arith.constant 0 : index
    %c0_58 = arith.constant 0 : index
    %c0_59 = arith.constant 0 : index
    %62 = vector.load %arg9[%c0_56, %c0_57, %c0_58, %c0_59] : memref<1x16x16x8xbf16, #tpu.memory_space<vmem>>, vector<1x16x16x8xbf16>
    %63 = vector.shape_cast %62 : vector<1x16x16x8xbf16> to vector<16x16x8xbf16>
    %64 = vector.shape_cast %61 : vector<16x16x8xbf16> to vector<1x16x16x8xbf16>
    tpu.vector_store %arg9[%c0_56, %c0_57, %c0_58, %c0_59], %64 {strides = array<i32>} : memref<1x16x16x8xbf16, #tpu.memory_space<vmem>>, vector<1x16x16x8xbf16>,
    return
  }
  func.func @transform_0(%arg0: i32, %arg1: i32) -> (i32, i32, i32, i32) {
    %c0_i32 = arith.constant 0 : i32
    %c0_i32_0 = arith.constant 0 : i32
    %c0_i32_1 = arith.constant 0 : i32
    return %arg0, %arg1, %c0_i32, %c0_i32_0 : i32, i32, i32, i32
  }
  func.func @transform_1(%arg0: i32, %arg1: i32) -> (i32, i32, i32, i32) {
    %c16_i32 = arith.constant 16 : i32
    %0 = arith.muli %arg1, %c16_i32 : i32
    %c1_i32 = arith.constant 1 : i32
    %1 = arith.subi %0, %c1_i32 : i32
    %c0_i32 = arith.constant 0 : i32
    %2 = arith.maxsi %1, %c0_i32 : i32
    %c0_i32_0 = arith.constant 0 : i32
    %c0_i32_1 = arith.constant 0 : i32
    %c0_i32_2 = arith.constant 0 : i32
    return %arg0, %2, %c0_i32_0, %c0_i32_1 : i32, i32, i32, i32
  }
  func.func @transform_2(%arg0: i32, %arg1: i32) -> (i32, i32, i32, i32) {
    %c16_i32 = arith.constant 16 : i32
    %0 = arith.muli %arg1, %c16_i32 : i32
    %c16_i32_0 = arith.constant 16 : i32
    %1 = arith.addi %0, %c16_i32_0 : i32
    %c15_i32 = arith.constant 15 : i32
    %2 = arith.minsi %1, %c15_i32 : i32
    %c0_i32 = arith.constant 0 : i32
    %c0_i32_1 = arith.constant 0 : i32
    %c0_i32_2 = arith.constant 0 : i32
    return %arg0, %2, %c0_i32, %c0_i32_1 : i32, i32, i32, i32
  }
  func.func @transform_3(%arg0: i32, %arg1: i32) -> (i32, i32) {
    %c0_i32 = arith.constant 0 : i32
    %c0_i32_0 = arith.constant 0 : i32
    %c0_i32_1 = arith.constant 0 : i32
    return %c0_i32, %c0_i32_0 : i32, i32
  }
  func.func @transform_4(%arg0: i32, %arg1: i32) -> (i32, i32) {
    %c0_i32 = arith.constant 0 : i32
    %c0_i32_0 = arith.constant 0 : i32
    %c0_i32_1 = arith.constant 0 : i32
    return %c0_i32, %c0_i32_0 : i32, i32
  }
  func.func @transform_5(%arg0: i32, %arg1: i32) -> (i32, i32, i32) {
    %c0_i32 = arith.constant 0 : i32
    %c0_i32_0 = arith.constant 0 : i32
    %c0_i32_1 = arith.constant 0 : i32
    %c0_i32_2 = arith.constant 0 : i32
    return %c0_i32, %c0_i32_0, %c0_i32_1 : i32, i32, i32
  }
  func.func @transform_6(%arg0: i32, %arg1: i32) -> (i32, i32) {
    %c0_i32 = arith.constant 0 : i32
    %c0_i32_0 = arith.constant 0 : i32
    %c0_i32_1 = arith.constant 0 : i32
    return %c0_i32, %c0_i32_0 : i32, i32
  }
  func.func @transform_7(%arg0: i32, %arg1: i32) -> (i32, i32, i32, i32) {
    %c0_i32 = arith.constant 0 : i32
    %c0_i32_0 = arith.constant 0 : i32
    %c0_i32_1 = arith.constant 0 : i32
    return %arg0, %arg1, %c0_i32, %c0_i32_0 : i32, i32, i32, i32
  }
  func.func @transform_8(%arg0: i32, %arg1: i32) -> (i32, i32, i32, i32) {
    %c0_i32 = arith.constant 0 : i32
    %c0_i32_0 = arith.constant 0 : i32
    %c0_i32_1 = arith.constant 0 : i32
    return %arg0, %arg1, %c0_i32, %c0_i32_0 : i32, i32, i32, i32
  }
}

</mosaic_0001>

<llo_original>
// kernel: double_conv_forward.5
$region0: #{double_conv_forward.5}
  #allocation0 [shape = 'u32[]', space=smem, size = 0x4, offset = 0x4, fixed_abs, tag = 'smem constant byte address 0x4 - core index']
  #allocation1 [shape = 'u32[144,128]{1,0:T(1,128)}', space=vmem, size = 0x12000, scoped, tag = 'internal scratch']
  %s0 = inlined_call_operand.vmem [shape: bf16[2,16,16,8], index: 0, kind: input, shape index: {}]
  %s1 = inlined_call_operand.vmem [shape: f32[1,8], index: 1, kind: input, shape index: {}]
  %s2 = inlined_call_operand.vmem [shape: f32[1,8], index: 2, kind: input, shape index: {}]
  %s3 = inlined_call_operand.vmem [shape: bf16[2,16,16,8], index: 3, kind: output, shape index: {}]
  %s4 = sld [smem:[#allocation0]]
  $region45: #{double_conv_forward.5} parent=0
    _
  %s6 = ssub.s32 1, %s4
  %s7 = scalar_select 0, %s6, %s4
  loop: start=0, step=1, limit=4
  $region2: #{double_conv_forward.5} parent=0 // loop_pre_header
    _
  $region3: #{double_conv_forward.5} parent=0 // loop_header
    %s9 = sphi 0, %s13
    %p10 = scmp.ge.s32.totalorder %s9, 4
    %s16 = sphi 0, %s28
    %s17 = sphi 0, %s24
    %s18 = sphi 0, %s16
    %s19 = sphi 0, %s17
    %s20 = sphi 0, %s18
    %s21 = sphi 0, %s19
    %s33 = sphi 0, %s35
    %s36 = sphi 0, %s33
    %s37 = sphi 0, %s36
    %s53 = sphi 0, %s37
    %s57 = sphi 0, %s57
    %s59 = sphi 0, %s57
    %s60 = sphi 0, %s59
    %s74 = sphi 0, %s60
    %s78 = sphi 0, %s78
    %s80 = sphi 0, %s78
    %s81 = sphi 0, %s80
    %s95 = sphi 0, %s81
    %s103 = sphi 0, %s105
    %s106 = sphi 0, %s103
    %s107 = sphi 0, %s106
    %s123 = sphi 0, %s107
  $region4: #{double_conv_forward.5} parent=0 // loop_header_branch
    %12 = sbr.rel (%p10) target = $region8
  $region5: #{double_conv_forward.5} parent=0 // loop_body
    %s14 = ssub.s32 %s9, 1
    %s15 = ssub.s32 %s9, 2
    %s22 = sadd.s32 1, %s17
    %p23 = scmp.ge.s32.totalorder %s22, 1
    %s24 = scalar_select %p23, 0, %s22
    %s25 = sadd.s32 1, %s16
    %s26 = scalar_select %p23, %s25, %s16
    %p27 = scmp.ge.s32.totalorder %s26, 2
    %s28 = scalar_select %p27, 0, %s26
    %s29 = ssub.s32 %s16, %s28
    %s30 = ssub.s32 %s17, %s24
    %s31 = sor.u32 %s29, %s30
    %p32 = scmp.eq.s32.totalorder %s31, 0
    %s34 = sadd.s32 %s33, 1
    %s35 = scalar_select %p32, %s33, %s34
    %p38 = pneg %p32
    %p39 = scmp.eq.s32.totalorder %s9, 1
    %p40 = por %p38, %p39
    %p41 = scmp.ne.s32.totalorder %s33, %s36
    %p42 = scmp.eq.s32.totalorder %s9, 0
    %p43 = por %p41, %p42
    %p44 = scmp.ne.s32.totalorder %s33, %s36
    %p45 = scmp.eq.s32.totalorder %s14, 1
    %p46 = por %p44, %p45
    %p47 = scmp.ne.s32.totalorder %s36, %s37
    %p48 = scmp.eq.s32.totalorder %s14, 0
    %p49 = por %p47, %p48
    %p50 = scmp.ne.s32.totalorder %s36, %s37
    %p51 = scmp.eq.s32.totalorder %s15, 1
    %p52 = por %p50, %p51
    %p54 = scmp.ne.s32.totalorder %s37, %s53
    %p55 = scmp.eq.s32.totalorder %s15, 0
    %p56 = por %p54, %p55
    %s58 = sadd.s32 %s57, 1
    %p61 = scmp.eq.s32.totalorder %s9, 1
    %p62 = scmp.ne.s32.totalorder %s57, %s59
    %p63 = scmp.eq.s32.totalorder %s9, 0
    %p64 = por %p62, %p63
    %p65 = scmp.ne.s32.totalorder %s57, %s59
    %p66 = scmp.eq.s32.totalorder %s14, 1
    %p67 = por %p65, %p66
    %p68 = scmp.ne.s32.totalorder %s59, %s60
    %p69 = scmp.eq.s32.totalorder %s14, 0
    %p70 = por %p68, %p69
    %p71 = scmp.ne.s32.totalorder %s59, %s60
    %p72 = scmp.eq.s32.totalorder %s15, 1
    %p73 = por %p71, %p72
    %p75 = scmp.ne.s32.totalorder %s60, %s74
    %p76 = scmp.eq.s32.totalorder %s15, 0
    %p77 = por %p75, %p76
    %s79 = sadd.s32 %s78, 1
    %p82 = scmp.eq.s32.totalorder %s9, 1
    %p83 = scmp.ne.s32.totalorder %s78, %s80
    %p84 = scmp.eq.s32.totalorder %s9, 0
    %p85 = por %p83, %p84
    %p86 = scmp.ne.s32.totalorder %s78, %s80
    %p87 = scmp.eq.s32.totalorder %s14, 1
    %p88 = por %p86, %p87
    %p89 = scmp.ne.s32.totalorder %s80, %s81
    %p90 = scmp.eq.s32.totalorder %s14, 0
    %p91 = por %p89, %p90
    %p92 = scmp.ne.s32.totalorder %s80, %s81
    %p93 = scmp.eq.s32.totalorder %s15, 1
    %p94 = por %p92, %p93
    %p96 = scmp.ne.s32.totalorder %s81, %s95
    %p97 = scmp.eq.s32.totalorder %s15, 0
    %p98 = por %p96, %p97
    %s99 = ssub.s32 %s16, %s28
    %s100 = ssub.s32 %s17, %s24
    %s101 = sor.u32 %s99, %s100
    %p102 = scmp.eq.s32.totalorder %s101, 0
    %s104 = sadd.s32 %s103, 1
    %s105 = scalar_select %p102, %s103, %s104
    %p108 = pneg %p102
    %p109 = scmp.eq.s32.totalorder %s9, 1
    %p110 = por %p108, %p109
    %p111 = scmp.ne.s32.totalorder %s103, %s106
    %p112 = scmp.eq.s32.totalorder %s9, 0
    %p113 = por %p111, %p112
    %p114 = scmp.ne.s32.totalorder %s103, %s106
    %p115 = scmp.eq.s32.totalorder %s14, 1
    %p116 = por %p114, %p115
    %p117 = scmp.ne.s32.totalorder %s106, %s107
    %p118 = scmp.eq.s32.totalorder %s14, 0
    %p119 = por %p117, %p118
    %p120 = scmp.ne.s32.totalorder %s106, %s107
    %p121 = scmp.eq.s32.totalorder %s15, 1
    %p122 = por %p120, %p121
    %p124 = scmp.ne.s32.totalorder %s107, %s123
    %p125 = scmp.eq.s32.totalorder %s15, 0
    %p126 = por %p124, %p125
    %p127 = scmp.le.s32.totalorder 1, %s9
    %p128 = scmp.lt.s32.totalorder %s9, 3
    %p129 = pnand %p127, %p128
    %p130 = pneg %p129
    // Predicated region
    $region9: #{double_conv_forward.5} parent=5 // pred_check
      _
    $region10: #{double_conv_forward.5} parent=5 // pred_check_branch
      %132 = sbr.rel (%p129) target = $region12
    $region11: #{double_conv_forward.5} parent=5 // pred_region
      %s133 = ssub.s32 %s9, 1
      // Predicated region
      $region13: #{double_conv_forward.5} parent=11 // pred_check
        %p134 = pneg %p70
      $region14: #{double_conv_forward.5} parent=11 // pred_check_branch
        %136 = sbr.rel (%p134) target = $region16
      $region15: #{double_conv_forward.5} parent=11 // pred_region
        _
      $region16: #{double_conv_forward.5} parent=11 // pred_fallthru
        _
      // Predicated region
      $region17: #{double_conv_forward.5} parent=11 // pred_check
        %p137 = pneg %p91
      $region18: #{double_conv_forward.5} parent=11 // pred_check_branch
        %139 = sbr.rel (%p137) target = $region20
      $region19: #{double_conv_forward.5} parent=11 // pred_region
        _
      $region20: #{double_conv_forward.5} parent=11 // pred_fallthru
        _
    $region12: #{double_conv_forward.5} parent=5 // pred_fallthru
      _
    %p140 = scmp.lt.s32.totalorder %s9, 2
    // Predicated region
    $region21: #{double_conv_forward.5} parent=5 // pred_check
      %p141 = pneg %p140
    $region22: #{double_conv_forward.5} parent=5 // pred_check_branch
      %143 = sbr.rel (%p141) target = $region24
    $region23: #{double_conv_forward.5} parent=5 // pred_region
      // Predicated region
      $region25: #{double_conv_forward.5} parent=23 // pred_check
        %p144 = pneg %p43
      $region26: #{double_conv_forward.5} parent=23 // pred_check_branch
        %146 = sbr.rel (%p144) target = $region28
      $region27: #{double_conv_forward.5} parent=23 // pred_region
        %s147 = smul.u32 16, %s17
        %p148 = scmp.lt.s32.totalorder %s16, 1
        %s149 = scalar_select %p148, %s16, 1
        %p150 = scmp.lt.s32.totalorder %s147, 15
        %s151 = scalar_select %p150, %s147, 15
        %s152 = smul.addr %s151, 2
        %s153 = smul.addr %s149, 32
        %s154 = sadd.s32 %s152, %s153
        %s155 = smul.addr %s154, 4
        %s156 = scalar_lea.vmem %s0, %s155
        %s157 = smul.u32 16, %s17
      $region28: #{double_conv_forward.5} parent=23 // pred_fallthru
        _
    $region24: #{double_conv_forward.5} parent=5 // pred_fallthru
      _
    %p158 = scmp.le.s32.totalorder 1, %s9
    %p159 = scmp.lt.s32.totalorder %s9, 3
    %p160 = pnand %p158, %p159
    %p161 = pneg %p160
    // Predicated region
    $region29: #{double_conv_forward.5} parent=5 // pred_check
      _
    $region30: #{double_conv_forward.5} parent=5 // pred_check_branch
      %163 = sbr.rel (%p160) target = $region32
    $region31: #{double_conv_forward.5} parent=5 // pred_region
      %s164 = ssub.s32 %s9, 1
      %s165 = smul.u32 16, %s19
      %p166 = scmp.lt.s32.totalorder %s18, 1
      %s167 = scalar_select %p166, %s18, 1
      %p168 = scmp.lt.s32.totalorder %s165, 15
      %s169 = scalar_select %p168, %s165, 15
      %s170 = smul.addr %s169, 2
      %s171 = smul.addr %s167, 32
      %s172 = sadd.s32 %s170, %s171
      %s173 = smul.addr %s172, 4
      %s174 = scalar_lea.vmem %s0, %s173
      %p175 = pneg %p49
      %p176 = pneg %p46
      %p177 = pneg %p70
      %p178 = pneg %p67
      %p179 = pneg %p91
      %p180 = pneg %p88
      %p181 = pneg %p119
      %p182 = pneg %p116
      %s183 = smul.u32 16, %s19
      %p184 = scmp.lt.s32.totalorder %s18, 1
      %s185 = scalar_select %p184, %s18, 1
      %p186 = scmp.lt.s32.totalorder %s183, 15
      %s187 = scalar_select %p186, %s183, 15
      %s188 = smul.addr %s187, 2
      %s189 = smul.addr %s185, 32
      %s190 = sadd.s32 %s188, %s189
      %s191 = smul.addr %s190, 4
      %s192 = scalar_lea.vmem %s3, %s191
      %s193 = smul.u32 16, %s19
      %p194 = scmp.lt.s32.totalorder %s18, 1
      %s195 = scalar_select %p194, %s18, 1
      %p196 = scmp.lt.s32.totalorder %s193, 15
      %s197 = scalar_select %p196, %s193, 15
      %s198 = smul.addr %s197, 2
      %s199 = smul.addr %s195, 32
      %s200 = sadd.s32 %s198, %s199
      %s201 = smul.addr %s200, 4
      %s202 = scalar_lea.vmem %s0, %s201
      %s203 = smul.u32 16, %s19
      %s204 = smul.u32 16, %s19
      %p205 = scmp.lt.s32.totalorder %s18, 1
      %s206 = scalar_select %p205, %s18, 1
      %p207 = scmp.lt.s32.totalorder %s204, 15
      %s208 = scalar_select %p207, %s204, 15
      %s209 = smul.addr %s208, 2
      %s210 = smul.addr %s206, 32
      %s211 = sadd.s32 %s209, %s210
      %s212 = smul.addr %s211, 4
      %s213 = scalar_lea.vmem %s3, %s212
      %s214 = smul.u32 16, %s19
      %v215 = vld [vmem:[%s202] sm:$0xf]
      %v216 = vld [vmem:[%s202 + $0x4] sm:$0xf]
      %v217 = vld [vmem:[%s202 + $0x8] sm:$0xf]
      %v218 = vld [vmem:[%s202 + $0xc] sm:$0xf]
      %v219 = vld [vmem:[%s202 + $0x10] sm:$0xf]
      %v220 = vld [vmem:[%s202 + $0x14] sm:$0xf]
      %v221 = vld [vmem:[%s202 + $0x18] sm:$0xf]
      %v222 = vld [vmem:[%s202 + $0x1c] sm:$0xf]
      %v223 = vld [vmem:[%s202 + $0x20] sm:$0xf]
      %v224 = vld [vmem:[%s202 + $0x24] sm:$0xf]
      %v225 = vld [vmem:[%s202 + $0x28] sm:$0xf]
      %v226 = vld [vmem:[%s202 + $0x2c] sm:$0xf]
      %v227 = vld [vmem:[%s202 + $0x30] sm:$0xf]
      %v228 = vld [vmem:[%s202 + $0x34] sm:$0xf]
      %v229 = vld [vmem:[%s202 + $0x38] sm:$0xf]
      %v230 = vld [vmem:[%s202 + $0x3c] sm:$0xf]
      %v231 = vld [vmem:[%s202 + $0x40] sm:$0xf]
      %v232 = vld [vmem:[%s202 + $0x44] sm:$0xf]
      %v233 = vld [vmem:[%s202 + $0x48] sm:$0xf]
      %v234 = vld [vmem:[%s202 + $0x4c] sm:$0xf]
      %v235 = vld [vmem:[%s202 + $0x50] sm:$0xf]
      %v236 = vld [vmem:[%s202 + $0x54] sm:$0xf]
      %v237 = vld [vmem:[%s202 + $0x58] sm:$0xf]
      %v238 = vld [vmem:[%s202 + $0x5c] sm:$0xf]
      %v239 = vld [vmem:[%s202 + $0x60] sm:$0xf]
      %v240 = vld [vmem:[%s202 + $0x64] sm:$0xf]
      %v241 = vld [vmem:[%s202 + $0x68] sm:$0xf]
      %v242 = vld [vmem:[%s202 + $0x6c] sm:$0xf]
      %v243 = vld [vmem:[%s202 + $0x70] sm:$0xf]
      %v244 = vld [vmem:[%s202 + $0x74] sm:$0xf]
      %v245 = vld [vmem:[%s202 + $0x78] sm:$0xf]
      %v246 = vld [vmem:[%s202 + $0x7c] sm:$0xf]
      %v247 = vunpack.c.l.bf16 %v215
      %v248 = vunpack.c.l.bf16 %v216
      %v249 = vunpack.c.l.bf16 %v217
      %v250 = vunpack.c.l.bf16 %v218
      %v251 = vunpack.c.l.bf16 %v219
      %v252 = vunpack.c.l.bf16 %v220
      %v253 = vunpack.c.l.bf16 %v221
      %v254 = vunpack.c.l.bf16 %v222
      %v255 = vunpack.c.l.bf16 %v223
      %v256 = vunpack.c.l.bf16 %v224
      %v257 = vunpack.c.l.bf16 %v225
      %v258 = vunpack.c.l.bf16 %v226
      %v259 = vunpack.c.l.bf16 %v227
      %v260 = vunpack.c.l.bf16 %v228
      %v261 = vunpack.c.l.bf16 %v229
      %v262 = vunpack.c.l.bf16 %v230
      %v263 = vunpack.c.l.bf16 %v231
      %v264 = vunpack.c.l.bf16 %v232
      %v265 = vunpack.c.l.bf16 %v233
      %v266 = vunpack.c.l.bf16 %v234
      %v267 = vunpack.c.l.bf16 %v235
      %v268 = vunpack.c.l.bf16 %v236
      %v269 = vunpack.c.l.bf16 %v237
      %v270 = vunpack.c.l.bf16 %v238
      %v271 = vunpack.c.l.bf16 %v239
      %v272 = vunpack.c.l.bf16 %v240
      %v273 = vunpack.c.l.bf16 %v241
      %v274 = vunpack.c.l.bf16 %v242
      %v275 = vunpack.c.l.bf16 %v243
      %v276 = vunpack.c.l.bf16 %v244
      %v277 = vunpack.c.l.bf16 %v245
      %v278 = vunpack.c.l.bf16 %v246
      %v279 = vld [vmem:[%s1] sm:$0x1]
      %v280 = vld [vmem:[%s2] sm:$0x1]
      %v282 = vlaneseq
      %v283 = vshrl.u32 %v282, 7
      %v284 = vsub.s32 0, %v283
      %v285 = vrot.slane %v279, %v284
      %v287 = vmul.f32 %v247, %v285
      %v288 = vmul.f32 %v248, %v285
      %v289 = vmul.f32 %v249, %v285
      %v290 = vmul.f32 %v250, %v285
      %v291 = vmul.f32 %v251, %v285
      %v292 = vmul.f32 %v252, %v285
      %v293 = vmul.f32 %v253, %v285
      %v294 = vmul.f32 %v254, %v285
      %v295 = vmul.f32 %v255, %v285
      %v296 = vmul.f32 %v256, %v285
      %v297 = vmul.f32 %v257, %v285
      %v298 = vmul.f32 %v258, %v285
      %v299 = vmul.f32 %v259, %v285
      %v300 = vmul.f32 %v260, %v285
      %v301 = vmul.f32 %v261, %v285
      %v302 = vmul.f32 %v262, %v285
      %v303 = vmul.f32 %v263, %v285
      %v304 = vmul.f32 %v264, %v285
      %v305 = vmul.f32 %v265, %v285
      %v306 = vmul.f32 %v266, %v285
      %v307 = vmul.f32 %v267, %v285
      %v308 = vmul.f32 %v268, %v285
      %v309 = vmul.f32 %v269, %v285
      %v310 = vmul.f32 %v270, %v285
      %v311 = vmul.f32 %v271, %v285
      %v312 = vmul.f32 %v272, %v285
      %v313 = vmul.f32 %v273, %v285
      %v314 = vmul.f32 %v274, %v285
      %v315 = vmul.f32 %v275, %v285
      %v316 = vmul.f32 %v276, %v285
      %v317 = vmul.f32 %v277, %v285
      %v318 = vmul.f32 %v278, %v285
      %v320 = vlaneseq
      %v321 = vshrl.u32 %v320, 7
      %v322 = vsub.s32 0, %v321
      %v323 = vrot.slane %v280, %v322
      %v325 = vadd.f32 %v287, %v323
      %v326 = vadd.f32 %v288, %v323
      %v327 = vadd.f32 %v289, %v323
      %v328 = vadd.f32 %v290, %v323
      %v329 = vadd.f32 %v291, %v323
      %v330 = vadd.f32 %v292, %v323
      %v331 = vadd.f32 %v293, %v323
      %v332 = vadd.f32 %v294, %v323
      %v333 = vadd.f32 %v295, %v323
      %v334 = vadd.f32 %v296, %v323
      %v335 = vadd.f32 %v297, %v323
      %v336 = vadd.f32 %v298, %v323
      %v337 = vadd.f32 %v299, %v323
      %v338 = vadd.f32 %v300, %v323
      %v339 = vadd.f32 %v301, %v323
      %v340 = vadd.f32 %v302, %v323
      %v341 = vadd.f32 %v303, %v323
      %v342 = vadd.f32 %v304, %v323
      %v343 = vadd.f32 %v305, %v323
      %v344 = vadd.f32 %v306, %v323
      %v345 = vadd.f32 %v307, %v323
      %v346 = vadd.f32 %v308, %v323
      %v347 = vadd.f32 %v309, %v323
      %v348 = vadd.f32 %v310, %v323
      %v349 = vadd.f32 %v311, %v323
      %v350 = vadd.f32 %v312, %v323
      %v351 = vadd.f32 %v313, %v323
      %v352 = vadd.f32 %v314, %v323
      %v353 = vadd.f32 %v315, %v323
      %v354 = vadd.f32 %v316, %v323
      %v355 = vadd.f32 %v317, %v323
      %v356 = vadd.f32 %v318, %v323
      %v357 = vmax.f32 %v325, 0.0
      %v358 = vmax.f32 %v326, 0.0
      %v359 = vmax.f32 %v327, 0.0
      %v360 = vmax.f32 %v328, 0.0
      %v361 = vmax.f32 %v329, 0.0
      %v362 = vmax.f32 %v330, 0.0
      %v363 = vmax.f32 %v331, 0.0
      %v364 = vmax.f32 %v332, 0.0
      %v365 = vmax.f32 %v333, 0.0
      %v366 = vmax.f32 %v334, 0.0
      %v367 = vmax.f32 %v335, 0.0
      %v368 = vmax.f32 %v336, 0.0
      %v369 = vmax.f32 %v337, 0.0
      %v370 = vmax.f32 %v338, 0.0
      %v371 = vmax.f32 %v339, 0.0
      %v372 = vmax.f32 %v340, 0.0
      %v373 = vmax.f32 %v341, 0.0
      %v374 = vmax.f32 %v342, 0.0
      %v375 = vmax.f32 %v343, 0.0
      %v376 = vmax.f32 %v344, 0.0
      %v377 = vmax.f32 %v345, 0.0
      %v378 = vmax.f32 %v346, 0.0
      %v379 = vmax.f32 %v347, 0.0
      %v380 = vmax.f32 %v348, 0.0
      %v381 = vmax.f32 %v349, 0.0
      %v382 = vmax.f32 %v350, 0.0
      %v383 = vmax.f32 %v351, 0.0
      %v384 = vmax.f32 %v352, 0.0
      %v385 = vmax.f32 %v353, 0.0
      %v386 = vmax.f32 %v354, 0.0
      %v387 = vmax.f32 %v355, 0.0
      %v388 = vmax.f32 %v356, 0.0
      %v389 = vpack.c.bf16 %v358, %v357
      %v390 = vpack.c.bf16 %v360, %v359
      %v391 = vpack.c.bf16 %v362, %v361
      %v392 = vpack.c.bf16 %v364, %v363
      %v393 = vpack.c.bf16 %v366, %v365
      %v394 = vpack.c.bf16 %v368, %v367
      %v395 = vpack.c.bf16 %v370, %v369
      %v396 = vpack.c.bf16 %v372, %v371
      %v397 = vpack.c.bf16 %v374, %v373
      %v398 = vpack.c.bf16 %v376, %v375
      %v399 = vpack.c.bf16 %v378, %v377
      %v400 = vpack.c.bf16 %v380, %v379
      %v401 = vpack.c.bf16 %v382, %v381
      %v402 = vpack.c.bf16 %v384, %v383
      %v403 = vpack.c.bf16 %v386, %v385
      %v404 = vpack.c.bf16 %v388, %v387
      %v421 = vunpack.c.l.b16 %v389
      %v422 = vunpack.c.h.b16 %v389
      %v423 = vunpack.c.l.b16 %v390
      %v424 = vunpack.c.h.b16 %v390
      %v425 = vunpack.c.l.b16 %v391
      %v426 = vunpack.c.h.b16 %v391
      %v427 = vunpack.c.l.b16 %v392
      %v428 = vunpack.c.h.b16 %v392
      %v429 = vunpack.c.l.b16 %v393
      %v430 = vunpack.c.h.b16 %v393
      %v431 = vunpack.c.l.b16 %v394
      %v432 = vunpack.c.h.b16 %v394
      %v433 = vunpack.c.l.b16 %v395
      %v434 = vunpack.c.h.b16 %v395
      %v435 = vunpack.c.l.b16 %v396
      %v436 = vunpack.c.h.b16 %v396
      %v437 = vunpack.c.l.b16 %v397
      %v438 = vunpack.c.h.b16 %v397
      %v439 = vunpack.c.l.b16 %v398
      %v440 = vunpack.c.h.b16 %v398
      %v441 = vunpack.c.l.b16 %v399
      %v442 = vunpack.c.h.b16 %v399
      %v443 = vunpack.c.l.b16 %v400
      %v444 = vunpack.c.h.b16 %v400
      %v445 = vunpack.c.l.b16 %v401
      %v446 = vunpack.c.h.b16 %v401
      %v447 = vunpack.c.l.b16 %v402
      %v448 = vunpack.c.h.b16 %v402
      %v449 = vunpack.c.l.b16 %v403
      %v450 = vunpack.c.h.b16 %v403
      %v451 = vunpack.c.l.b16 %v404
      %v452 = vunpack.c.h.b16 %v404
      %v453 = vpack.c.b16 %v421, %v421
      %v454 = vpack.c.b16 %v422, %v422
      %v455 = vpack.c.b16 %v423, %v423
      %v456 = vpack.c.b16 %v424, %v424
      %v457 = vpack.c.b16 %v425, %v425
      %v458 = vpack.c.b16 %v426, %v426
      %v459 = vpack.c.b16 %v427, %v427
      %v460 = vpack.c.b16 %v428, %v428
      %v461 = vpack.c.b16 %v429, %v429
      %v462 = vpack.c.b16 %v430, %v430
      %v463 = vpack.c.b16 %v431, %v431
      %v464 = vpack.c.b16 %v432, %v432
      %v465 = vpack.c.b16 %v433, %v433
      %v466 = vpack.c.b16 %v434, %v434
      %v467 = vpack.c.b16 %v435, %v435
      %v468 = vpack.c.b16 %v436, %v436
      %v469 = vpack.c.b16 %v437, %v437
      %v470 = vpack.c.b16 %v438, %v438
      %v471 = vpack.c.b16 %v439, %v439
      %v472 = vpack.c.b16 %v440, %v440
      %v473 = vpack.c.b16 %v441, %v441
      %v474 = vpack.c.b16 %v442, %v442
      %v475 = vpack.c.b16 %v443, %v443
      %v476 = vpack.c.b16 %v444, %v444
      %v477 = vpack.c.b16 %v445, %v445
      %v478 = vpack.c.b16 %v446, %v446
      %v479 = vpack.c.b16 %v447, %v447
      %v480 = vpack.c.b16 %v448, %v448
      %v481 = vpack.c.b16 %v449, %v449
      %v482 = vpack.c.b16 %v450, %v450
      %v483 = vpack.c.b16 %v451, %v451
      %v484 = vpack.c.b16 %v452, %v452
      %vm517 = vcmask 60416
      %518 = vst.msk [vmem:[%s213] sm:$0xf] %vm517, %v453
      %519 = vst.msk [vmem:[%s213 + $0x4] sm:$0xf] %vm517, %v454
      %520 = vst.msk [vmem:[%s213 + $0x8] sm:$0xf] %vm517, %v455
      %521 = vst.msk [vmem:[%s213 + $0xc] sm:$0xf] %vm517, %v456
      %522 = vst.msk [vmem:[%s213 + $0x10] sm:$0xf] %vm517, %v457
      %523 = vst.msk [vmem:[%s213 + $0x14] sm:$0xf] %vm517, %v458
      %524 = vst.msk [vmem:[%s213 + $0x18] sm:$0xf] %vm517, %v459
      %525 = vst.msk [vmem:[%s213 + $0x1c] sm:$0xf] %vm517, %v460
      %526 = vst.msk [vmem:[%s213 + $0x20] sm:$0xf] %vm517, %v461
      %527 = vst.msk [vmem:[%s213 + $0x24] sm:$0xf] %vm517, %v462
      %528 = vst.msk [vmem:[%s213 + $0x28] sm:$0xf] %vm517, %v463
      %529 = vst.msk [vmem:[%s213 + $0x2c] sm:$0xf] %vm517, %v464
      %530 = vst.msk [vmem:[%s213 + $0x30] sm:$0xf] %vm517, %v465
      %531 = vst.msk [vmem:[%s213 + $0x34] sm:$0xf] %vm517, %v466
      %532 = vst.msk [vmem:[%s213 + $0x38] sm:$0xf] %vm517, %v467
      %533 = vst.msk [vmem:[%s213 + $0x3c] sm:$0xf] %vm517, %v468
      %534 = vst.msk [vmem:[%s213 + $0x40] sm:$0xf] %vm517, %v469
      %535 = vst.msk [vmem:[%s213 + $0x44] sm:$0xf] %vm517, %v470
      %536 = vst.msk [vmem:[%s213 + $0x48] sm:$0xf] %vm517, %v471
      %537 = vst.msk [vmem:[%s213 + $0x4c] sm:$0xf] %vm517, %v472
      %538 = vst.msk [vmem:[%s213 + $0x50] sm:$0xf] %vm517, %v473
      %539 = vst.msk [vmem:[%s213 + $0x54] sm:$0xf] %vm517, %v474
      %540 = vst.msk [vmem:[%s213 + $0x58] sm:$0xf] %vm517, %v475
      %541 = vst.msk [vmem:[%s213 + $0x5c] sm:$0xf] %vm517, %v476
      %542 = vst.msk [vmem:[%s213 + $0x60] sm:$0xf] %vm517, %v477
      %543 = vst.msk [vmem:[%s213 + $0x64] sm:$0xf] %vm517, %v478
      %544 = vst.msk [vmem:[%s213 + $0x68] sm:$0xf] %vm517, %v479
      %545 = vst.msk [vmem:[%s213 + $0x6c] sm:$0xf] %vm517, %v480
      %546 = vst.msk [vmem:[%s213 + $0x70] sm:$0xf] %vm517, %v481
      %547 = vst.msk [vmem:[%s213 + $0x74] sm:$0xf] %vm517, %v482
      %548 = vst.msk [vmem:[%s213 + $0x78] sm:$0xf] %vm517, %v483
      %549 = vst.msk [vmem:[%s213 + $0x7c] sm:$0xf] %vm517, %v484
      %s550 = smul.u32 16, %s19
      %p551 = scmp.lt.s32.totalorder %s18, 1
      %s552 = scalar_select %p551, %s18, 1
      %p553 = scmp.lt.s32.totalorder %s550, 15
      %s554 = scalar_select %p553, %s550, 15
      %s555 = smul.addr %s554, 2
      %s556 = smul.addr %s552, 32
      %s557 = sadd.s32 %s555, %s556
      %s558 = smul.addr %s557, 4
      %s559 = scalar_lea.vmem %s3, %s558
      // Predicated region
      $region33: #{double_conv_forward.5} parent=31 // pred_check
        %p560 = pneg %p116
      $region34: #{double_conv_forward.5} parent=31 // pred_check_branch
        %562 = sbr.rel (%p560) target = $region36
      $region35: #{double_conv_forward.5} parent=31 // pred_region
        %s563 = smul.u32 16, %s19
      $region36: #{double_conv_forward.5} parent=31 // pred_fallthru
        _
    $region32: #{double_conv_forward.5} parent=5 // pred_fallthru
      _
    %p564 = scmp.le.s32.totalorder 2, %s9
    // Predicated region
    $region37: #{double_conv_forward.5} parent=5 // pred_check
      %p565 = pneg %p564
    $region38: #{double_conv_forward.5} parent=5 // pred_check_branch
      %567 = sbr.rel (%p565) target = $region40
    $region39: #{double_conv_forward.5} parent=5 // pred_region
      %s568 = ssub.s32 %s9, 2
      // Predicated region
      $region41: #{double_conv_forward.5} parent=39 // pred_check
        %p569 = pneg %p122
      $region42: #{double_conv_forward.5} parent=39 // pred_check_branch
        %571 = sbr.rel (%p569) target = $region44
      $region43: #{double_conv_forward.5} parent=39 // pred_region
        %s572 = smul.u32 16, %s21
        %p573 = scmp.lt.s32.totalorder %s20, 1
        %s574 = scalar_select %p573, %s20, 1
        %p575 = scmp.lt.s32.totalorder %s572, 15
        %s576 = scalar_select %p575, %s572, 15
        %s577 = smul.addr %s576, 2
        %s578 = smul.addr %s574, 32
        %s579 = sadd.s32 %s577, %s578
        %s580 = smul.addr %s579, 4
        %s581 = scalar_lea.vmem %s3, %s580
      $region44: #{double_conv_forward.5} parent=39 // pred_fallthru
        _
    $region40: #{double_conv_forward.5} parent=5 // pred_fallthru
      _
  $region6: #{double_conv_forward.5} parent=0 // loop_footer
    %s13 = sadd.s32 1, %s9
  $region7: #{double_conv_forward.5} parent=0 // loop_footer_branch
    %8 = sbr.rel target = $region3
  $region8: #{double_conv_forward.5} parent=0 // loop_exit
    _

// kernel: double_conv_forward.3
$region0: #{double_conv_forward.3}
  #allocation0 [shape = 'u32[]', space=smem, size = 0x4, offset = 0x4, fixed_abs, tag = 'smem constant byte address 0x4 - core index']
  #allocation1 [shape = 'u32[144,128]{1,0:T(1,128)}', space=vmem, size = 0x12000, scoped, tag = 'internal scratch']
  #allocation2 [shape = 'bf16[18,16,12]{2,1,0:T(16,128)(2,1)}', space=vmem, size = 0x12000, scoped, tag = 'scratch operand']
  %s0 = inlined_call_operand.vmem [shape: bf16[2,16,16,4], index: 0, kind: input, shape index: {}, may-alias: {0,1,2}]
  %s1 = inlined_call_operand.vmem [shape: bf16[2,16,16,4], index: 1, kind: input, shape index: {}, may-alias: {0,1,2}]
  %s2 = inlined_call_operand.vmem [shape: bf16[2,16,16,4], index: 2, kind: input, shape index: {}, may-alias: {0,1,2}]
  %s3 = inlined_call_operand.vmem [shape: f32[1,4], index: 3, kind: input, shape index: {}]
  %s4 = inlined_call_operand.vmem [shape: f32[1,4], index: 4, kind: input, shape index: {}]
  %s5 = inlined_call_operand.vmem [shape: bf16[3,12,8], index: 5, kind: input, shape index: {}]
  %s6 = inlined_call_operand.vmem [shape: f32[1,8], index: 6, kind: input, shape index: {}]
  %s7 = inlined_call_operand.vmem [shape: bf16[2,16,16,8], index: 7, kind: output, shape index: {0}]
  %s8 = inlined_call_operand.vmem [shape: f32[2,1,2,8], index: 8, kind: output, shape index: {1}]
  %9 = xla_tuple %s7, %s8
  %s10 = sld [smem:[#allocation0]]
  $region69: #{double_conv_forward.3} parent=0
    _
  %s12 = ssub.s32 1, %s10
  %s13 = scalar_select 0, %s12, %s10
  loop: start=0, step=1, limit=4
  $region2: #{double_conv_forward.3} parent=0 // loop_pre_header
    _
  $region3: #{double_conv_forward.3} parent=0 // loop_header
    %s15 = sphi 0, %s19
    %p16 = scmp.ge.s32.totalorder %s15, 4
    %s22 = sphi 0, %s34
    %s23 = sphi 0, %s30
    %s24 = sphi 0, %s22
    %s25 = sphi 0, %s23
    %s26 = sphi 0, %s24
    %s27 = sphi 0, %s25
    %s39 = sphi 0, %s41
    %s42 = sphi 0, %s39
    %s43 = sphi 0, %s42
    %s59 = sphi 0, %s43
    %s75 = sphi 0, %s77
    %s78 = sphi 0, %s75
    %s79 = sphi 0, %s78
    %s95 = sphi 0, %s79
    %s111 = sphi 0, %s113
    %s114 = sphi 0, %s111
    %s115 = sphi 0, %s114
    %s131 = sphi 0, %s115
    %s135 = sphi 0, %s135
    %s137 = sphi 0, %s135
    %s138 = sphi 0, %s137
    %s152 = sphi 0, %s138
    %s156 = sphi 0, %s156
    %s158 = sphi 0, %s156
    %s159 = sphi 0, %s158
    %s173 = sphi 0, %s159
    %s177 = sphi 0, %s177
    %s179 = sphi 0, %s177
    %s180 = sphi 0, %s179
    %s194 = sphi 0, %s180
    %s198 = sphi 0, %s198
    %s200 = sphi 0, %s198
    %s201 = sphi 0, %s200
    %s215 = sphi 0, %s201
    %s223 = sphi 0, %s225
    %s226 = sphi 0, %s223
    %s227 = sphi 0, %s226
    %s243 = sphi 0, %s227
    %s251 = sphi 0, %s253
    %s254 = sphi 0, %s251
    %s255 = sphi 0, %s254
    %s271 = sphi 0, %s255
  $region4: #{double_conv_forward.3} parent=0 // loop_header_branch
    %18 = sbr.rel (%p16) target = $region8
  $region5: #{double_conv_forward.3} parent=0 // loop_body
    %s20 = ssub.s32 %s15, 1
    %s21 = ssub.s32 %s15, 2
    %s28 = sadd.s32 1, %s23
    %p29 = scmp.ge.s32.totalorder %s28, 1
    %s30 = scalar_select %p29, 0, %s28
    %s31 = sadd.s32 1, %s22
    %s32 = scalar_select %p29, %s31, %s22
    %p33 = scmp.ge.s32.totalorder %s32, 2
    %s34 = scalar_select %p33, 0, %s32
    %s35 = ssub.s32 %s22, %s34
    %s36 = ssub.s32 %s23, %s30
    %s37 = sor.u32 %s35, %s36
    %p38 = scmp.eq.s32.totalorder %s37, 0
    %s40 = sadd.s32 %s39, 1
    %s41 = scalar_select %p38, %s39, %s40
    %p44 = pneg %p38
    %p45 = scmp.eq.s32.totalorder %s15, 1
    %p46 = por %p44, %p45
    %p47 = scmp.ne.s32.totalorder %s39, %s42
    %p48 = scmp.eq.s32.totalorder %s15, 0
    %p49 = por %p47, %p48
    %p50 = scmp.ne.s32.totalorder %s39, %s42
    %p51 = scmp.eq.s32.totalorder %s20, 1
    %p52 = por %p50, %p51
    %p53 = scmp.ne.s32.totalorder %s42, %s43
    %p54 = scmp.eq.s32.totalorder %s20, 0
    %p55 = por %p53, %p54
    %p56 = scmp.ne.s32.totalorder %s42, %s43
    %p57 = scmp.eq.s32.totalorder %s21, 1
    %p58 = por %p56, %p57
    %p60 = scmp.ne.s32.totalorder %s43, %s59
    %p61 = scmp.eq.s32.totalorder %s21, 0
    %p62 = por %p60, %p61
    %s63 = smul.u32 %s23, 16
    %s64 = ssub.s32 %s63, 1
    %p65 = scmp.gt.s32.totalorder %s64, 0
    %s66 = scalar_select %p65, %s64, 0
    %s67 = smul.u32 %s30, 16
    %s68 = ssub.s32 %s67, 1
    %p69 = scmp.gt.s32.totalorder %s68, 0
    %s70 = scalar_select %p69, %s68, 0
    %s71 = ssub.s32 %s22, %s34
    %s72 = ssub.s32 %s66, %s70
    %s73 = sor.u32 %s71, %s72
    %p74 = scmp.eq.s32.totalorder %s73, 0
    %s76 = sadd.s32 %s75, 1
    %s77 = scalar_select %p74, %s75, %s76
    %p80 = pneg %p74
    %p81 = scmp.eq.s32.totalorder %s15, 1
    %p82 = por %p80, %p81
    %p83 = scmp.ne.s32.totalorder %s75, %s78
    %p84 = scmp.eq.s32.totalorder %s15, 0
    %p85 = por %p83, %p84
    %p86 = scmp.ne.s32.totalorder %s75, %s78
    %p87 = scmp.eq.s32.totalorder %s20, 1
    %p88 = por %p86, %p87
    %p89 = scmp.ne.s32.totalorder %s78, %s79
    %p90 = scmp.eq.s32.totalorder %s20, 0
    %p91 = por %p89, %p90
    %p92 = scmp.ne.s32.totalorder %s78, %s79
    %p93 = scmp.eq.s32.totalorder %s21, 1
    %p94 = por %p92, %p93
    %p96 = scmp.ne.s32.totalorder %s79, %s95
    %p97 = scmp.eq.s32.totalorder %s21, 0
    %p98 = por %p96, %p97
    %s99 = smul.u32 %s23, 16
    %s100 = sadd.s32 %s99, 16
    %p101 = scmp.lt.s32.totalorder %s100, 15
    %s102 = scalar_select %p101, %s100, 15
    %s103 = smul.u32 %s30, 16
    %s104 = sadd.s32 %s103, 16
    %p105 = scmp.lt.s32.totalorder %s104, 15
    %s106 = scalar_select %p105, %s104, 15
    %s107 = ssub.s32 %s22, %s34
    %s108 = ssub.s32 %s102, %s106
    %s109 = sor.u32 %s107, %s108
    %p110 = scmp.eq.s32.totalorder %s109, 0
    %s112 = sadd.s32 %s111, 1
    %s113 = scalar_select %p110, %s111, %s112
    %p116 = pneg %p110
    %p117 = scmp.eq.s32.totalorder %s15, 1
    %p118 = por %p116, %p117
    %p119 = scmp.ne.s32.totalorder %s111, %s114
    %p120 = scmp.eq.s32.totalorder %s15, 0
    %p121 = por %p119, %p120
    %p122 = scmp.ne.s32.totalorder %s111, %s114
    %p123 = scmp.eq.s32.totalorder %s20, 1
    %p124 = por %p122, %p123
    %p125 = scmp.ne.s32.totalorder %s114, %s115
    %p126 = scmp.eq.s32.totalorder %s20, 0
    %p127 = por %p125, %p126
    %p128 = scmp.ne.s32.totalorder %s114, %s115
    %p129 = scmp.eq.s32.totalorder %s21, 1
    %p130 = por %p128, %p129
    %p132 = scmp.ne.s32.totalorder %s115, %s131
    %p133 = scmp.eq.s32.totalorder %s21, 0
    %p134 = por %p132, %p133
    %s136 = sadd.s32 %s135, 1
    %p139 = scmp.eq.s32.totalorder %s15, 1
    %p140 = scmp.ne.s32.totalorder %s135, %s137
    %p141 = scmp.eq.s32.totalorder %s15, 0
    %p142 = por %p140, %p141
    %p143 = scmp.ne.s32.totalorder %s135, %s137
    %p144 = scmp.eq.s32.totalorder %s20, 1
    %p145 = por %p143, %p144
    %p146 = scmp.ne.s32.totalorder %s137, %s138
    %p147 = scmp.eq.s32.totalorder %s20, 0
    %p148 = por %p146, %p147
    %p149 = scmp.ne.s32.totalorder %s137, %s138
    %p150 = scmp.eq.s32.totalorder %s21, 1
    %p151 = por %p149, %p150
    %p153 = scmp.ne.s32.totalorder %s138, %s152
    %p154 = scmp.eq.s32.totalorder %s21, 0
    %p155 = por %p153, %p154
    %s157 = sadd.s32 %s156, 1
    %p160 = scmp.eq.s32.totalorder %s15, 1
    %p161 = scmp.ne.s32.totalorder %s156, %s158
    %p162 = scmp.eq.s32.totalorder %s15, 0
    %p163 = por %p161, %p162
    %p164 = scmp.ne.s32.totalorder %s156, %s158
    %p165 = scmp.eq.s32.totalorder %s20, 1
    %p166 = por %p164, %p165
    %p167 = scmp.ne.s32.totalorder %s158, %s159
    %p168 = scmp.eq.s32.totalorder %s20, 0
    %p169 = por %p167, %p168
    %p170 = scmp.ne.s32.totalorder %s158, %s159
    %p171 = scmp.eq.s32.totalorder %s21, 1
    %p172 = por %p170, %p171
    %p174 = scmp.ne.s32.totalorder %s159, %s173
    %p175 = scmp.eq.s32.totalorder %s21, 0
    %p176 = por %p174, %p175
    %s178 = sadd.s32 %s177, 1
    %p181 = scmp.eq.s32.totalorder %s15, 1
    %p182 = scmp.ne.s32.totalorder %s177, %s179
    %p183 = scmp.eq.s32.totalorder %s15, 0
    %p184 = por %p182, %p183
    %p185 = scmp.ne.s32.totalorder %s177, %s179
    %p186 = scmp.eq.s32.totalorder %s20, 1
    %p187 = por %p185, %p186
    %p188 = scmp.ne.s32.totalorder %s179, %s180
    %p189 = scmp.eq.s32.totalorder %s20, 0
    %p190 = por %p188, %p189
    %p191 = scmp.ne.s32.totalorder %s179, %s180
    %p192 = scmp.eq.s32.totalorder %s21, 1
    %p193 = por %p191, %p192
    %p195 = scmp.ne.s32.totalorder %s180, %s194
    %p196 = scmp.eq.s32.totalorder %s21, 0
    %p197 = por %p195, %p196
    %s199 = sadd.s32 %s198, 1
    %p202 = scmp.eq.s32.totalorder %s15, 1
    %p203 = scmp.ne.s32.totalorder %s198, %s200
    %p204 = scmp.eq.s32.totalorder %s15, 0
    %p205 = por %p203, %p204
    %p206 = scmp.ne.s32.totalorder %s198, %s200
    %p207 = scmp.eq.s32.totalorder %s20, 1
    %p208 = por %p206, %p207
    %p209 = scmp.ne.s32.totalorder %s200, %s201
    %p210 = scmp.eq.s32.totalorder %s20, 0
    %p211 = por %p209, %p210
    %p212 = scmp.ne.s32.totalorder %s200, %s201
    %p213 = scmp.eq.s32.totalorder %s21, 1
    %p214 = por %p212, %p213
    %p216 = scmp.ne.s32.totalorder %s201, %s215
    %p217 = scmp.eq.s32.totalorder %s21, 0
    %p218 = por %p216, %p217
    %s219 = ssub.s32 %s22, %s34
    %s220 = ssub.s32 %s23, %s30
    %s221 = sor.u32 %s219, %s220
    %p222 = scmp.eq.s32.totalorder %s221, 0
    %s224 = sadd.s32 %s223, 1
    %s225 = scalar_select %p222, %s223, %s224
    %p228 = pneg %p222
    %p229 = scmp.eq.s32.totalorder %s15, 1
    %p230 = por %p228, %p229
    %p231 = scmp.ne.s32.totalorder %s223, %s226
    %p232 = scmp.eq.s32.totalorder %s15, 0
    %p233 = por %p231, %p232
    %p234 = scmp.ne.s32.totalorder %s223, %s226
    %p235 = scmp.eq.s32.totalorder %s20, 1
    %p236 = por %p234, %p235
    %p237 = scmp.ne.s32.totalorder %s226, %s227
    %p238 = scmp.eq.s32.totalorder %s20, 0
    %p239 = por %p237, %p238
    %p240 = scmp.ne.s32.totalorder %s226, %s227
    %p241 = scmp.eq.s32.totalorder %s21, 1
    %p242 = por %p240, %p241
    %p244 = scmp.ne.s32.totalorder %s227, %s243
    %p245 = scmp.eq.s32.totalorder %s21, 0
    %p246 = por %p244, %p245
    %s247 = ssub.s32 %s22, %s34
    %s248 = ssub.s32 %s23, %s30
    %s249 = sor.u32 %s247, %s248
    %p250 = scmp.eq.s32.totalorder %s249, 0
    %s252 = sadd.s32 %s251, 1
    %s253 = scalar_select %p250, %s251, %s252
    %p256 = pneg %p250
    %p257 = scmp.eq.s32.totalorder %s15, 1
    %p258 = por %p256, %p257
    %p259 = scmp.ne.s32.totalorder %s251, %s254
    %p260 = scmp.eq.s32.totalorder %s15, 0
    %p261 = por %p259, %p260
    %p262 = scmp.ne.s32.totalorder %s251, %s254
    %p263 = scmp.eq.s32.totalorder %s20, 1
    %p264 = por %p262, %p263
    %p265 = scmp.ne.s32.totalorder %s254, %s255
    %p266 = scmp.eq.s32.totalorder %s20, 0
    %p267 = por %p265, %p266
    %p268 = scmp.ne.s32.totalorder %s254, %s255
    %p269 = scmp.eq.s32.totalorder %s21, 1
    %p270 = por %p268, %p269
    %p272 = scmp.ne.s32.totalorder %s255, %s271
    %p273 = scmp.eq.s32.totalorder %s21, 0
    %p274 = por %p272, %p273
    %p275 = scmp.le.s32.totalorder 1, %s15
    %p276 = scmp.lt.s32.totalorder %s15, 3
    %p277 = pnand %p275, %p276
    %p278 = pneg %p277
    // Predicated region
    $region9: #{double_conv_forward.3} parent=5 // pred_check
      _
    $region10: #{double_conv_forward.3} parent=5 // pred_check_branch
      %280 = sbr.rel (%p277) target = $region12
    $region11: #{double_conv_forward.3} parent=5 // pred_region
      %s281 = ssub.s32 %s15, 1
      // Predicated region
      $region13: #{double_conv_forward.3} parent=11 // pred_check
        %p282 = pneg %p148
      $region14: #{double_conv_forward.3} parent=11 // pred_check_branch
        %284 = sbr.rel (%p282) target = $region16
      $region15: #{double_conv_forward.3} parent=11 // pred_region
        _
      $region16: #{double_conv_forward.3} parent=11 // pred_fallthru
        _
      // Predicated region
      $region17: #{double_conv_forward.3} parent=11 // pred_check
        %p285 = pneg %p169
      $region18: #{double_conv_forward.3} parent=11 // pred_check_branch
        %287 = sbr.rel (%p285) target = $region20
      $region19: #{double_conv_forward.3} parent=11 // pred_region
        _
      $region20: #{double_conv_forward.3} parent=11 // pred_fallthru
        _
      // Predicated region
      $region21: #{double_conv_forward.3} parent=11 // pred_check
        %p288 = pneg %p190
      $region22: #{double_conv_forward.3} parent=11 // pred_check_branch
        %290 = sbr.rel (%p288) target = $region24
      $region23: #{double_conv_forward.3} parent=11 // pred_region
        _
      $region24: #{double_conv_forward.3} parent=11 // pred_fallthru
        _
      // Predicated region
      $region25: #{double_conv_forward.3} parent=11 // pred_check
        %p291 = pneg %p211
      $region26: #{double_conv_forward.3} parent=11 // pred_check_branch
        %293 = sbr.rel (%p291) target = $region28
      $region27: #{double_conv_forward.3} parent=11 // pred_region
        _
      $region28: #{double_conv_forward.3} parent=11 // pred_fallthru
        _
    $region12: #{double_conv_forward.3} parent=5 // pred_fallthru
      _
    %p294 = scmp.lt.s32.totalorder %s15, 2
    // Predicated region
    $region29: #{double_conv_forward.3} parent=5 // pred_check
      %p295 = pneg %p294
    $region30: #{double_conv_forward.3} parent=5 // pred_check_branch
      %297 = sbr.rel (%p295) target = $region32
    $region31: #{double_conv_forward.3} parent=5 // pred_region
      // Predicated region
      $region33: #{double_conv_forward.3} parent=31 // pred_check
        %p298 = pneg %p49
      $region34: #{double_conv_forward.3} parent=31 // pred_check_branch
        %300 = sbr.rel (%p298) target = $region36
      $region35: #{double_conv_forward.3} parent=31 // pred_region
        %s301 = smul.u32 16, %s23
        %p302 = scmp.lt.s32.totalorder %s22, 1
        %s303 = scalar_select %p302, %s22, 1
        %p304 = scmp.lt.s32.totalorder %s301, 15
        %s305 = scalar_select %p304, %s301, 15
        %s306 = smul.addr %s305, 2
        %s307 = smul.addr %s303, 32
        %s308 = sadd.s32 %s306, %s307
        %s309 = smul.addr %s308, 4
        %s310 = scalar_lea.vmem %s0, %s309
        %s311 = smul.u32 16, %s23
      $region36: #{double_conv_forward.3} parent=31 // pred_fallthru
        _
      // Predicated region
      $region37: #{double_conv_forward.3} parent=31 // pred_check
        %p312 = pneg %p85
      $region38: #{double_conv_forward.3} parent=31 // pred_check_branch
        %314 = sbr.rel (%p312) target = $region40
      $region39: #{double_conv_forward.3} parent=31 // pred_region
        %s315 = smul.u32 %s23, 16
        %s316 = ssub.s32 %s315, 1
        %p317 = scmp.gt.s32.totalorder %s316, 0
        %s318 = scalar_select %p317, %s316, 0
        %p319 = scmp.lt.s32.totalorder %s22, 1
        %s320 = scalar_select %p319, %s22, 1
        %p321 = scmp.lt.s32.totalorder %s318, 15
        %s322 = scalar_select %p321, %s318, 15
        %s323 = smul.addr %s322, 2
        %s324 = smul.addr %s320, 32
        %s325 = sadd.s32 %s323, %s324
        %s326 = smul.addr %s325, 4
        %s327 = scalar_lea.vmem %s1, %s326
        %s328 = smul.u32 %s23, 16
        %s329 = ssub.s32 %s328, 1
        %p330 = scmp.gt.s32.totalorder %s329, 0
        %s331 = scalar_select %p330, %s329, 0
      $region40: #{double_conv_forward.3} parent=31 // pred_fallthru
        _
      // Predicated region
      $region41: #{double_conv_forward.3} parent=31 // pred_check
        %p332 = pneg %p121
      $region42: #{double_conv_forward.3} parent=31 // pred_check_branch
        %334 = sbr.rel (%p332) target = $region44
      $region43: #{double_conv_forward.3} parent=31 // pred_region
        %s335 = smul.u32 %s23, 16
        %s336 = sadd.s32 %s335, 16
        %p337 = scmp.lt.s32.totalorder %s336, 15
        %s338 = scalar_select %p337, %s336, 15
        %p339 = scmp.lt.s32.totalorder %s22, 1
        %s340 = scalar_select %p339, %s22, 1
        %p341 = scmp.lt.s32.totalorder %s338, 15
        %s342 = scalar_select %p341, %s338, 15
        %s343 = smul.addr %s342, 2
        %s344 = smul.addr %s340, 32
        %s345 = sadd.s32 %s343, %s344
        %s346 = smul.addr %s345, 4
        %s347 = scalar_lea.vmem %s2, %s346
        %s348 = smul.u32 %s23, 16
        %s349 = sadd.s32 %s348, 16
        %p350 = scmp.lt.s32.totalorder %s349, 15
        %s351 = scalar_select %p350, %s349, 15
      $region44: #{double_conv_forward.3} parent=31 // pred_fallthru
        _
    $region32: #{double_conv_forward.3} parent=5 // pred_fallthru
      _
    %p352 = scmp.le.s32.totalorder 1, %s15
    %p353 = scmp.lt.s32.totalorder %s15, 3
    %p354 = pnand %p352, %p353
    %p355 = pneg %p354
    // Predicated region
    $region45: #{double_conv_forward.3} parent=5 // pred_check
      _
    $region46: #{double_conv_forward.3} parent=5 // pred_check_branch
      %357 = sbr.rel (%p354) target = $region48
    $region47: #{double_conv_forward.3} parent=5 // pred_region
      %s358 = ssub.s32 %s15, 1
      %s359 = smul.u32 16, %s25
      %p360 = scmp.lt.s32.totalorder %s24, 1
      %s361 = scalar_select %p360, %s24, 1
      %p362 = scmp.lt.s32.totalorder %s359, 15
      %s363 = scalar_select %p362, %s359, 15
      %s364 = smul.addr %s363, 2
      %s365 = smul.addr %s361, 32
      %s366 = sadd.s32 %s364, %s365
      %s367 = smul.addr %s366, 4
      %s368 = scalar_lea.vmem %s0, %s367
      %p369 = pneg %p55
      %p370 = pneg %p52
      %s371 = smul.u32 %s25, 16
      %s372 = ssub.s32 %s371, 1
      %p373 = scmp.gt.s32.totalorder %s372, 0
      %s374 = scalar_select %p373, %s372, 0
      %p375 = scmp.lt.s32.totalorder %s24, 1
      %s376 = scalar_select %p375, %s24, 1
      %p377 = scmp.lt.s32.totalorder %s374, 15
      %s378 = scalar_select %p377, %s374, 15
      %s379 = smul.addr %s378, 2
      %s380 = smul.addr %s376, 32
      %s381 = sadd.s32 %s379, %s380
      %s382 = smul.addr %s381, 4
      %s383 = scalar_lea.vmem %s1, %s382
      %p384 = pneg %p91
      %p385 = pneg %p88
      %s386 = smul.u32 %s25, 16
      %s387 = sadd.s32 %s386, 16
      %p388 = scmp.lt.s32.totalorder %s387, 15
      %s389 = scalar_select %p388, %s387, 15
      %p390 = scmp.lt.s32.totalorder %s24, 1
      %s391 = scalar_select %p390, %s24, 1
      %p392 = scmp.lt.s32.totalorder %s389, 15
      %s393 = scalar_select %p392, %s389, 15
      %s394 = smul.addr %s393, 2
      %s395 = smul.addr %s391, 32
      %s396 = sadd.s32 %s394, %s395
      %s397 = smul.addr %s396, 4
      %s398 = scalar_lea.vmem %s2, %s397
      %p399 = pneg %p127
      %p400 = pneg %p124
      %p401 = pneg %p148
      %p402 = pneg %p145
      %p403 = pneg %p169
      %p404 = pneg %p166
      %p405 = pneg %p190
      %p406 = pneg %p187
      %p407 = pneg %p211
      %p408 = pneg %p208
      %p409 = pneg %p239
      %p410 = pneg %p236
      %s411 = smul.u32 16, %s25
      %p412 = scmp.lt.s32.totalorder %s24, 1
      %s413 = scalar_select %p412, %s24, 1
      %p414 = scmp.lt.s32.totalorder %s411, 15
      %s415 = scalar_select %p414, %s411, 15
      %s416 = smul.addr %s415, 2
      %s417 = smul.addr %s413, 32
      %s418 = sadd.s32 %s416, %s417
      %s419 = smul.addr %s418, 4
      %s420 = scalar_lea.vmem %s7, %s419
      %p421 = pneg %p267
      %p422 = pneg %p264
      %p423 = scmp.lt.s32.totalorder %s24, 1
      %s424 = scalar_select %p423, %s24, 1
      %p425 = scmp.lt.s32.totalorder %s25, 0
      %s426 = scalar_select %p425, %s25, 0
      %s427 = sadd.s32 %s426, %s424
      %s428 = smul.addr %s427, 2
      %s429 = scalar_lea.vmem %s8, %s428
      %s430 = smul.u32 16, %s25
      %p431 = scmp.lt.s32.totalorder %s24, 1
      %s432 = scalar_select %p431, %s24, 1
      %p433 = scmp.lt.s32.totalorder %s430, 15
      %s434 = scalar_select %p433, %s430, 15
      %s435 = smul.addr %s434, 2
      %s436 = smul.addr %s432, 32
      %s437 = sadd.s32 %s435, %s436
      %s438 = smul.addr %s437, 4
      %s439 = scalar_lea.vmem %s0, %s438
      %s440 = smul.u32 16, %s25
      %s441 = smul.u32 %s25, 16
      %s442 = ssub.s32 %s441, 1
      %p443 = scmp.gt.s32.totalorder %s442, 0
      %s444 = scalar_select %p443, %s442, 0
      %p445 = scmp.lt.s32.totalorder %s24, 1
      %s446 = scalar_select %p445, %s24, 1
      %p447 = scmp.lt.s32.totalorder %s444, 15
      %s448 = scalar_select %p447, %s444, 15
      %s449 = smul.addr %s448, 2
      %s450 = smul.addr %s446, 32
      %s451 = sadd.s32 %s449, %s450
      %s452 = smul.addr %s451, 4
      %s453 = scalar_lea.vmem %s1, %s452
      %s454 = smul.u32 %s25, 16
      %s455 = ssub.s32 %s454, 1
      %p456 = scmp.gt.s32.totalorder %s455, 0
      %s457 = scalar_select %p456, %s455, 0
      %s458 = smul.u32 %s25, 16
      %s459 = sadd.s32 %s458, 16
      %p460 = scmp.lt.s32.totalorder %s459, 15
      %s461 = scalar_select %p460, %s459, 15
      %p462 = scmp.lt.s32.totalorder %s24, 1
      %s463 = scalar_select %p462, %s24, 1
      %p464 = scmp.lt.s32.totalorder %s461, 15
      %s465 = scalar_select %p464, %s461, 15
      %s466 = smul.addr %s465, 2
      %s467 = smul.addr %s463, 32
      %s468 = sadd.s32 %s466, %s467
      %s469 = smul.addr %s468, 4
      %s470 = scalar_lea.vmem %s2, %s469
      %s471 = smul.u32 %s25, 16
      %s472 = sadd.s32 %s471, 16
      %p473 = scmp.lt.s32.totalorder %s472, 15
      %s474 = scalar_select %p473, %s472, 15
      %s475 = smul.u32 16, %s25
      %p476 = scmp.lt.s32.totalorder %s24, 1
      %s477 = scalar_select %p476, %s24, 1
      %p478 = scmp.lt.s32.totalorder %s475, 15
      %s479 = scalar_select %p478, %s475, 15
      %s480 = smul.addr %s479, 2
      %s481 = smul.addr %s477, 32
      %s482 = sadd.s32 %s480, %s481
      %s483 = smul.addr %s482, 4
      %s484 = scalar_lea.vmem %s7, %s483
      %s485 = smul.u32 16, %s25
      %p486 = scmp.lt.s32.totalorder %s24, 1
      %s487 = scalar_select %p486, %s24, 1
      %p488 = scmp.lt.s32.totalorder %s25, 0
      %s489 = scalar_select %p488, %s25, 0
      %s490 = sadd.s32 %s489, %s487
      %s491 = smul.addr %s490, 2
      %s492 = scalar_lea.vmem %s8, %s491
      %v494 = vld [vmem:[%s439] sm:$0xf]
      %v495 = vld [vmem:[%s439 + $0x4] sm:$0xf]
      %v496 = vld [vmem:[%s439 + $0x8] sm:$0xf]
      %v497 = vld [vmem:[%s439 + $0xc] sm:$0xf]
      %v498 = vld [vmem:[%s439 + $0x10] sm:$0xf]
      %v499 = vld [vmem:[%s439 + $0x14] sm:$0xf]
      %v500 = vld [vmem:[%s439 + $0x18] sm:$0xf]
      %v501 = vld [vmem:[%s439 + $0x1c] sm:$0xf]
      %v502 = vld [vmem:[%s439 + $0x20] sm:$0xf]
      %v503 = vld [vmem:[%s439 + $0x24] sm:$0xf]
      %v504 = vld [vmem:[%s439 + $0x28] sm:$0xf]
      %v505 = vld [vmem:[%s439 + $0x2c] sm:$0xf]
      %v506 = vld [vmem:[%s439 + $0x30] sm:$0xf]
      %v507 = vld [vmem:[%s439 + $0x34] sm:$0xf]
      %v508 = vld [vmem:[%s439 + $0x38] sm:$0xf]
      %v509 = vld [vmem:[%s439 + $0x3c] sm:$0xf]
      %v510 = vld [vmem:[%s439 + $0x40] sm:$0xf]
      %v511 = vld [vmem:[%s439 + $0x44] sm:$0xf]
      %v512 = vld [vmem:[%s439 + $0x48] sm:$0xf]
      %v513 = vld [vmem:[%s439 + $0x4c] sm:$0xf]
      %v514 = vld [vmem:[%s439 + $0x50] sm:$0xf]
      %v515 = vld [vmem:[%s439 + $0x54] sm:$0xf]
      %v516 = vld [vmem:[%s439 + $0x58] sm:$0xf]
      %v517 = vld [vmem:[%s439 + $0x5c] sm:$0xf]
      %v518 = vld [vmem:[%s439 + $0x60] sm:$0xf]
      %v519 = vld [vmem:[%s439 + $0x64] sm:$0xf]
      %v520 = vld [vmem:[%s439 + $0x68] sm:$0xf]
      %v521 = vld [vmem:[%s439 + $0x6c] sm:$0xf]
      %v522 = vld [vmem:[%s439 + $0x70] sm:$0xf]
      %v523 = vld [vmem:[%s439 + $0x74] sm:$0xf]
      %v524 = vld [vmem:[%s439 + $0x78] sm:$0xf]
      %v525 = vld [vmem:[%s439 + $0x7c] sm:$0xf]
      %v526 = vld [vmem:[%s453] sm:$0xf]
      %v527 = vld [vmem:[%s453 + $0x4] sm:$0xf]
      %p528 = scmp.ne.s32.totalorder %s25, 0
      %s529 = scalar_select %p528, 1, 0
      %s530 = scvt.s32.f32 %s529
      %p532 = scmp.ne.f32.partialorder %s530, %s530
      %s533 = sshrl.u32 %s530, 16
      %s534 = sand.u32 %s533, 1
      %s535 = sadd.s32 32767, %s534
      %s536 = sadd.s32 %s530, %s535
      %s537 = sand.u32 %s536, 4294901760
      %s538 = scalar_select %p532, 2143289344, %s537
      %s540 = sshrl.u32 %s538, 16
      %s541 = sshll.u32 %s540, 16
      %s542 = sor.u32 %s540, %s541
      %v543 = vstv %s542
      %v545 = vmul.bf16 %v526, %v543
      %v546 = vmul.bf16 %v527, %v543
      %v547 = vld [vmem:[%s470] sm:$0xf]
      %v548 = vld [vmem:[%s470 + $0x4] sm:$0xf]
      %v549 = vmul.bf16 %v547, %v543
      %v550 = vmul.bf16 %v548, %v543
      %vm551 = vcmask 24576
      %vm552 = vsmask.f32 256
      %vm553 = vmand %vm551, %vm552
      %v554 = vld [vmem:[#allocation2] sm:$0x1]
      %v555 = vsel %vm553, 0, %v554
      %556 = vst [vmem:[#allocation2] sm:$0x1] %v555
      %v557 = vld [vmem:[#allocation2 + $0x8] sm:$0x1]
      %v558 = vsel %vm553, 0, %v557
      %559 = vst [vmem:[#allocation2 + $0x8] sm:$0x1] %v558
      %v560 = vld [vmem:[#allocation2 + $0x10] sm:$0x1]
      %v561 = vsel %vm553, 0, %v560
      %562 = vst [vmem:[#allocation2 + $0x10] sm:$0x1] %v561
      %v563 = vld [vmem:[#allocation2 + $0x18] sm:$0x1]
      %v564 = vsel %vm553, 0, %v563
      %565 = vst [vmem:[#allocation2 + $0x18] sm:$0x1] %v564
      %v566 = vld [vmem:[#allocation2 + $0x20] sm:$0x1]
      %v567 = vsel %vm553, 0, %v566
      %568 = vst [vmem:[#allocation2 + $0x20] sm:$0x1] %v567
      %v569 = vld [vmem:[#allocation2 + $0x28] sm:$0x1]
      %v570 = vsel %vm553, 0, %v569
      %571 = vst [vmem:[#allocation2 + $0x28] sm:$0x1] %v570
      %v572 = vld [vmem:[#allocation2 + $0x30] sm:$0x1]
      %v573 = vsel %vm553, 0, %v572
      %574 = vst [vmem:[#allocation2 + $0x30] sm:$0x1] %v573
      %v575 = vld [vmem:[#allocation2 + $0x38] sm:$0x1]
      %v576 = vsel %vm553, 0, %v575
      %577 = vst [vmem:[#allocation2 + $0x38] sm:$0x1] %v576
      %v578 = vld [vmem:[#allocation2 + $0x40] sm:$0x1]
      %v579 = vsel %vm553, 0, %v578
      %580 = vst [vmem:[#allocation2 + $0x40] sm:$0x1] %v579
      %v581 = vld [vmem:[#allocation2 + $0x48] sm:$0x1]
      %v582 = vsel %vm553, 0, %v581
      %583 = vst [vmem:[#allocation2 + $0x48] sm:$0x1] %v582
      %v584 = vld [vmem:[#allocation2 + $0x50] sm:$0x1]
      %v585 = vsel %vm553, 0, %v584
      %586 = vst [vmem:[#allocation2 + $0x50] sm:$0x1] %v585
      %v587 = vld [vmem:[#allocation2 + $0x58] sm:$0x1]
      %v588 = vsel %vm553, 0, %v587
      %589 = vst [vmem:[#allocation2 + $0x58] sm:$0x1] %v588
      %v590 = vld [vmem:[#allocation2 + $0x60] sm:$0x1]
      %v591 = vsel %vm553, 0, %v590
      %592 = vst [vmem:[#allocation2 + $0x60] sm:$0x1] %v591
      %v593 = vld [vmem:[#allocation2 + $0x68] sm:$0x1]
      %v594 = vsel %vm553, 0, %v593
      %595 = vst [vmem:[#allocation2 + $0x68] sm:$0x1] %v594
      %v596 = vld [vmem:[#allocation2 + $0x70] sm:$0x1]
      %v597 = vsel %vm553, 0, %v596
      %598 = vst [vmem:[#allocation2 + $0x70] sm:$0x1] %v597
      %v599 = vld [vmem:[#allocation2 + $0x78] sm:$0x1]
      %v600 = vsel %vm553, 0, %v599
      %601 = vst [vmem:[#allocation2 + $0x78] sm:$0x1] %v600
      %v602 = vld [vmem:[#allocation2 + $0x80] sm:$0x1]
      %v603 = vsel %vm553, 0, %v602
      %604 = vst [vmem:[#allocation2 + $0x80] sm:$0x1] %v603
      %v605 = vld [vmem:[#allocation2 + $0x88] sm:$0x1]
      %v606 = vsel %vm553, 0, %v605
      %607 = vst [vmem:[#allocation2 + $0x88] sm:$0x1] %v606
      %v644 = vunpack.c.l.b16 %v545
      %v645 = vunpack.c.l.b16 %v546
      %v646 = vunpack.c.l.b16 %v494
      %v647 = vunpack.c.l.b16 %v495
      %v648 = vunpack.c.l.b16 %v496
      %v649 = vunpack.c.l.b16 %v497
      %v650 = vunpack.c.l.b16 %v498
      %v651 = vunpack.c.l.b16 %v499
      %v652 = vunpack.c.l.b16 %v500
      %v653 = vunpack.c.l.b16 %v501
      %v654 = vunpack.c.l.b16 %v502
      %v655 = vunpack.c.l.b16 %v503
      %v656 = vunpack.c.l.b16 %v504
      %v657 = vunpack.c.l.b16 %v505
      %v658 = vunpack.c.l.b16 %v506
      %v659 = vunpack.c.l.b16 %v507
      %v660 = vunpack.c.l.b16 %v508
      %v661 = vunpack.c.l.b16 %v509
      %v662 = vunpack.c.l.b16 %v510
      %v663 = vunpack.c.l.b16 %v511
      %v664 = vunpack.c.l.b16 %v512
      %v665 = vunpack.c.l.b16 %v513
      %v666 = vunpack.c.l.b16 %v514
      %v667 = vunpack.c.l.b16 %v515
      %v668 = vunpack.c.l.b16 %v516
      %v669 = vunpack.c.l.b16 %v517
      %v670 = vunpack.c.l.b16 %v518
      %v671 = vunpack.c.l.b16 %v519
      %v672 = vunpack.c.l.b16 %v520
      %v673 = vunpack.c.l.b16 %v521
      %v674 = vunpack.c.l.b16 %v522
      %v675 = vunpack.c.l.b16 %v523
      %v676 = vunpack.c.l.b16 %v524
      %v677 = vunpack.c.l.b16 %v525
      %v678 = vunpack.c.l.b16 %v549
      %v679 = vunpack.c.l.b16 %v550
      %v680 = vpack.c.b16 %v645, %v644
      %v681 = vpack.c.b16 %v647, %v646
      %v682 = vpack.c.b16 %v649, %v648
      %v683 = vpack.c.b16 %v651, %v650
      %v684 = vpack.c.b16 %v653, %v652
      %v685 = vpack.c.b16 %v655, %v654
      %v686 = vpack.c.b16 %v657, %v656
      %v687 = vpack.c.b16 %v659, %v658
      %v688 = vpack.c.b16 %v661, %v660
      %v689 = vpack.c.b16 %v663, %v662
      %v690 = vpack.c.b16 %v665, %v664
      %v691 = vpack.c.b16 %v667, %v666
      %v692 = vpack.c.b16 %v669, %v668
      %v693 = vpack.c.b16 %v671, %v670
      %v694 = vpack.c.b16 %v673, %v672
      %v695 = vpack.c.b16 %v675, %v674
      %v696 = vpack.c.b16 %v677, %v676
      %v697 = vpack.c.b16 %v679, %v678
      %v699 = vshrl.u32 %v680, 16
      %v701 = vrot.slane %v699, 7
      %v702 = vshll.u32 %v680, 16
      %v704 = vor.u32 %v701, %v702
      %v706 = vshrl.u32 %v681, 16
      %v708 = vrot.slane %v706, 7
      %v709 = vshll.u32 %v681, 16
      %v711 = vor.u32 %v708, %v709
      %v713 = vshrl.u32 %v682, 16
      %v715 = vrot.slane %v713, 7
      %v716 = vshll.u32 %v682, 16
      %v718 = vor.u32 %v715, %v716
      %v720 = vshrl.u32 %v683, 16
      %v722 = vrot.slane %v720, 7
      %v723 = vshll.u32 %v683, 16
      %v725 = vor.u32 %v722, %v723
      %v727 = vshrl.u32 %v684, 16
      %v729 = vrot.slane %v727, 7
      %v730 = vshll.u32 %v684, 16
      %v732 = vor.u32 %v729, %v730
      %v734 = vshrl.u32 %v685, 16
      %v736 = vrot.slane %v734, 7
      %v737 = vshll.u32 %v685, 16
      %v739 = vor.u32 %v736, %v737
      %v741 = vshrl.u32 %v686, 16
      %v743 = vrot.slane %v741, 7
      %v744 = vshll.u32 %v686, 16
      %v746 = vor.u32 %v743, %v744
      %v748 = vshrl.u32 %v687, 16
      %v750 = vrot.slane %v748, 7
      %v751 = vshll.u32 %v687, 16
      %v753 = vor.u32 %v750, %v751
      %v755 = vshrl.u32 %v688, 16
      %v757 = vrot.slane %v755, 7
      %v758 = vshll.u32 %v688, 16
      %v760 = vor.u32 %v757, %v758
      %v762 = vshrl.u32 %v689, 16
      %v764 = vrot.slane %v762, 7
      %v765 = vshll.u32 %v689, 16
      %v767 = vor.u32 %v764, %v765
      %v769 = vshrl.u32 %v690, 16
      %v771 = vrot.slane %v769, 7
      %v772 = vshll.u32 %v690, 16
      %v774 = vor.u32 %v771, %v772
      %v776 = vshrl.u32 %v691, 16
      %v778 = vrot.slane %v776, 7
      %v779 = vshll.u32 %v691, 16
      %v781 = vor.u32 %v778, %v779
      %v783 = vshrl.u32 %v692, 16
      %v785 = vrot.slane %v783, 7
      %v786 = vshll.u32 %v692, 16
      %v788 = vor.u32 %v785, %v786
      %v790 = vshrl.u32 %v693, 16
      %v792 = vrot.slane %v790, 7
      %v793 = vshll.u32 %v693, 16
      %v795 = vor.u32 %v792, %v793
      %v797 = vshrl.u32 %v694, 16
      %v799 = vrot.slane %v797, 7
      %v800 = vshll.u32 %v694, 16
      %v802 = vor.u32 %v799, %v800
      %v804 = vshrl.u32 %v695, 16
      %v806 = vrot.slane %v804, 7
      %v807 = vshll.u32 %v695, 16
      %v809 = vor.u32 %v806, %v807
      %v811 = vshrl.u32 %v696, 16
      %v813 = vrot.slane %v811, 7
      %v814 = vshll.u32 %v696, 16
      %v816 = vor.u32 %v813, %v814
      %v818 = vshrl.u32 %v697, 16
      %v820 = vrot.slane %v818, 7
      %v821 = vshll.u32 %v697, 16
      %v823 = vor.u32 %v820, %v821
      %vm842 = vcmask 31744
      %vm843 = vsmask.f32 7938
      %vm844 = vmand %vm842, %vm843
      %v845 = vld [vmem:[#allocation2] sm:$0xff]
      %v846 = vsel %vm844, %v704, %v845
      %847 = vst [vmem:[#allocation2] sm:$0xff] %v846
      %v848 = vld [vmem:[#allocation2 + $0x8] sm:$0xff]
      %v849 = vsel %vm844, %v711, %v848
      %850 = vst [vmem:[#allocation2 + $0x8] sm:$0xff] %v849
      %v851 = vld [vmem:[#allocation2 + $0x10] sm:$0xff]
      %v852 = vsel %vm844, %v718, %v851
      %853 = vst [vmem:[#allocation2 + $0x10] sm:$0xff] %v852
      %v854 = vld [vmem:[#allocation2 + $0x18] sm:$0xff]
      %v855 = vsel %vm844, %v725, %v854
      %856 = vst [vmem:[#allocation2 + $0x18] sm:$0xff] %v855
      %v857 = vld [vmem:[#allocation2 + $0x20] sm:$0xff]
      %v858 = vsel %vm844, %v732, %v857
      %859 = vst [vmem:[#allocation2 + $0x20] sm:$0xff] %v858
      %v860 = vld [vmem:[#allocation2 + $0x28] sm:$0xff]
      %v861 = vsel %vm844, %v739, %v860
      %862 = vst [vmem:[#allocation2 + $0x28] sm:$0xff] %v861
      %v863 = vld [vmem:[#allocation2 + $0x30] sm:$0xff]
      %v864 = vsel %vm844, %v746, %v863
      %865 = vst [vmem:[#allocation2 + $0x30] sm:$0xff] %v864
      %v866 = vld [vmem:[#allocation2 + $0x38] sm:$0xff]
      %v867 = vsel %vm844, %v753, %v866
      %868 = vst [vmem:[#allocation2 + $0x38] sm:$0xff] %v867
      %v869 = vld [vmem:[#allocation2 + $0x40] sm:$0xff]
      %v870 = vsel %vm844, %v760, %v869
      %871 = vst [vmem:[#allocation2 + $0x40] sm:$0xff] %v870
      %v872 = vld [vmem:[#allocation2 + $0x48] sm:$0xff]
      %v873 = vsel %vm844, %v767, %v872
      %874 = vst [vmem:[#allocation2 + $0x48] sm:$0xff] %v873
      %v875 = vld [vmem:[#allocation2 + $0x50] sm:$0xff]
      %v876 = vsel %vm844, %v774, %v875
      %877 = vst [vmem:[#allocation2 + $0x50] sm:$0xff] %v876
      %v878 = vld [vmem:[#allocation2 + $0x58] sm:$0xff]
      %v879 = vsel %vm844, %v781, %v878
      %880 = vst [vmem:[#allocation2 + $0x58] sm:$0xff] %v879
      %v881 = vld [vmem:[#allocation2 + $0x60] sm:$0xff]
      %v882 = vsel %vm844, %v788, %v881
      %883 = vst [vmem:[#allocation2 + $0x60] sm:$0xff] %v882
      %v884 = vld [vmem:[#allocation2 + $0x68] sm:$0xff]
      %v885 = vsel %vm844, %v795, %v884
      %886 = vst [vmem:[#allocation2 + $0x68] sm:$0xff] %v885
      %v887 = vld [vmem:[#allocation2 + $0x70] sm:$0xff]
      %v888 = vsel %vm844, %v802, %v887
      %889 = vst [vmem:[#allocation2 + $0x70] sm:$0xff] %v888
      %v890 = vld [vmem:[#allocation2 + $0x78] sm:$0xff]
      %v891 = vsel %vm844, %v809, %v890
      %892 = vst [vmem:[#allocation2 + $0x78] sm:$0xff] %v891
      %v893 = vld [vmem:[#allocation2 + $0x80] sm:$0xff]
      %v894 = vsel %vm844, %v816, %v893
      %895 = vst [vmem:[#allocation2 + $0x80] sm:$0xff] %v894
      %v896 = vld [vmem:[#allocation2 + $0x88] sm:$0xff]
      %v897 = vsel %vm844, %v823, %v896
      %898 = vst [vmem:[#allocation2 + $0x88] sm:$0xff] %v897
      %899 = vrot.lane.b32.xlu0 %v680, 4
      %v900 = vpop.permute.xlu0 %899
      %901 = vrot.lane.b32.xlu0 %v681, 4
      %v902 = vpop.permute.xlu0 %901
      %903 = vrot.lane.b32.xlu0 %v682, 4
      %v904 = vpop.permute.xlu0 %903
      %905 = vrot.lane.b32.xlu0 %v683, 4
      %v906 = vpop.permute.xlu0 %905
      %907 = vrot.lane.b32.xlu0 %v684, 4
      %v908 = vpop.permute.xlu0 %907
      %909 = vrot.lane.b32.xlu0 %v685, 4
      %v910 = vpop.permute.xlu0 %909
      %911 = vrot.lane.b32.xlu0 %v686, 4
      %v912 = vpop.permute.xlu0 %911
      %913 = vrot.lane.b32.xlu0 %v687, 4
      %v914 = vpop.permute.xlu0 %913
      %915 = vrot.lane.b32.xlu0 %v688, 4
      %v916 = vpop.permute.xlu0 %915
      %917 = vrot.lane.b32.xlu0 %v689, 4
      %v918 = vpop.permute.xlu0 %917
      %919 = vrot.lane.b32.xlu0 %v690, 4
      %v920 = vpop.permute.xlu0 %919
      %921 = vrot.lane.b32.xlu0 %v691, 4
      %v922 = vpop.permute.xlu0 %921
      %923 = vrot.lane.b32.xlu0 %v692, 4
      %v924 = vpop.permute.xlu0 %923
      %925 = vrot.lane.b32.xlu0 %v693, 4
      %v926 = vpop.permute.xlu0 %925
      %927 = vrot.lane.b32.xlu0 %v694, 4
      %v928 = vpop.permute.xlu0 %927
      %929 = vrot.lane.b32.xlu0 %v695, 4
      %v930 = vpop.permute.xlu0 %929
      %931 = vrot.lane.b32.xlu0 %v696, 4
      %v932 = vpop.permute.xlu0 %931
      %933 = vrot.lane.b32.xlu0 %v697, 4
      %v934 = vpop.permute.xlu0 %933
      %vm953 = vcmask 64544
      %954 = vst.msk [vmem:[#allocation2] sm:$0xff] %vm953, %v900
      %955 = vst.msk [vmem:[#allocation2 + $0x8] sm:$0xff] %vm953, %v902
      %956 = vst.msk [vmem:[#allocation2 + $0x10] sm:$0xff] %vm953, %v904
      %957 = vst.msk [vmem:[#allocation2 + $0x18] sm:$0xff] %vm953, %v906
      %958 = vst.msk [vmem:[#allocation2 + $0x20] sm:$0xff] %vm953, %v908
      %959 = vst.msk [vmem:[#allocation2 + $0x28] sm:$0xff] %vm953, %v910
      %960 = vst.msk [vmem:[#allocation2 + $0x30] sm:$0xff] %vm953, %v912
      %961 = vst.msk [vmem:[#allocation2 + $0x38] sm:$0xff] %vm953, %v914
      %962 = vst.msk [vmem:[#allocation2 + $0x40] sm:$0xff] %vm953, %v916
      %963 = vst.msk [vmem:[#allocation2 + $0x48] sm:$0xff] %vm953, %v918
      %964 = vst.msk [vmem:[#allocation2 + $0x50] sm:$0xff] %vm953, %v920
      %965 = vst.msk [vmem:[#allocation2 + $0x58] sm:$0xff] %vm953, %v922
      %966 = vst.msk [vmem:[#allocation2 + $0x60] sm:$0xff] %vm953, %v924
      %967 = vst.msk [vmem:[#allocation2 + $0x68] sm:$0xff] %vm953, %v926
      %968 = vst.msk [vmem:[#allocation2 + $0x70] sm:$0xff] %vm953, %v928
      %969 = vst.msk [vmem:[#allocation2 + $0x78] sm:$0xff] %vm953, %v930
      %970 = vst.msk [vmem:[#allocation2 + $0x80] sm:$0xff] %vm953, %v932
      %971 = vst.msk [vmem:[#allocation2 + $0x88] sm:$0xff] %vm953, %v934
      %v972 = vrot.slane %v702, 1
      %v973 = vor.u32 %v699, %v972
      %v974 = vrot.slane %v709, 1
      %v975 = vor.u32 %v706, %v974
      %v976 = vrot.slane %v716, 1
      %v977 = vor.u32 %v713, %v976
      %v978 = vrot.slane %v723, 1
      %v979 = vor.u32 %v720, %v978
      %v980 = vrot.slane %v730, 1
      %v981 = vor.u32 %v727, %v980
      %v982 = vrot.slane %v737, 1
      %v983 = vor.u32 %v734, %v982
      %v984 = vrot.slane %v744, 1
      %v985 = vor.u32 %v741, %v984
      %v986 = vrot.slane %v751, 1
      %v987 = vor.u32 %v748, %v986
      %v988 = vrot.slane %v758, 1
      %v989 = vor.u32 %v755, %v988
      %v990 = vrot.slane %v765, 1
      %v991 = vor.u32 %v762, %v990
      %v992 = vrot.slane %v772, 1
      %v993 = vor.u32 %v769, %v992
      %v994 = vrot.slane %v779, 1
      %v995 = vor.u32 %v776, %v994
      %v996 = vrot.slane %v786, 1
      %v997 = vor.u32 %v783, %v996
      %v998 = vrot.slane %v793, 1
      %v999 = vor.u32 %v790, %v998
      %v1000 = vrot.slane %v800, 1
      %v1001 = vor.u32 %v797, %v1000
      %v1002 = vrot.slane %v807, 1
      %v1003 = vor.u32 %v804, %v1002
      %v1004 = vrot.slane %v814, 1
      %v1005 = vor.u32 %v811, %v1004
      %v1006 = vrot.slane %v821, 1
      %v1007 = vor.u32 %v818, %v1006
      %1008 = vrot.lane.b32.xlu0 %v973, 8
      %v1009 = vpop.permute.xlu0 %1008
      %1010 = vrot.lane.b32.xlu0 %v975, 8
      %v1011 = vpop.permute.xlu0 %1010
      %1012 = vrot.lane.b32.xlu0 %v977, 8
      %v1013 = vpop.permute.xlu0 %1012
      %1014 = vrot.lane.b32.xlu0 %v979, 8
      %v1015 = vpop.permute.xlu0 %1014
      %1016 = vrot.lane.b32.xlu0 %v981, 8
      %v1017 = vpop.permute.xlu0 %1016
      %1018 = vrot.lane.b32.xlu0 %v983, 8
      %v1019 = vpop.permute.xlu0 %1018
      %1020 = vrot.lane.b32.xlu0 %v985, 8
      %v1021 = vpop.permute.xlu0 %1020
      %1022 = vrot.lane.b32.xlu0 %v987, 8
      %v1023 = vpop.permute.xlu0 %1022
      %1024 = vrot.lane.b32.xlu0 %v989, 8
      %v1025 = vpop.permute.xlu0 %1024
      %1026 = vrot.lane.b32.xlu0 %v991, 8
      %v1027 = vpop.permute.xlu0 %1026
      %1028 = vrot.lane.b32.xlu0 %v993, 8
      %v1029 = vpop.permute.xlu0 %1028
      %1030 = vrot.lane.b32.xlu0 %v995, 8
      %v1031 = vpop.permute.xlu0 %1030
      %1032 = vrot.lane.b32.xlu0 %v997, 8
      %v1033 = vpop.permute.xlu0 %1032
      %1034 = vrot.lane.b32.xlu0 %v999, 8
      %v1035 = vpop.permute.xlu0 %1034
      %1036 = vrot.lane.b32.xlu0 %v1001, 8
      %v1037 = vpop.permute.xlu0 %1036
      %1038 = vrot.lane.b32.xlu0 %v1003, 8
      %v1039 = vpop.permute.xlu0 %1038
      %1040 = vrot.lane.b32.xlu0 %v1005, 8
      %v1041 = vpop.permute.xlu0 %1040
      %1042 = vrot.lane.b32.xlu0 %v1007, 8
      %v1043 = vpop.permute.xlu0 %1042
      %vm1062 = vcmask 97344
      %vm1063 = vsmask.f32 7424
      %vm1064 = vmand %vm1062, %vm1063
      %v1065 = vld [vmem:[#allocation2] sm:$0xff]
      %v1066 = vsel %vm1064, %v1009, %v1065
      %1067 = vst [vmem:[#allocation2] sm:$0xff] %v1066
      %v1068 = vld [vmem:[#allocation2 + $0x8] sm:$0xff]
      %v1069 = vsel %vm1064, %v1011, %v1068
      %1070 = vst [vmem:[#allocation2 + $0x8] sm:$0xff] %v1069
      %v1071 = vld [vmem:[#allocation2 + $0x10] sm:$0xff]
      %v1072 = vsel %vm1064, %v1013, %v1071
      %1073 = vst [vmem:[#allocation2 + $0x10] sm:$0xff] %v1072
      %v1074 = vld [vmem:[#allocation2 + $0x18] sm:$0xff]
      %v1075 = vsel %vm1064, %v1015, %v1074
      %1076 = vst [vmem:[#allocation2 + $0x18] sm:$0xff] %v1075
      %v1077 = vld [vmem:[#allocation2 + $0x20] sm:$0xff]
      %v1078 = vsel %vm1064, %v1017, %v1077
      %1079 = vst [vmem:[#allocation2 + $0x20] sm:$0xff] %v1078
      %v1080 = vld [vmem:[#allocation2 + $0x28] sm:$0xff]
      %v1081 = vsel %vm1064, %v1019, %v1080
      %1082 = vst [vmem:[#allocation2 + $0x28] sm:$0xff] %v1081
      %v1083 = vld [vmem:[#allocation2 + $0x30] sm:$0xff]
      %v1084 = vsel %vm1064, %v1021, %v1083
      %1085 = vst [vmem:[#allocation2 + $0x30] sm:$0xff] %v1084
      %v1086 = vld [vmem:[#allocation2 + $0x38] sm:$0xff]
      %v1087 = vsel %vm1064, %v1023, %v1086
      %1088 = vst [vmem:[#allocation2 + $0x38] sm:$0xff] %v1087
      %v1089 = vld [vmem:[#allocation2 + $0x40] sm:$0xff]
      %v1090 = vsel %vm1064, %v1025, %v1089
      %1091 = vst [vmem:[#allocation2 + $0x40] sm:$0xff] %v1090
      %v1092 = vld [vmem:[#allocation2 + $0x48] sm:$0xff]
      %v1093 = vsel %vm1064, %v1027, %v1092
      %1094 = vst [vmem:[#allocation2 + $0x48] sm:$0xff] %v1093
      %v1095 = vld [vmem:[#allocation2 + $0x50] sm:$0xff]
      %v1096 = vsel %vm1064, %v1029, %v1095
      %1097 = vst [vmem:[#allocation2 + $0x50] sm:$0xff] %v1096
      %v1098 = vld [vmem:[#allocation2 + $0x58] sm:$0xff]
      %v1099 = vsel %vm1064, %v1031, %v1098
      %1100 = vst [vmem:[#allocation2 + $0x58] sm:$0xff] %v1099
      %v1101 = vld [vmem:[#allocation2 + $0x60] sm:$0xff]
      %v1102 = vsel %vm1064, %v1033, %v1101
      %1103 = vst [vmem:[#allocation2 + $0x60] sm:$0xff] %v1102
      %v1104 = vld [vmem:[#allocation2 + $0x68] sm:$0xff]
      %v1105 = vsel %vm1064, %v1035, %v1104
      %1106 = vst [vmem:[#allocation2 + $0x68] sm:$0xff] %v1105
      %v1107 = vld [vmem:[#allocation2 + $0x70] sm:$0xff]
      %v1108 = vsel %vm1064, %v1037, %v1107
      %1109 = vst [vmem:[#allocation2 + $0x70] sm:$0xff] %v1108
      %v1110 = vld [vmem:[#allocation2 + $0x78] sm:$0xff]
      %v1111 = vsel %vm1064, %v1039, %v1110
      %1112 = vst [vmem:[#allocation2 + $0x78] sm:$0xff] %v1111
      %v1113 = vld [vmem:[#allocation2 + $0x80] sm:$0xff]
      %v1114 = vsel %vm1064, %v1041, %v1113
      %1115 = vst [vmem:[#allocation2 + $0x80] sm:$0xff] %v1114
      %v1116 = vld [vmem:[#allocation2 + $0x88] sm:$0xff]
      %v1117 = vsel %vm1064, %v1043, %v1116
      %1118 = vst [vmem:[#allocation2 + $0x88] sm:$0xff] %v1117
      %vm1119 = vcmask 97351
      %vm1120 = vsmask.f32 7966
      %vm1121 = vmand %vm1119, %vm1120
      %v1122 = vld [vmem:[#allocation2] sm:$0x80]
      %v1123 = vsel %vm1121, 0, %v1122
      %1124 = vst [vmem:[#allocation2] sm:$0x80] %v1123
      %v1125 = vld [vmem:[#allocation2 + $0x8] sm:$0x80]
      %v1126 = vsel %vm1121, 0, %v1125
      %1127 = vst [vmem:[#allocation2 + $0x8] sm:$0x80] %v1126
      %v1128 = vld [vmem:[#allocation2 + $0x10] sm:$0x80]
      %v1129 = vsel %vm1121, 0, %v1128
      %1130 = vst [vmem:[#allocation2 + $0x10] sm:$0x80] %v1129
      %v1131 = vld [vmem:[#allocation2 + $0x18] sm:$0x80]
      %v1132 = vsel %vm1121, 0, %v1131
      %1133 = vst [vmem:[#allocation2 + $0x18] sm:$0x80] %v1132
      %v1134 = vld [vmem:[#allocation2 + $0x20] sm:$0x80]
      %v1135 = vsel %vm1121, 0, %v1134
      %1136 = vst [vmem:[#allocation2 + $0x20] sm:$0x80] %v1135
      %v1137 = vld [vmem:[#allocation2 + $0x28] sm:$0x80]
      %v1138 = vsel %vm1121, 0, %v1137
      %1139 = vst [vmem:[#allocation2 + $0x28] sm:$0x80] %v1138
      %v1140 = vld [vmem:[#allocation2 + $0x30] sm:$0x80]
      %v1141 = vsel %vm1121, 0, %v1140
      %1142 = vst [vmem:[#allocation2 + $0x30] sm:$0x80] %v1141
      %v1143 = vld [vmem:[#allocation2 + $0x38] sm:$0x80]
      %v1144 = vsel %vm1121, 0, %v1143
      %1145 = vst [vmem:[#allocation2 + $0x38] sm:$0x80] %v1144
      %v1146 = vld [vmem:[#allocation2 + $0x40] sm:$0x80]
      %v1147 = vsel %vm1121, 0, %v1146
      %1148 = vst [vmem:[#allocation2 + $0x40] sm:$0x80] %v1147
      %v1149 = vld [vmem:[#allocation2 + $0x48] sm:$0x80]
      %v1150 = vsel %vm1121, 0, %v1149
      %1151 = vst [vmem:[#allocation2 + $0x48] sm:$0x80] %v1150
      %v1152 = vld [vmem:[#allocation2 + $0x50] sm:$0x80]
      %v1153 = vsel %vm1121, 0, %v1152
      %1154 = vst [vmem:[#allocation2 + $0x50] sm:$0x80] %v1153
      %v1155 = vld [vmem:[#allocation2 + $0x58] sm:$0x80]
      %v1156 = vsel %vm1121, 0, %v1155
      %1157 = vst [vmem:[#allocation2 + $0x58] sm:$0x80] %v1156
      %v1158 = vld [vmem:[#allocation2 + $0x60] sm:$0x80]
      %v1159 = vsel %vm1121, 0, %v1158
      %1160 = vst [vmem:[#allocation2 + $0x60] sm:$0x80] %v1159
      %v1161 = vld [vmem:[#allocation2 + $0x68] sm:$0x80]
      %v1162 = vsel %vm1121, 0, %v1161
      %1163 = vst [vmem:[#allocation2 + $0x68] sm:$0x80] %v1162
      %v1164 = vld [vmem:[#allocation2 + $0x70] sm:$0x80]
      %v1165 = vsel %vm1121, 0, %v1164
      %1166 = vst [vmem:[#allocation2 + $0x70] sm:$0x80] %v1165
      %v1167 = vld [vmem:[#allocation2 + $0x78] sm:$0x80]
      %v1168 = vsel %vm1121, 0, %v1167
      %1169 = vst [vmem:[#allocation2 + $0x78] sm:$0x80] %v1168
      %v1170 = vld [vmem:[#allocation2 + $0x80] sm:$0x80]
      %v1171 = vsel %vm1121, 0, %v1170
      %1172 = vst [vmem:[#allocation2 + $0x80] sm:$0x80] %v1171
      %v1173 = vld [vmem:[#allocation2 + $0x88] sm:$0x80]
      %v1174 = vsel %vm1121, 0, %v1173
      %1175 = vst [vmem:[#allocation2 + $0x88] sm:$0x80] %v1174
      %v1176 = vld [vmem:[#allocation2] sm:$0xff]
      %v1177 = vld [vmem:[#allocation2 + $0x8] sm:$0xff]
      %v1178 = vld [vmem:[#allocation2 + $0x10] sm:$0xff]
      %v1179 = vld [vmem:[#allocation2 + $0x18] sm:$0xff]
      %v1180 = vld [vmem:[#allocation2 + $0x20] sm:$0xff]
      %v1181 = vld [vmem:[#allocation2 + $0x28] sm:$0xff]
      %v1182 = vld [vmem:[#allocation2 + $0x30] sm:$0xff]
      %v1183 = vld [vmem:[#allocation2 + $0x38] sm:$0xff]
      %v1184 = vld [vmem:[#allocation2 + $0x40] sm:$0xff]
      %v1185 = vld [vmem:[#allocation2 + $0x48] sm:$0xff]
      %v1186 = vld [vmem:[#allocation2 + $0x50] sm:$0xff]
      %v1187 = vld [vmem:[#allocation2 + $0x58] sm:$0xff]
      %v1188 = vld [vmem:[#allocation2 + $0x60] sm:$0xff]
      %v1189 = vld [vmem:[#allocation2 + $0x68] sm:$0xff]
      %v1190 = vld [vmem:[#allocation2 + $0x70] sm:$0xff]
      %v1191 = vld [vmem:[#allocation2 + $0x78] sm:$0xff]
      %v1192 = vld [vmem:[%s5] sm:$0xf]
      %v1193 = vld [vmem:[%s5 + $0x4] sm:$0x3]
      %s1194 = scalar_lea.vmem [#allocation2], 8
      %v1195 = vld [vmem:[%s1194] sm:$0xff]
      %v1196 = vld [vmem:[%s1194 + $0x8] sm:$0xff]
      %v1197 = vld [vmem:[%s1194 + $0x10] sm:$0xff]
      %v1198 = vld [vmem:[%s1194 + $0x18] sm:$0xff]
      %v1199 = vld [vmem:[%s1194 + $0x20] sm:$0xff]
      %v1200 = vld [vmem:[%s1194 + $0x28] sm:$0xff]
      %v1201 = vld [vmem:[%s1194 + $0x30] sm:$0xff]
      %v1202 = vld [vmem:[%s1194 + $0x38] sm:$0xff]
      %v1203 = vld [vmem:[%s1194 + $0x40] sm:$0xff]
      %v1204 = vld [vmem:[%s1194 + $0x48] sm:$0xff]
      %v1205 = vld [vmem:[%s1194 + $0x50] sm:$0xff]
      %v1206 = vld [vmem:[%s1194 + $0x58] sm:$0xff]
      %v1207 = vld [vmem:[%s1194 + $0x60] sm:$0xff]
      %v1208 = vld [vmem:[%s1194 + $0x68] sm:$0xff]
      %v1209 = vld [vmem:[%s1194 + $0x70] sm:$0xff]
      %v1210 = vld [vmem:[%s1194 + $0x78] sm:$0xff]
      %s1211 = scalar_lea.vmem %s5, 8
      %v1212 = vld [vmem:[%s1211] sm:$0xf]
      %v1213 = vld [vmem:[%s1211 + $0x4] sm:$0x3]
      %v1216 = vunpack.c.l.b16 %v1212
      %v1217 = vunpack.c.l.b16 %v1213
      %v1218 = vpack.c.b16 %v1217, %v1216
      %vm1219 = vcmask 97280
      %v1221 = vsel %vm1219, %v1195, 0
      %v1224 = vsel %vm1219, %v1196, 0
      %v1227 = vsel %vm1219, %v1197, 0
      %v1230 = vsel %vm1219, %v1198, 0
      %v1233 = vsel %vm1219, %v1199, 0
      %v1236 = vsel %vm1219, %v1200, 0
      %v1239 = vsel %vm1219, %v1201, 0
      %v1242 = vsel %vm1219, %v1202, 0
      %v1245 = vsel %vm1219, %v1203, 0
      %v1248 = vsel %vm1219, %v1204, 0
      %v1251 = vsel %vm1219, %v1205, 0
      %v1254 = vsel %vm1219, %v1206, 0
      %v1257 = vsel %vm1219, %v1207, 0
      %v1260 = vsel %vm1219, %v1208, 0
      %v1263 = vsel %vm1219, %v1209, 0
      %v1266 = vsel %vm1219, %v1210, 0
      %vm1268 = vcmask 1045504
      %v1270 = vsel %vm1268, %v1218, 0
      %1272 = vmatprep.subr.bf16.mxu0 0
      %1273 = vmatpush1.bf16.msra.mxu0 %v1270
      %1274 = vmatprep.subr.bf16.mxu0 0
      %1275 = vmatpush1.bf16.msra.mxu0 0
      %1276 = vmatprep.subr.bf16.mxu0 0
      %1277 = vmatpush1.bf16.msra.mxu0 0
      %1278 = vmatprep.subr.bf16.mxu0 0
      %1279 = vmatpush1.bf16.msra.mxu0 0
      %1280 = vmatprep.subr.bf16.mxu0 0
      %1281 = vmatpush1.bf16.msra.mxu0 0
      %1282 = vmatprep.subr.bf16.mxu0 0
      %1283 = vmatpush1.bf16.msra.mxu0 0
      %1284 = vmatprep.subr.bf16.mxu0 0
      %1285 = vmatpush1.bf16.msra.mxu0 0
      %1286 = vmatprep.subr.bf16.mxu0 0
      %1287 = vmatpush1.bf16.msra.mxu0 0
      %1288 = vmatprep.subr.bf16.mxu0 0
      %1289 = vmatpush1.bf16.msra.mxu0 0
      %1290 = vmatprep.subr.bf16.mxu0 0
      %1291 = vmatpush1.bf16.msra.mxu0 0
      %1292 = vmatprep.subr.bf16.mxu0 0
      %1293 = vmatpush1.bf16.msra.mxu0 0
      %1294 = vmatprep.subr.bf16.mxu0 0
      %1295 = vmatpush1.bf16.msra.mxu0 0
      %1296 = vmatprep.subr.bf16.mxu0 0
      %1297 = vmatpush1.bf16.msra.mxu0 0
      %1298 = vmatprep.subr.bf16.mxu0 0
      %1299 = vmatpush1.bf16.msra.mxu0 0
      %1300 = vmatprep.subr.bf16.mxu0 0
      %1301 = vmatpush1.bf16.msra.mxu0 0
      %1302 = vmatprep.subr.bf16.mxu0 0
      %1303 = vmatpush1.bf16.msra.mxu0 0
      %1304 = vmatprep.mubr.bf16.mxu0 0
      %1305 = vmatmul.mubr.bf16.gmra.mrb[0].mxu0 %v1221
      %v1306 = vpop.f32.mrb[0].mxu0
      %v1307 = vadd.f32 0.0, %v1306
      %v1308 = vpop.f32.mrb[0].mxu0
      %v1309 = vpop.f32.mrb[0].mxu0
      %v1310 = vadd.f32 0.0, %v1309
      %v1311 = vpop.f32.mrb[0].mxu0
      %1312 = vmatprep.mubr.bf16.mxu0 0
      %1313 = vmatmul.mubr.bf16.gmra.mrb[0].mxu0 %v1224
      %v1314 = vpop.f32.mrb[0].mxu0
      %v1315 = vadd.f32 0.0, %v1314
      %v1316 = vpop.f32.mrb[0].mxu0
      %v1317 = vpop.f32.mrb[0].mxu0
      %v1318 = vadd.f32 0.0, %v1317
      %v1319 = vpop.f32.mrb[0].mxu0
      %1320 = vmatprep.mubr.bf16.mxu0 0
      %1321 = vmatmul.mubr.bf16.gmra.mrb[0].mxu0 %v1227
      %v1322 = vpop.f32.mrb[0].mxu0
      %v1323 = vadd.f32 0.0, %v1322
      %v1324 = vpop.f32.mrb[0].mxu0
      %v1325 = vpop.f32.mrb[0].mxu0
      %v1326 = vadd.f32 0.0, %v1325
      %v1327 = vpop.f32.mrb[0].mxu0
      %1328 = vmatprep.mubr.bf16.mxu0 0
      %1329 = vmatmul.mubr.bf16.gmra.mrb[0].mxu0 %v1230
      %v1330 = vpop.f32.mrb[0].mxu0
      %v1331 = vadd.f32 0.0, %v1330
      %v1332 = vpop.f32.mrb[0].mxu0
      %v1333 = vpop.f32.mrb[0].mxu0
      %v1334 = vadd.f32 0.0, %v1333
      %v1335 = vpop.f32.mrb[0].mxu0
      %1336 = vmatprep.mubr.bf16.mxu0 0
      %1337 = vmatmul.mubr.bf16.gmra.mrb[0].mxu0 %v1233
      %v1338 = vpop.f32.mrb[0].mxu0
      %v1339 = vadd.f32 0.0, %v1338
      %v1340 = vpop.f32.mrb[0].mxu0
      %v1341 = vpop.f32.mrb[0].mxu0
      %v1342 = vadd.f32 0.0, %v1341
      %v1343 = vpop.f32.mrb[0].mxu0
      %1344 = vmatprep.mubr.bf16.mxu0 0
      %1345 = vmatmul.mubr.bf16.gmra.mrb[0].mxu0 %v1236
      %v1346 = vpop.f32.mrb[0].mxu0
      %v1347 = vadd.f32 0.0, %v1346
      %v1348 = vpop.f32.mrb[0].mxu0
      %v1349 = vpop.f32.mrb[0].mxu0
      %v1350 = vadd.f32 0.0, %v1349
      %v1351 = vpop.f32.mrb[0].mxu0
      %1352 = vmatprep.mubr.bf16.mxu0 0
      %1353 = vmatmul.mubr.bf16.gmra.mrb[0].mxu0 %v1239
      %v1354 = vpop.f32.mrb[0].mxu0
      %v1355 = vadd.f32 0.0, %v1354
      %v1356 = vpop.f32.mrb[0].mxu0
      %v1357 = vpop.f32.mrb[0].mxu0
      %v1358 = vadd.f32 0.0, %v1357
      %v1359 = vpop.f32.mrb[0].mxu0
      %1360 = vmatprep.mubr.bf16.mxu0 0
      %1361 = vmatmul.mubr.bf16.gmra.mrb[0].mxu0 %v1242
      %v1362 = vpop.f32.mrb[0].mxu0
      %v1363 = vadd.f32 0.0, %v1362
      %v1364 = vpop.f32.mrb[0].mxu0
      %v1365 = vpop.f32.mrb[0].mxu0
      %v1366 = vadd.f32 0.0, %v1365
      %v1367 = vpop.f32.mrb[0].mxu0
      %1368 = vmatprep.mubr.bf16.mxu0 0
      %1369 = vmatmul.mubr.bf16.gmra.mrb[0].mxu0 %v1245
      %v1370 = vpop.f32.mrb[0].mxu0
      %v1371 = vadd.f32 0.0, %v1370
      %v1372 = vpop.f32.mrb[0].mxu0
      %v1373 = vpop.f32.mrb[0].mxu0
      %v1374 = vadd.f32 0.0, %v1373
      %v1375 = vpop.f32.mrb[0].mxu0
      %1376 = vmatprep.mubr.bf16.mxu0 0
      %1377 = vmatmul.mubr.bf16.gmra.mrb[0].mxu0 %v1248
      %v1378 = vpop.f32.mrb[0].mxu0
      %v1379 = vadd.f32 0.0, %v1378
      %v1380 = vpop.f32.mrb[0].mxu0
      %v1381 = vpop.f32.mrb[0].mxu0
      %v1382 = vadd.f32 0.0, %v1381
      %v1383 = vpop.f32.mrb[0].mxu0
      %1384 = vmatprep.mubr.bf16.mxu0 0
      %1385 = vmatmul.mubr.bf16.gmra.mrb[0].mxu0 %v1251
      %v1386 = vpop.f32.mrb[0].mxu0
      %v1387 = vadd.f32 0.0, %v1386
      %v1388 = vpop.f32.mrb[0].mxu0
      %v1389 = vpop.f32.mrb[0].mxu0
      %v1390 = vadd.f32 0.0, %v1389
      %v1391 = vpop.f32.mrb[0].mxu0
      %1392 = vmatprep.mubr.bf16.mxu0 0
      %1393 = vmatmul.mubr.bf16.gmra.mrb[0].mxu0 %v1254
      %v1394 = vpop.f32.mrb[0].mxu0
      %v1395 = vadd.f32 0.0, %v1394
      %v1396 = vpop.f32.mrb[0].mxu0
      %v1397 = vpop.f32.mrb[0].mxu0
      %v1398 = vadd.f32 0.0, %v1397
      %v1399 = vpop.f32.mrb[0].mxu0
      %1400 = vmatprep.mubr.bf16.mxu0 0
      %1401 = vmatmul.mubr.bf16.gmra.mrb[0].mxu0 %v1257
      %v1402 = vpop.f32.mrb[0].mxu0
      %v1403 = vadd.f32 0.0, %v1402
      %v1404 = vpop.f32.mrb[0].mxu0
      %v1405 = vpop.f32.mrb[0].mxu0
      %v1406 = vadd.f32 0.0, %v1405
      %v1407 = vpop.f32.mrb[0].mxu0
      %1408 = vmatprep.mubr.bf16.mxu0 0
      %1409 = vmatmul.mubr.bf16.gmra.mrb[0].mxu0 %v1260
      %v1410 = vpop.f32.mrb[0].mxu0
      %v1411 = vadd.f32 0.0, %v1410
      %v1412 = vpop.f32.mrb[0].mxu0
      %v1413 = vpop.f32.mrb[0].mxu0
      %v1414 = vadd.f32 0.0, %v1413
      %v1415 = vpop.f32.mrb[0].mxu0
      %1416 = vmatprep.mubr.bf16.mxu0 0
      %1417 = vmatmul.mubr.bf16.gmra.mrb[0].mxu0 %v1263
      %v1418 = vpop.f32.mrb[0].mxu0
      %v1419 = vadd.f32 0.0, %v1418
      %v1420 = vpop.f32.mrb[0].mxu0
      %v1421 = vpop.f32.mrb[0].mxu0
      %v1422 = vadd.f32 0.0, %v1421
      %v1423 = vpop.f32.mrb[0].mxu0
      %1424 = vmatprep.mubr.bf16.mxu0 0
      %1425 = vmatmul.mubr.bf16.gmra.mrb[0].mxu0 %v1266
      %v1426 = vpop.f32.mrb[0].mxu0
      %v1427 = vadd.f32 0.0, %v1426
      %v1428 = vpop.f32.mrb[0].mxu0
      %v1429 = vpop.f32.mrb[0].mxu0
      %v1430 = vadd.f32 0.0, %v1429
      %v1431 = vpop.f32.mrb[0].mxu0
      %1432 = vdwg.mxu0
      %v1435 = vunpack.c.l.b16 %v1192
      %v1436 = vunpack.c.l.b16 %v1193
      %v1437 = vpack.c.b16 %v1436, %v1435
      %v1439 = vsel %vm1219, %v1176, 0
      %v1442 = vsel %vm1219, %v1177, 0
      %v1445 = vsel %vm1219, %v1178, 0
      %v1448 = vsel %vm1219, %v1179, 0
      %v1451 = vsel %vm1219, %v1180, 0
      %v1454 = vsel %vm1219, %v1181, 0
      %v1457 = vsel %vm1219, %v1182, 0
      %v1460 = vsel %vm1219, %v1183, 0
      %v1463 = vsel %vm1219, %v1184, 0
      %v1466 = vsel %vm1219, %v1185, 0
      %v1469 = vsel %vm1219, %v1186, 0
      %v1472 = vsel %vm1219, %v1187, 0
      %v1475 = vsel %vm1219, %v1188, 0
      %v1478 = vsel %vm1219, %v1189, 0
      %v1481 = vsel %vm1219, %v1190, 0
      %v1484 = vsel %vm1219, %v1191, 0
      %v1487 = vsel %vm1268, %v1437, 0
      %1489 = vmatprep.subr.bf16.mxu0 0
      %1490 = vmatpush1.bf16.msra.mxu0 %v1487
      %1491 = vmatprep.subr.bf16.mxu0 0
      %1492 = vmatpush1.bf16.msra.mxu0 0
      %1493 = vmatprep.subr.bf16.mxu0 0
      %1494 = vmatpush1.bf16.msra.mxu0 0
      %1495 = vmatprep.subr.bf16.mxu0 0
      %1496 = vmatpush1.bf16.msra.mxu0 0
      %1497 = vmatprep.subr.bf16.mxu0 0
      %1498 = vmatpush1.bf16.msra.mxu0 0
      %1499 = vmatprep.subr.bf16.mxu0 0
      %1500 = vmatpush1.bf16.msra.mxu0 0
      %1501 = vmatprep.subr.bf16.mxu0 0
      %1502 = vmatpush1.bf16.msra.mxu0 0
      %1503 = vmatprep.subr.bf16.mxu0 0
      %1504 = vmatpush1.bf16.msra.mxu0 0
      %1505 = vmatprep.subr.bf16.mxu0 0
      %1506 = vmatpush1.bf16.msra.mxu0 0
      %1507 = vmatprep.subr.bf16.mxu0 0
      %1508 = vmatpush1.bf16.msra.mxu0 0
      %1509 = vmatprep.subr.bf16.mxu0 0
      %1510 = vmatpush1.bf16.msra.mxu0 0
      %1511 = vmatprep.subr.bf16.mxu0 0
      %1512 = vmatpush1.bf16.msra.mxu0 0
      %1513 = vmatprep.subr.bf16.mxu0 0
      %1514 = vmatpush1.bf16.msra.mxu0 0
      %1515 = vmatprep.subr.bf16.mxu0 0
      %1516 = vmatpush1.bf16.msra.mxu0 0
      %1517 = vmatprep.subr.bf16.mxu0 0
      %1518 = vmatpush1.bf16.msra.mxu0 0
      %1519 = vmatprep.subr.bf16.mxu0 0
      %1520 = vmatpush1.bf16.msra.mxu0 0
      %1521 = vmatprep.mubr.bf16.mxu0 0
      %1522 = vmatmul.mubr.bf16.gmra.mrb[0].mxu0 %v1439
      %v1523 = vpop.f32.mrb[0].mxu0
      %v1524 = vadd.f32 %v1307, %v1523
      %v1525 = vpop.f32.mrb[0].mxu0
      %v1526 = vpop.f32.mrb[0].mxu0
      %v1527 = vadd.f32 %v1310, %v1526
      %v1528 = vpop.f32.mrb[0].mxu0
      %1529 = vmatprep.mubr.bf16.mxu0 0
      %1530 = vmatmul.mubr.bf16.gmra.mrb[0].mxu0 %v1442
      %v1531 = vpop.f32.mrb[0].mxu0
      %v1532 = vadd.f32 %v1315, %v1531
      %v1533 = vpop.f32.mrb[0].mxu0
      %v1534 = vpop.f32.mrb[0].mxu0
      %v1535 = vadd.f32 %v1318, %v1534
      %v1536 = vpop.f32.mrb[0].mxu0
      %1537 = vmatprep.mubr.bf16.mxu0 0
      %1538 = vmatmul.mubr.bf16.gmra.mrb[0].mxu0 %v1445
      %v1539 = vpop.f32.mrb[0].mxu0
      %v1540 = vadd.f32 %v1323, %v1539
      %v1541 = vpop.f32.mrb[0].mxu0
      %v1542 = vpop.f32.mrb[0].mxu0
      %v1543 = vadd.f32 %v1326, %v1542
      %v1544 = vpop.f32.mrb[0].mxu0
      %1545 = vmatprep.mubr.bf16.mxu0 0
      %1546 = vmatmul.mubr.bf16.gmra.mrb[0].mxu0 %v1448
      %v1547 = vpop.f32.mrb[0].mxu0
      %v1548 = vadd.f32 %v1331, %v1547
      %v1549 = vpop.f32.mrb[0].mxu0
      %v1550 = vpop.f32.mrb[0].mxu0
      %v1551 = vadd.f32 %v1334, %v1550
      %v1552 = vpop.f32.mrb[0].mxu0
      %1553 = vmatprep.mubr.bf16.mxu0 0
      %1554 = vmatmul.mubr.bf16.gmra.mrb[0].mxu0 %v1451
      %v1555 = vpop.f32.mrb[0].mxu0
      %v1556 = vadd.f32 %v1339, %v1555
      %v1557 = vpop.f32.mrb[0].mxu0
      %v1558 = vpop.f32.mrb[0].mxu0
      %v1559 = vadd.f32 %v1342, %v1558
      %v1560 = vpop.f32.mrb[0].mxu0
      %1561 = vmatprep.mubr.bf16.mxu0 0
      %1562 = vmatmul.mubr.bf16.gmra.mrb[0].mxu0 %v1454
      %v1563 = vpop.f32.mrb[0].mxu0
      %v1564 = vadd.f32 %v1347, %v1563
      %v1565 = vpop.f32.mrb[0].mxu0
      %v1566 = vpop.f32.mrb[0].mxu0
      %v1567 = vadd.f32 %v1350, %v1566
      %v1568 = vpop.f32.mrb[0].mxu0
      %1569 = vmatprep.mubr.bf16.mxu0 0
      %1570 = vmatmul.mubr.bf16.gmra.mrb[0].mxu0 %v1457
      %v1571 = vpop.f32.mrb[0].mxu0
      %v1572 = vadd.f32 %v1355, %v1571
      %v1573 = vpop.f32.mrb[0].mxu0
      %v1574 = vpop.f32.mrb[0].mxu0
      %v1575 = vadd.f32 %v1358, %v1574
      %v1576 = vpop.f32.mrb[0].mxu0
      %1577 = vmatprep.mubr.bf16.mxu0 0
      %1578 = vmatmul.mubr.bf16.gmra.mrb[0].mxu0 %v1460
      %v1579 = vpop.f32.mrb[0].mxu0
      %v1580 = vadd.f32 %v1363, %v1579
      %v1581 = vpop.f32.mrb[0].mxu0
      %v1582 = vpop.f32.mrb[0].mxu0
      %v1583 = vadd.f32 %v1366, %v1582
      %v1584 = vpop.f32.mrb[0].mxu0
      %1585 = vmatprep.mubr.bf16.mxu0 0
      %1586 = vmatmul.mubr.bf16.gmra.mrb[0].mxu0 %v1463
      %v1587 = vpop.f32.mrb[0].mxu0
      %v1588 = vadd.f32 %v1371, %v1587
      %v1589 = vpop.f32.mrb[0].mxu0
      %v1590 = vpop.f32.mrb[0].mxu0
      %v1591 = vadd.f32 %v1374, %v1590
      %v1592 = vpop.f32.mrb[0].mxu0
      %1593 = vmatprep.mubr.bf16.mxu0 0
      %1594 = vmatmul.mubr.bf16.gmra.mrb[0].mxu0 %v1466
      %v1595 = vpop.f32.mrb[0].mxu0
      %v1596 = vadd.f32 %v1379, %v1595
      %v1597 = vpop.f32.mrb[0].mxu0
      %v1598 = vpop.f32.mrb[0].mxu0
      %v1599 = vadd.f32 %v1382, %v1598
      %v1600 = vpop.f32.mrb[0].mxu0
      %1601 = vmatprep.mubr.bf16.mxu0 0
      %1602 = vmatmul.mubr.bf16.gmra.mrb[0].mxu0 %v1469
      %v1603 = vpop.f32.mrb[0].mxu0
      %v1604 = vadd.f32 %v1387, %v1603
      %v1605 = vpop.f32.mrb[0].mxu0
      %v1606 = vpop.f32.mrb[0].mxu0
      %v1607 = vadd.f32 %v1390, %v1606
      %v1608 = vpop.f32.mrb[0].mxu0
      %1609 = vmatprep.mubr.bf16.mxu0 0
      %1610 = vmatmul.mubr.bf16.gmra.mrb[0].mxu0 %v1472
      %v1611 = vpop.f32.mrb[0].mxu0
      %v1612 = vadd.f32 %v1395, %v1611
      %v1613 = vpop.f32.mrb[0].mxu0
      %v1614 = vpop.f32.mrb[0].mxu0
      %v1615 = vadd.f32 %v1398, %v1614
      %v1616 = vpop.f32.mrb[0].mxu0
      %1617 = vmatprep.mubr.bf16.mxu0 0
      %1618 = vmatmul.mubr.bf16.gmra.mrb[0].mxu0 %v1475
      %v1619 = vpop.f32.mrb[0].mxu0
      %v1620 = vadd.f32 %v1403, %v1619
      %v1621 = vpop.f32.mrb[0].mxu0
      %v1622 = vpop.f32.mrb[0].mxu0
      %v1623 = vadd.f32 %v1406, %v1622
      %v1624 = vpop.f32.mrb[0].mxu0
      %1625 = vmatprep.mubr.bf16.mxu0 0
      %1626 = vmatmul.mubr.bf16.gmra.mrb[0].mxu0 %v1478
      %v1627 = vpop.f32.mrb[0].mxu0
      %v1628 = vadd.f32 %v1411, %v1627
      %v1629 = vpop.f32.mrb[0].mxu0
      %v1630 = vpop.f32.mrb[0].mxu0
      %v1631 = vadd.f32 %v1414, %v1630
      %v1632 = vpop.f32.mrb[0].mxu0
      %1633 = vmatprep.mubr.bf16.mxu0 0
      %1634 = vmatmul.mubr.bf16.gmra.mrb[0].mxu0 %v1481
      %v1635 = vpop.f32.mrb[0].mxu0
      %v1636 = vadd.f32 %v1419, %v1635
      %v1637 = vpop.f32.mrb[0].mxu0
      %v1638 = vpop.f32.mrb[0].mxu0
      %v1639 = vadd.f32 %v1422, %v1638
      %v1640 = vpop.f32.mrb[0].mxu0
      %1641 = vmatprep.mubr.bf16.mxu0 0
      %1642 = vmatmul.mubr.bf16.gmra.mrb[0].mxu0 %v1484
      %v1643 = vpop.f32.mrb[0].mxu0
      %v1644 = vadd.f32 %v1427, %v1643
      %v1645 = vpop.f32.mrb[0].mxu0
      %v1646 = vpop.f32.mrb[0].mxu0
      %v1647 = vadd.f32 %v1430, %v1646
      %v1648 = vpop.f32.mrb[0].mxu0
      %1649 = vdwg.mxu0
      %s1650 = scalar_lea.vmem [#allocation2], 16
      %v1651 = vld [vmem:[%s1650] sm:$0xff]
      %v1652 = vld [vmem:[%s1650 + $0x8] sm:$0xff]
      %v1653 = vld [vmem:[%s1650 + $0x10] sm:$0xff]
      %v1654 = vld [vmem:[%s1650 + $0x18] sm:$0xff]
      %v1655 = vld [vmem:[%s1650 + $0x20] sm:$0xff]
      %v1656 = vld [vmem:[%s1650 + $0x28] sm:$0xff]
      %v1657 = vld [vmem:[%s1650 + $0x30] sm:$0xff]
      %v1658 = vld [vmem:[%s1650 + $0x38] sm:$0xff]
      %v1659 = vld [vmem:[%s1650 + $0x40] sm:$0xff]
      %v1660 = vld [vmem:[%s1650 + $0x48] sm:$0xff]
      %v1661 = vld [vmem:[%s1650 + $0x50] sm:$0xff]
      %v1662 = vld [vmem:[%s1650 + $0x58] sm:$0xff]
      %v1663 = vld [vmem:[%s1650 + $0x60] sm:$0xff]
      %v1664 = vld [vmem:[%s1650 + $0x68] sm:$0xff]
      %v1665 = vld [vmem:[%s1650 + $0x70] sm:$0xff]
      %v1666 = vld [vmem:[%s1650 + $0x78] sm:$0xff]
      %s1667 = scalar_lea.vmem %s5, 16
      %v1668 = vld [vmem:[%s1667] sm:$0xf]
      %v1669 = vld [vmem:[%s1667 + $0x4] sm:$0x3]
      %v1672 = vunpack.c.l.b16 %v1668
      %v1673 = vunpack.c.l.b16 %v1669
      %v1674 = vpack.c.b16 %v1673, %v1672
      %v1676 = vsel %vm1219, %v1651, 0
      %v1679 = vsel %vm1219, %v1652, 0
      %v1682 = vsel %vm1219, %v1653, 0
      %v1685 = vsel %vm1219, %v1654, 0
      %v1688 = vsel %vm1219, %v1655, 0
      %v1691 = vsel %vm1219, %v1656, 0
      %v1694 = vsel %vm1219, %v1657, 0
      %v1697 = vsel %vm1219, %v1658, 0
      %v1700 = vsel %vm1219, %v1659, 0
      %v1703 = vsel %vm1219, %v1660, 0
      %v1706 = vsel %vm1219, %v1661, 0
      %v1709 = vsel %vm1219, %v1662, 0
      %v1712 = vsel %vm1219, %v1663, 0
      %v1715 = vsel %vm1219, %v1664, 0
      %v1718 = vsel %vm1219, %v1665, 0
      %v1721 = vsel %vm1219, %v1666, 0
      %v1724 = vsel %vm1268, %v1674, 0
      %1726 = vmatprep.subr.bf16.mxu0 0
      %1727 = vmatpush1.bf16.msra.mxu0 %v1724
      %1728 = vmatprep.subr.bf16.mxu0 0
      %1729 = vmatpush1.bf16.msra.mxu0 0
      %1730 = vmatprep.subr.bf16.mxu0 0
      %1731 = vmatpush1.bf16.msra.mxu0 0
      %1732 = vmatprep.subr.bf16.mxu0 0
      %1733 = vmatpush1.bf16.msra.mxu0 0
      %1734 = vmatprep.subr.bf16.mxu0 0
      %1735 = vmatpush1.bf16.msra.mxu0 0
      %1736 = vmatprep.subr.bf16.mxu0 0
      %1737 = vmatpush1.bf16.msra.mxu0 0
      %1738 = vmatprep.subr.bf16.mxu0 0
      %1739 = vmatpush1.bf16.msra.mxu0 0
      %1740 = vmatprep.subr.bf16.mxu0 0
      %1741 = vmatpush1.bf16.msra.mxu0 0
      %1742 = vmatprep.subr.bf16.mxu0 0
      %1743 = vmatpush1.bf16.msra.mxu0 0
      %1744 = vmatprep.subr.bf16.mxu0 0
      %1745 = vmatpush1.bf16.msra.mxu0 0
      %1746 = vmatprep.subr.bf16.mxu0 0
      %1747 = vmatpush1.bf16.msra.mxu0 0
      %1748 = vmatprep.subr.bf16.mxu0 0
      %1749 = vmatpush1.bf16.msra.mxu0 0
      %1750 = vmatprep.subr.bf16.mxu0 0
      %1751 = vmatpush1.bf16.msra.mxu0 0
      %1752 = vmatprep.subr.bf16.mxu0 0
      %1753 = vmatpush1.bf16.msra.mxu0 0
      %1754 = vmatprep.subr.bf16.mxu0 0
      %1755 = vmatpush1.bf16.msra.mxu0 0
      %1756 = vmatprep.subr.bf16.mxu0 0
      %1757 = vmatpush1.bf16.msra.mxu0 0
      %1758 = vmatprep.mubr.bf16.mxu0 0
      %1759 = vmatmul.mubr.bf16.gmra.mrb[0].mxu0 %v1676
      %v1760 = vpop.f32.mrb[0].mxu0
      %v1761 = vadd.f32 0.0, %v1760
      %v1762 = vpop.f32.mrb[0].mxu0
      %v1763 = vpop.f32.mrb[0].mxu0
      %v1764 = vadd.f32 0.0, %v1763
      %v1765 = vpop.f32.mrb[0].mxu0
      %1766 = vmatprep.mubr.bf16.mxu0 0
      %1767 = vmatmul.mubr.bf16.gmra.mrb[0].mxu0 %v1679
      %v1768 = vpop.f32.mrb[0].mxu0
      %v1769 = vadd.f32 0.0, %v1768
      %v1770 = vpop.f32.mrb[0].mxu0
      %v1771 = vpop.f32.mrb[0].mxu0
      %v1772 = vadd.f32 0.0, %v1771
      %v1773 = vpop.f32.mrb[0].mxu0
      %1774 = vmatprep.mubr.bf16.mxu0 0
      %1775 = vmatmul.mubr.bf16.gmra.mrb[0].mxu0 %v1682
      %v1776 = vpop.f32.mrb[0].mxu0
      %v1777 = vadd.f32 0.0, %v1776
      %v1778 = vpop.f32.mrb[0].mxu0
      %v1779 = vpop.f32.mrb[0].mxu0
      %v1780 = vadd.f32 0.0, %v1779
      %v1781 = vpop.f32.mrb[0].mxu0
      %1782 = vmatprep.mubr.bf16.mxu0 0
      %1783 = vmatmul.mubr.bf16.gmra.mrb[0].mxu0 %v1685
      %v1784 = vpop.f32.mrb[0].mxu0
      %v1785 = vadd.f32 0.0, %v1784
      %v1786 = vpop.f32.mrb[0].mxu0
      %v1787 = vpop.f32.mrb[0].mxu0
      %v1788 = vadd.f32 0.0, %v1787
      %v1789 = vpop.f32.mrb[0].mxu0
      %1790 = vmatprep.mubr.bf16.mxu0 0
      %1791 = vmatmul.mubr.bf16.gmra.mrb[0].mxu0 %v1688
      %v1792 = vpop.f32.mrb[0].mxu0
      %v1793 = vadd.f32 0.0, %v1792
      %v1794 = vpop.f32.mrb[0].mxu0
      %v1795 = vpop.f32.mrb[0].mxu0
      %v1796 = vadd.f32 0.0, %v1795
      %v1797 = vpop.f32.mrb[0].mxu0
      %1798 = vmatprep.mubr.bf16.mxu0 0
      %1799 = vmatmul.mubr.bf16.gmra.mrb[0].mxu0 %v1691
      %v1800 = vpop.f32.mrb[0].mxu0
      %v1801 = vadd.f32 0.0, %v1800
      %v1802 = vpop.f32.mrb[0].mxu0
      %v1803 = vpop.f32.mrb[0].mxu0
      %v1804 = vadd.f32 0.0, %v1803
      %v1805 = vpop.f32.mrb[0].mxu0
      %1806 = vmatprep.mubr.bf16.mxu0 0
      %1807 = vmatmul.mubr.bf16.gmra.mrb[0].mxu0 %v1694
      %v1808 = vpop.f32.mrb[0].mxu0
      %v1809 = vadd.f32 0.0, %v1808
      %v1810 = vpop.f32.mrb[0].mxu0
      %v1811 = vpop.f32.mrb[0].mxu0
      %v1812 = vadd.f32 0.0, %v1811
      %v1813 = vpop.f32.mrb[0].mxu0
      %1814 = vmatprep.mubr.bf16.mxu0 0
      %1815 = vmatmul.mubr.bf16.gmra.mrb[0].mxu0 %v1697
      %v1816 = vpop.f32.mrb[0].mxu0
      %v1817 = vadd.f32 0.0, %v1816
      %v1818 = vpop.f32.mrb[0].mxu0
      %v1819 = vpop.f32.mrb[0].mxu0
      %v1820 = vadd.f32 0.0, %v1819
      %v1821 = vpop.f32.mrb[0].mxu0
      %1822 = vmatprep.mubr.bf16.mxu0 0
      %1823 = vmatmul.mubr.bf16.gmra.mrb[0].mxu0 %v1700
      %v1824 = vpop.f32.mrb[0].mxu0
      %v1825 = vadd.f32 0.0, %v1824
      %v1826 = vpop.f32.mrb[0].mxu0
      %v1827 = vpop.f32.mrb[0].mxu0
      %v1828 = vadd.f32 0.0, %v1827
      %v1829 = vpop.f32.mrb[0].mxu0
      %1830 = vmatprep.mubr.bf16.mxu0 0
      %1831 = vmatmul.mubr.bf16.gmra.mrb[0].mxu0 %v1703
      %v1832 = vpop.f32.mrb[0].mxu0
      %v1833 = vadd.f32 0.0, %v1832
      %v1834 = vpop.f32.mrb[0].mxu0
      %v1835 = vpop.f32.mrb[0].mxu0
      %v1836 = vadd.f32 0.0, %v1835
      %v1837 = vpop.f32.mrb[0].mxu0
      %1838 = vmatprep.mubr.bf16.mxu0 0
      %1839 = vmatmul.mubr.bf16.gmra.mrb[0].mxu0 %v1706
      %v1840 = vpop.f32.mrb[0].mxu0
      %v1841 = vadd.f32 0.0, %v1840
      %v1842 = vpop.f32.mrb[0].mxu0
      %v1843 = vpop.f32.mrb[0].mxu0
      %v1844 = vadd.f32 0.0, %v1843
      %v1845 = vpop.f32.mrb[0].mxu0
      %1846 = vmatprep.mubr.bf16.mxu0 0
      %1847 = vmatmul.mubr.bf16.gmra.mrb[0].mxu0 %v1709
      %v1848 = vpop.f32.mrb[0].mxu0
      %v1849 = vadd.f32 0.0, %v1848
      %v1850 = vpop.f32.mrb[0].mxu0
      %v1851 = vpop.f32.mrb[0].mxu0
      %v1852 = vadd.f32 0.0, %v1851
      %v1853 = vpop.f32.mrb[0].mxu0
      %1854 = vmatprep.mubr.bf16.mxu0 0
      %1855 = vmatmul.mubr.bf16.gmra.mrb[0].mxu0 %v1712
      %v1856 = vpop.f32.mrb[0].mxu0
      %v1857 = vadd.f32 0.0, %v1856
      %v1858 = vpop.f32.mrb[0].mxu0
      %v1859 = vpop.f32.mrb[0].mxu0
      %v1860 = vadd.f32 0.0, %v1859
      %v1861 = vpop.f32.mrb[0].mxu0
      %1862 = vmatprep.mubr.bf16.mxu0 0
      %1863 = vmatmul.mubr.bf16.gmra.mrb[0].mxu0 %v1715
      %v1864 = vpop.f32.mrb[0].mxu0
      %v1865 = vadd.f32 0.0, %v1864
      %v1866 = vpop.f32.mrb[0].mxu0
      %v1867 = vpop.f32.mrb[0].mxu0
      %v1868 = vadd.f32 0.0, %v1867
      %v1869 = vpop.f32.mrb[0].mxu0
      %1870 = vmatprep.mubr.bf16.mxu0 0
      %1871 = vmatmul.mubr.bf16.gmra.mrb[0].mxu0 %v1718
      %v1872 = vpop.f32.mrb[0].mxu0
      %v1873 = vadd.f32 0.0, %v1872
      %v1874 = vpop.f32.mrb[0].mxu0
      %v1875 = vpop.f32.mrb[0].mxu0
      %v1876 = vadd.f32 0.0, %v1875
      %v1877 = vpop.f32.mrb[0].mxu0
      %1878 = vmatprep.mubr.bf16.mxu0 0
      %1879 = vmatmul.mubr.bf16.gmra.mrb[0].mxu0 %v1721
      %v1880 = vpop.f32.mrb[0].mxu0
      %v1881 = vadd.f32 0.0, %v1880
      %v1882 = vpop.f32.mrb[0].mxu0
      %v1883 = vpop.f32.mrb[0].mxu0
      %v1884 = vadd.f32 0.0, %v1883
      %v1885 = vpop.f32.mrb[0].mxu0
      %1886 = vdwg.mxu0
      %v1887 = vadd.f32 %v1524, %v1761
      %v1888 = vadd.f32 %v1527, %v1764
      %v1889 = vadd.f32 %v1532, %v1769
      %v1890 = vadd.f32 %v1535, %v1772
      %v1891 = vadd.f32 %v1540, %v1777
      %v1892 = vadd.f32 %v1543, %v1780
      %v1893 = vadd.f32 %v1548, %v1785
      %v1894 = vadd.f32 %v1551, %v1788
      %v1895 = vadd.f32 %v1556, %v1793
      %v1896 = vadd.f32 %v1559, %v1796
      %v1897 = vadd.f32 %v1564, %v1801
      %v1898 = vadd.f32 %v1567, %v1804
      %v1899 = vadd.f32 %v1572, %v1809
      %v1900 = vadd.f32 %v1575, %v1812
      %v1901 = vadd.f32 %v1580, %v1817
      %v1902 = vadd.f32 %v1583, %v1820
      %v1903 = vadd.f32 %v1588, %v1825
      %v1904 = vadd.f32 %v1591, %v1828
      %v1905 = vadd.f32 %v1596, %v1833
      %v1906 = vadd.f32 %v1599, %v1836
      %v1907 = vadd.f32 %v1604, %v1841
      %v1908 = vadd.f32 %v1607, %v1844
      %v1909 = vadd.f32 %v1612, %v1849
      %v1910 = vadd.f32 %v1615, %v1852
      %v1911 = vadd.f32 %v1620, %v1857
      %v1912 = vadd.f32 %v1623, %v1860
      %v1913 = vadd.f32 %v1628, %v1865
      %v1914 = vadd.f32 %v1631, %v1868
      %v1915 = vadd.f32 %v1636, %v1873
      %v1916 = vadd.f32 %v1639, %v1876
      %v1917 = vadd.f32 %v1644, %v1881
      %v1918 = vadd.f32 %v1647, %v1884
      %v1919 = vld [vmem:[%s6] sm:$0x1]
      %v1921 = vlaneseq
      %v1922 = vshrl.u32 %v1921, 7
      %v1923 = vsub.s32 0, %v1922
      %v1924 = vrot.slane %v1919, %v1923
      %v1926 = vadd.f32 %v1887, %v1924
      %v1927 = vadd.f32 %v1888, %v1924
      %v1928 = vadd.f32 %v1889, %v1924
      %v1929 = vadd.f32 %v1890, %v1924
      %v1930 = vadd.f32 %v1891, %v1924
      %v1931 = vadd.f32 %v1892, %v1924
      %v1932 = vadd.f32 %v1893, %v1924
      %v1933 = vadd.f32 %v1894, %v1924
      %v1934 = vadd.f32 %v1895, %v1924
      %v1935 = vadd.f32 %v1896, %v1924
      %v1936 = vadd.f32 %v1897, %v1924
      %v1937 = vadd.f32 %v1898, %v1924
      %v1938 = vadd.f32 %v1899, %v1924
      %v1939 = vadd.f32 %v1900, %v1924
      %v1940 = vadd.f32 %v1901, %v1924
      %v1941 = vadd.f32 %v1902, %v1924
      %v1942 = vadd.f32 %v1903, %v1924
      %v1943 = vadd.f32 %v1904, %v1924
      %v1944 = vadd.f32 %v1905, %v1924
      %v1945 = vadd.f32 %v1906, %v1924
      %v1946 = vadd.f32 %v1907, %v1924
      %v1947 = vadd.f32 %v1908, %v1924
      %v1948 = vadd.f32 %v1909, %v1924
      %v1949 = vadd.f32 %v1910, %v1924
      %v1950 = vadd.f32 %v1911, %v1924
      %v1951 = vadd.f32 %v1912, %v1924
      %v1952 = vadd.f32 %v1913, %v1924
      %v1953 = vadd.f32 %v1914, %v1924
      %v1954 = vadd.f32 %v1915, %v1924
      %v1955 = vadd.f32 %v1916, %v1924
      %v1956 = vadd.f32 %v1917, %v1924
      %v1957 = vadd.f32 %v1918, %v1924
      %vm1958 = vcmask 64512
      %v1959 = vsel %vm1958, %v1926, 0.0
      %v1960 = vsel %vm1958, %v1927, 0.0
      %v1961 = vadd.f32 %v1959, %v1960
      %v1962 = vsel %vm1958, %v1928, 0.0
      %v1963 = vadd.f32 %v1961, %v1962
      %v1964 = vsel %vm1958, %v1929, 0.0
      %v1965 = vadd.f32 %v1963, %v1964
      %v1966 = vsel %vm1958, %v1930, 0.0
      %v1967 = vadd.f32 %v1965, %v1966
      %v1968 = vsel %vm1958, %v1931, 0.0
      %v1969 = vadd.f32 %v1967, %v1968
      %v1970 = vsel %vm1958, %v1932, 0.0
      %v1971 = vadd.f32 %v1969, %v1970
      %v1972 = vsel %vm1958, %v1933, 0.0
      %v1973 = vadd.f32 %v1971, %v1972
      %v1974 = vsel %vm1958, %v1934, 0.0
      %v1975 = vadd.f32 %v1973, %v1974
      %v1976 = vsel %vm1958, %v1935, 0.0
      %v1977 = vadd.f32 %v1975, %v1976
      %v1978 = vsel %vm1958, %v1936, 0.0
      %v1979 = vadd.f32 %v1977, %v1978
      %v1980 = vsel %vm1958, %v1937, 0.0
      %v1981 = vadd.f32 %v1979, %v1980
      %v1982 = vsel %vm1958, %v1938, 0.0
      %v1983 = vadd.f32 %v1981, %v1982
      %v1984 = vsel %vm1958, %v1939, 0.0
      %v1985 = vadd.f32 %v1983, %v1984
      %v1986 = vsel %vm1958, %v1940, 0.0
      %v1987 = vadd.f32 %v1985, %v1986
      %v1988 = vsel %vm1958, %v1941, 0.0
      %v1989 = vadd.f32 %v1987, %v1988
      %v1990 = vsel %vm1958, %v1942, 0.0
      %v1991 = vadd.f32 %v1989, %v1990
      %v1992 = vsel %vm1958, %v1943, 0.0
      %v1993 = vadd.f32 %v1991, %v1992
      %v1994 = vsel %vm1958, %v1944, 0.0
      %v1995 = vadd.f32 %v1993, %v1994
      %v1996 = vsel %vm1958, %v1945, 0.0
      %v1997 = vadd.f32 %v1995, %v1996
      %v1998 = vsel %vm1958, %v1946, 0.0
      %v1999 = vadd.f32 %v1997, %v1998
      %v2000 = vsel %vm1958, %v1947, 0.0
      %v2001 = vadd.f32 %v1999, %v2000
      %v2002 = vsel %vm1958, %v1948, 0.0
      %v2003 = vadd.f32 %v2001, %v2002
      %v2004 = vsel %vm1958, %v1949, 0.0
      %v2005 = vadd.f32 %v2003, %v2004
      %v2006 = vsel %vm1958, %v1950, 0.0
      %v2007 = vadd.f32 %v2005, %v2006
      %v2008 = vsel %vm1958, %v1951, 0.0
      %v2009 = vadd.f32 %v2007, %v2008
      %v2010 = vsel %vm1958, %v1952, 0.0
      %v2011 = vadd.f32 %v2009, %v2010
      %v2012 = vsel %vm1958, %v1953, 0.0
      %v2013 = vadd.f32 %v2011, %v2012
      %v2014 = vsel %vm1958, %v1954, 0.0
      %v2015 = vadd.f32 %v2013, %v2014
      %v2016 = vsel %vm1958, %v1955, 0.0
      %v2017 = vadd.f32 %v2015, %v2016
      %v2018 = vsel %vm1958, %v1956, 0.0
      %v2019 = vadd.f32 %v2017, %v2018
      %v2020 = vsel %vm1958, %v1957, 0.0
      %v2021 = vadd.f32 %v2019, %v2020
      %v2022 = vrot.slane %v2021, 4
      %v2023 = vadd.f32 %v2021, %v2022
      %v2024 = vrot.slane %v2023, 2
      %v2025 = vadd.f32 %v2023, %v2024
      %v2026 = vrot.slane %v2025, 1
      %v2027 = vadd.f32 %v2025, %v2026
      %vm2028 = vcmask 57344
      %2029 = vst.msk [vmem:[%s492] sm:$0x1] %vm2028, %v2027
      %v2030 = vmul.f32 %v1926, %v1926
      %v2031 = vmul.f32 %v1927, %v1927
      %v2032 = vmul.f32 %v1928, %v1928
      %v2033 = vmul.f32 %v1929, %v1929
      %v2034 = vmul.f32 %v1930, %v1930
      %v2035 = vmul.f32 %v1931, %v1931
      %v2036 = vmul.f32 %v1932, %v1932
      %v2037 = vmul.f32 %v1933, %v1933
      %v2038 = vmul.f32 %v1934, %v1934
      %v2039 = vmul.f32 %v1935, %v1935
      %v2040 = vmul.f32 %v1936, %v1936
      %v2041 = vmul.f32 %v1937, %v1937
      %v2042 = vmul.f32 %v1938, %v1938
      %v2043 = vmul.f32 %v1939, %v1939
      %v2044 = vmul.f32 %v1940, %v1940
      %v2045 = vmul.f32 %v1941, %v1941
      %v2046 = vmul.f32 %v1942, %v1942
      %v2047 = vmul.f32 %v1943, %v1943
      %v2048 = vmul.f32 %v1944, %v1944
      %v2049 = vmul.f32 %v1945, %v1945
      %v2050 = vmul.f32 %v1946, %v1946
      %v2051 = vmul.f32 %v1947, %v1947
      %v2052 = vmul.f32 %v1948, %v1948
      %v2053 = vmul.f32 %v1949, %v1949
      %v2054 = vmul.f32 %v1950, %v1950
      %v2055 = vmul.f32 %v1951, %v1951
      %v2056 = vmul.f32 %v1952, %v1952
      %v2057 = vmul.f32 %v1953, %v1953
      %v2058 = vmul.f32 %v1954, %v1954
      %v2059 = vmul.f32 %v1955, %v1955
      %v2060 = vmul.f32 %v1956, %v1956
      %v2061 = vmul.f32 %v1957, %v1957
      %v2062 = vsel %vm1958, %v2030, 0.0
      %v2063 = vsel %vm1958, %v2031, 0.0
      %v2064 = vadd.f32 %v2062, %v2063
      %v2065 = vsel %vm1958, %v2032, 0.0
      %v2066 = vadd.f32 %v2064, %v2065
      %v2067 = vsel %vm1958, %v2033, 0.0
      %v2068 = vadd.f32 %v2066, %v2067
      %v2069 = vsel %vm1958, %v2034, 0.0
      %v2070 = vadd.f32 %v2068, %v2069
      %v2071 = vsel %vm1958, %v2035, 0.0
      %v2072 = vadd.f32 %v2070, %v2071
      %v2073 = vsel %vm1958, %v2036, 0.0
      %v2074 = vadd.f32 %v2072, %v2073
      %v2075 = vsel %vm1958, %v2037, 0.0
      %v2076 = vadd.f32 %v2074, %v2075
      %v2077 = vsel %vm1958, %v2038, 0.0
      %v2078 = vadd.f32 %v2076, %v2077
      %v2079 = vsel %vm1958, %v2039, 0.0
      %v2080 = vadd.f32 %v2078, %v2079
      %v2081 = vsel %vm1958, %v2040, 0.0
      %v2082 = vadd.f32 %v2080, %v2081
      %v2083 = vsel %vm1958, %v2041, 0.0
      %v2084 = vadd.f32 %v2082, %v2083
      %v2085 = vsel %vm1958, %v2042, 0.0
      %v2086 = vadd.f32 %v2084, %v2085
      %v2087 = vsel %vm1958, %v2043, 0.0
      %v2088 = vadd.f32 %v2086, %v2087
      %v2089 = vsel %vm1958, %v2044, 0.0
      %v2090 = vadd.f32 %v2088, %v2089
      %v2091 = vsel %vm1958, %v2045, 0.0
      %v2092 = vadd.f32 %v2090, %v2091
      %v2093 = vsel %vm1958, %v2046, 0.0
      %v2094 = vadd.f32 %v2092, %v2093
      %v2095 = vsel %vm1958, %v2047, 0.0
      %v2096 = vadd.f32 %v2094, %v2095
      %v2097 = vsel %vm1958, %v2048, 0.0
      %v2098 = vadd.f32 %v2096, %v2097
      %v2099 = vsel %vm1958, %v2049, 0.0
      %v2100 = vadd.f32 %v2098, %v2099
      %v2101 = vsel %vm1958, %v2050, 0.0
      %v2102 = vadd.f32 %v2100, %v2101
      %v2103 = vsel %vm1958, %v2051, 0.0
      %v2104 = vadd.f32 %v2102, %v2103
      %v2105 = vsel %vm1958, %v2052, 0.0
      %v2106 = vadd.f32 %v2104, %v2105
      %v2107 = vsel %vm1958, %v2053, 0.0
      %v2108 = vadd.f32 %v2106, %v2107
      %v2109 = vsel %vm1958, %v2054, 0.0
      %v2110 = vadd.f32 %v2108, %v2109
      %v2111 = vsel %vm1958, %v2055, 0.0
      %v2112 = vadd.f32 %v2110, %v2111
      %v2113 = vsel %vm1958, %v2056, 0.0
      %v2114 = vadd.f32 %v2112, %v2113
      %v2115 = vsel %vm1958, %v2057, 0.0
      %v2116 = vadd.f32 %v2114, %v2115
      %v2117 = vsel %vm1958, %v2058, 0.0
      %v2118 = vadd.f32 %v2116, %v2117
      %v2119 = vsel %vm1958, %v2059, 0.0
      %v2120 = vadd.f32 %v2118, %v2119
      %v2121 = vsel %vm1958, %v2060, 0.0
      %v2122 = vadd.f32 %v2120, %v2121
      %v2123 = vsel %vm1958, %v2061, 0.0
      %v2124 = vadd.f32 %v2122, %v2123
      %v2125 = vrot.slane %v2124, 4
      %v2126 = vadd.f32 %v2124, %v2125
      %v2127 = vrot.slane %v2126, 2
      %v2128 = vadd.f32 %v2126, %v2127
      %v2129 = vrot.slane %v2128, 1
      %v2130 = vadd.f32 %v2128, %v2129
      %2131 = vst.msk [vmem:[%s492 + $0x1] sm:$0x1] %vm2028, %v2130
      %v2132 = vpack.c.bf16 %v1927, %v1926
      %v2133 = vpack.c.bf16 %v1929, %v1928
      %v2134 = vpack.c.bf16 %v1931, %v1930
      %v2135 = vpack.c.bf16 %v1933, %v1932
      %v2136 = vpack.c.bf16 %v1935, %v1934
      %v2137 = vpack.c.bf16 %v1937, %v1936
      %v2138 = vpack.c.bf16 %v1939, %v1938
      %v2139 = vpack.c.bf16 %v1941, %v1940
      %v2140 = vpack.c.bf16 %v1943, %v1942
      %v2141 = vpack.c.bf16 %v1945, %v1944
      %v2142 = vpack.c.bf16 %v1947, %v1946
      %v2143 = vpack.c.bf16 %v1949, %v1948
      %v2144 = vpack.c.bf16 %v1951, %v1950
      %v2145 = vpack.c.bf16 %v1953, %v1952
      %v2146 = vpack.c.bf16 %v1955, %v1954
      %v2147 = vpack.c.bf16 %v1957, %v1956
      %v2164 = vunpack.c.l.b16 %v2132
      %v2165 = vunpack.c.h.b16 %v2132
      %v2166 = vunpack.c.l.b16 %v2133
      %v2167 = vunpack.c.h.b16 %v2133
      %v2168 = vunpack.c.l.b16 %v2134
      %v2169 = vunpack.c.h.b16 %v2134
      %v2170 = vunpack.c.l.b16 %v2135
      %v2171 = vunpack.c.h.b16 %v2135
      %v2172 = vunpack.c.l.b16 %v2136
      %v2173 = vunpack.c.h.b16 %v2136
      %v2174 = vunpack.c.l.b16 %v2137
      %v2175 = vunpack.c.h.b16 %v2137
      %v2176 = vunpack.c.l.b16 %v2138
      %v2177 = vunpack.c.h.b16 %v2138
      %v2178 = vunpack.c.l.b16 %v2139
      %v2179 = vunpack.c.h.b16 %v2139
      %v2180 = vunpack.c.l.b16 %v2140
      %v2181 = vunpack.c.h.b16 %v2140
      %v2182 = vunpack.c.l.b16 %v2141
      %v2183 = vunpack.c.h.b16 %v2141
      %v2184 = vunpack.c.l.b16 %v2142
      %v2185 = vunpack.c.h.b16 %v2142
      %v2186 = vunpack.c.l.b16 %v2143
      %v2187 = vunpack.c.h.b16 %v2143
      %v2188 = vunpack.c.l.b16 %v2144
      %v2189 = vunpack.c.h.b16 %v2144
      %v2190 = vunpack.c.l.b16 %v2145
      %v2191 = vunpack.c.h.b16 %v2145
      %v2192 = vunpack.c.l.b16 %v2146
      %v2193 = vunpack.c.h.b16 %v2146
      %v2194 = vunpack.c.l.b16 %v2147
      %v2195 = vunpack.c.h.b16 %v2147
      %v2196 = vpack.c.b16 %v2164, %v2164
      %v2197 = vpack.c.b16 %v2165, %v2165
      %v2198 = vpack.c.b16 %v2166, %v2166
      %v2199 = vpack.c.b16 %v2167, %v2167
      %v2200 = vpack.c.b16 %v2168, %v2168
      %v2201 = vpack.c.b16 %v2169, %v2169
      %v2202 = vpack.c.b16 %v2170, %v2170
      %v2203 = vpack.c.b16 %v2171, %v2171
      %v2204 = vpack.c.b16 %v2172, %v2172
      %v2205 = vpack.c.b16 %v2173, %v2173
      %v2206 = vpack.c.b16 %v2174, %v2174
      %v2207 = vpack.c.b16 %v2175, %v2175
      %v2208 = vpack.c.b16 %v2176, %v2176
      %v2209 = vpack.c.b16 %v2177, %v2177
      %v2210 = vpack.c.b16 %v2178, %v2178
      %v2211 = vpack.c.b16 %v2179, %v2179
      %v2212 = vpack.c.b16 %v2180, %v2180
      %v2213 = vpack.c.b16 %v2181, %v2181
      %v2214 = vpack.c.b16 %v2182, %v2182
      %v2215 = vpack.c.b16 %v2183, %v2183
      %v2216 = vpack.c.b16 %v2184, %v2184
      %v2217 = vpack.c.b16 %v2185, %v2185
      %v2218 = vpack.c.b16 %v2186, %v2186
      %v2219 = vpack.c.b16 %v2187, %v2187
      %v2220 = vpack.c.b16 %v2188, %v2188
      %v2221 = vpack.c.b16 %v2189, %v2189
      %v2222 = vpack.c.b16 %v2190, %v2190
      %v2223 = vpack.c.b16 %v2191, %v2191
      %v2224 = vpack.c.b16 %v2192, %v2192
      %v2225 = vpack.c.b16 %v2193, %v2193
      %v2226 = vpack.c.b16 %v2194, %v2194
      %v2227 = vpack.c.b16 %v2195, %v2195
      %vm2260 = vcmask 60416
      %2261 = vst.msk [vmem:[%s484] sm:$0xf] %vm2260, %v2196
      %2262 = vst.msk [vmem:[%s484 + $0x4] sm:$0xf] %vm2260, %v2197
      %2263 = vst.msk [vmem:[%s484 + $0x8] sm:$0xf] %vm2260, %v2198
      %2264 = vst.msk [vmem:[%s484 + $0xc] sm:$0xf] %vm2260, %v2199
      %2265 = vst.msk [vmem:[%s484 + $0x10] sm:$0xf] %vm2260, %v2200
      %2266 = vst.msk [vmem:[%s484 + $0x14] sm:$0xf] %vm2260, %v2201
      %2267 = vst.msk [vmem:[%s484 + $0x18] sm:$0xf] %vm2260, %v2202
      %2268 = vst.msk [vmem:[%s484 + $0x1c] sm:$0xf] %vm2260, %v2203
      %2269 = vst.msk [vmem:[%s484 + $0x20] sm:$0xf] %vm2260, %v2204
      %2270 = vst.msk [vmem:[%s484 + $0x24] sm:$0xf] %vm2260, %v2205
      %2271 = vst.msk [vmem:[%s484 + $0x28] sm:$0xf] %vm2260, %v2206
      %2272 = vst.msk [vmem:[%s484 + $0x2c] sm:$0xf] %vm2260, %v2207
      %2273 = vst.msk [vmem:[%s484 + $0x30] sm:$0xf] %vm2260, %v2208
      %2274 = vst.msk [vmem:[%s484 + $0x34] sm:$0xf] %vm2260, %v2209
      %2275 = vst.msk [vmem:[%s484 + $0x38] sm:$0xf] %vm2260, %v2210
      %2276 = vst.msk [vmem:[%s484 + $0x3c] sm:$0xf] %vm2260, %v2211
      %2277 = vst.msk [vmem:[%s484 + $0x40] sm:$0xf] %vm2260, %v2212
      %2278 = vst.msk [vmem:[%s484 + $0x44] sm:$0xf] %vm2260, %v2213
      %2279 = vst.msk [vmem:[%s484 + $0x48] sm:$0xf] %vm2260, %v2214
      %2280 = vst.msk [vmem:[%s484 + $0x4c] sm:$0xf] %vm2260, %v2215
      %2281 = vst.msk [vmem:[%s484 + $0x50] sm:$0xf] %vm2260, %v2216
      %2282 = vst.msk [vmem:[%s484 + $0x54] sm:$0xf] %vm2260, %v2217
      %2283 = vst.msk [vmem:[%s484 + $0x58] sm:$0xf] %vm2260, %v2218
      %2284 = vst.msk [vmem:[%s484 + $0x5c] sm:$0xf] %vm2260, %v2219
      %2285 = vst.msk [vmem:[%s484 + $0x60] sm:$0xf] %vm2260, %v2220
      %2286 = vst.msk [vmem:[%s484 + $0x64] sm:$0xf] %vm2260, %v2221
      %2287 = vst.msk [vmem:[%s484 + $0x68] sm:$0xf] %vm2260, %v2222
      %2288 = vst.msk [vmem:[%s484 + $0x6c] sm:$0xf] %vm2260, %v2223
      %2289 = vst.msk [vmem:[%s484 + $0x70] sm:$0xf] %vm2260, %v2224
      %2290 = vst.msk [vmem:[%s484 + $0x74] sm:$0xf] %vm2260, %v2225
      %2291 = vst.msk [vmem:[%s484 + $0x78] sm:$0xf] %vm2260, %v2226
      %2292 = vst.msk [vmem:[%s484 + $0x7c] sm:$0xf] %vm2260, %v2227
      %s2293 = smul.u32 16, %s25
      %p2294 = scmp.lt.s32.totalorder %s24, 1
      %s2295 = scalar_select %p2294, %s24, 1
      %p2296 = scmp.lt.s32.totalorder %s2293, 15
      %s2297 = scalar_select %p2296, %s2293, 15
      %s2298 = smul.addr %s2297, 2
      %s2299 = smul.addr %s2295, 32
      %s2300 = sadd.s32 %s2298, %s2299
      %s2301 = smul.addr %s2300, 4
      %s2302 = scalar_lea.vmem %s7, %s2301
      %p2303 = scmp.lt.s32.totalorder %s24, 1
      %s2304 = scalar_select %p2303, %s24, 1
      %p2305 = scmp.lt.s32.totalorder %s25, 0
      %s2306 = scalar_select %p2305, %s25, 0
      %s2307 = sadd.s32 %s2306, %s2304
      %s2308 = smul.addr %s2307, 2
      %s2309 = scalar_lea.vmem %s8, %s2308
      // Predicated region
      $region49: #{double_conv_forward.3} parent=47 // pred_check
        %p2310 = pneg %p236
      $region50: #{double_conv_forward.3} parent=47 // pred_check_branch
        %2312 = sbr.rel (%p2310) target = $region52
      $region51: #{double_conv_forward.3} parent=47 // pred_region
        %s2313 = smul.u32 16, %s25
      $region52: #{double_conv_forward.3} parent=47 // pred_fallthru
        _
      // Predicated region
      $region53: #{double_conv_forward.3} parent=47 // pred_check
        %p2314 = pneg %p264
      $region54: #{double_conv_forward.3} parent=47 // pred_check_branch
        %2316 = sbr.rel (%p2314) target = $region56
      $region55: #{double_conv_forward.3} parent=47 // pred_region
        _
      $region56: #{double_conv_forward.3} parent=47 // pred_fallthru
        _
    $region48: #{double_conv_forward.3} parent=5 // pred_fallthru
      _
    %p2317 = scmp.le.s32.totalorder 2, %s15
    // Predicated region
    $region57: #{double_conv_forward.3} parent=5 // pred_check
      %p2318 = pneg %p2317
    $region58: #{double_conv_forward.3} parent=5 // pred_check_branch
      %2320 = sbr.rel (%p2318) target = $region60
    $region59: #{double_conv_forward.3} parent=5 // pred_region
      %s2321 = ssub.s32 %s15, 2
      // Predicated region
      $region61: #{double_conv_forward.3} parent=59 // pred_check
        %p2322 = pneg %p242
      $region62: #{double_conv_forward.3} parent=59 // pred_check_branch
        %2324 = sbr.rel (%p2322) target = $region64
      $region63: #{double_conv_forward.3} parent=59 // pred_region
        %s2325 = smul.u32 16, %s27
        %p2326 = scmp.lt.s32.totalorder %s26, 1
        %s2327 = scalar_select %p2326, %s26, 1
        %p2328 = scmp.lt.s32.totalorder %s2325, 15
        %s2329 = scalar_select %p2328, %s2325, 15
        %s2330 = smul.addr %s2329, 2
        %s2331 = smul.addr %s2327, 32
        %s2332 = sadd.s32 %s2330, %s2331
        %s2333 = smul.addr %s2332, 4
        %s2334 = scalar_lea.vmem %s7, %s2333
      $region64: #{double_conv_forward.3} parent=59 // pred_fallthru
        _
      // Predicated region
      $region65: #{double_conv_forward.3} parent=59 // pred_check
        %p2335 = pneg %p270
      $region66: #{double_conv_forward.3} parent=59 // pred_check_branch
        %2337 = sbr.rel (%p2335) target = $region68
      $region67: #{double_conv_forward.3} parent=59 // pred_region
        %p2338 = scmp.lt.s32.totalorder %s26, 1
        %s2339 = scalar_select %p2338, %s26, 1
        %p2340 = scmp.lt.s32.totalorder %s27, 0
        %s2341 = scalar_select %p2340, %s27, 0
        %s2342 = sadd.s32 %s2341, %s2339
        %s2343 = smul.addr %s2342, 2
        %s2344 = scalar_lea.vmem %s8, %s2343
      $region68: #{double_conv_forward.3} parent=59 // pred_fallthru
        _
    $region60: #{double_conv_forward.3} parent=5 // pred_fallthru
      _
  $region6: #{double_conv_forward.3} parent=0 // loop_footer
    %s19 = sadd.s32 1, %s15
  $region7: #{double_conv_forward.3} parent=0 // loop_footer_branch
    %14 = sbr.rel target = $region3
  $region8: #{double_conv_forward.3} parent=0 // loop_exit
    _

// kernel: double_conv_forward.4
$region0: #{double_conv_forward.4}
  #allocation0 [shape = 'u32[]', space=smem, size = 0x4, offset = 0x4, fixed_abs, tag = 'smem constant byte address 0x4 - core index']
  #allocation1 [shape = 'u32[144,128]{1,0:T(1,128)}', space=vmem, size = 0x12000, scoped, tag = 'internal scratch']
  #allocation2 [shape = 'bf16[18,16,24]{2,1,0:T(16,128)(2,1)}', space=vmem, size = 0x12000, scoped, tag = 'scratch operand']
  %s0 = inlined_call_operand.vmem [shape: bf16[2,16,16,8], index: 0, kind: input, shape index: {}, may-alias: {0,1,2}]
  %s1 = inlined_call_operand.vmem [shape: bf16[2,16,16,8], index: 1, kind: input, shape index: {}, may-alias: {0,1,2}]
  %s2 = inlined_call_operand.vmem [shape: bf16[2,16,16,8], index: 2, kind: input, shape index: {}, may-alias: {0,1,2}]
  %s3 = inlined_call_operand.vmem [shape: f32[1,8], index: 3, kind: input, shape index: {}]
  %s4 = inlined_call_operand.vmem [shape: f32[1,8], index: 4, kind: input, shape index: {}]
  %s5 = inlined_call_operand.vmem [shape: bf16[3,24,8], index: 5, kind: input, shape index: {}]
  %s6 = inlined_call_operand.vmem [shape: f32[1,8], index: 6, kind: input, shape index: {}]
  %s7 = inlined_call_operand.vmem [shape: bf16[2,16,16,8], index: 7, kind: output, shape index: {0}]
  %s8 = inlined_call_operand.vmem [shape: f32[2,1,2,8], index: 8, kind: output, shape index: {1}]
  %9 = xla_tuple %s7, %s8
  %s10 = sld [smem:[#allocation0]]
  $region69: #{double_conv_forward.4} parent=0
    _
  %s12 = ssub.s32 1, %s10
  %s13 = scalar_select 0, %s12, %s10
  loop: start=0, step=1, limit=4
  $region2: #{double_conv_forward.4} parent=0 // loop_pre_header
    _
  $region3: #{double_conv_forward.4} parent=0 // loop_header
    %s15 = sphi 0, %s19
    %p16 = scmp.ge.s32.totalorder %s15, 4
    %s22 = sphi 0, %s34
    %s23 = sphi 0, %s30
    %s24 = sphi 0, %s22
    %s25 = sphi 0, %s23
    %s26 = sphi 0, %s24
    %s27 = sphi 0, %s25
    %s39 = sphi 0, %s41
    %s42 = sphi 0, %s39
    %s43 = sphi 0, %s42
    %s59 = sphi 0, %s43
    %s75 = sphi 0, %s77
    %s78 = sphi 0, %s75
    %s79 = sphi 0, %s78
    %s95 = sphi 0, %s79
    %s111 = sphi 0, %s113
    %s114 = sphi 0, %s111
    %s115 = sphi 0, %s114
    %s131 = sphi 0, %s115
    %s135 = sphi 0, %s135
    %s137 = sphi 0, %s135
    %s138 = sphi 0, %s137
    %s152 = sphi 0, %s138
    %s156 = sphi 0, %s156
    %s158 = sphi 0, %s156
    %s159 = sphi 0, %s158
    %s173 = sphi 0, %s159
    %s177 = sphi 0, %s177
    %s179 = sphi 0, %s177
    %s180 = sphi 0, %s179
    %s194 = sphi 0, %s180
    %s198 = sphi 0, %s198
    %s200 = sphi 0, %s198
    %s201 = sphi 0, %s200
    %s215 = sphi 0, %s201
    %s223 = sphi 0, %s225
    %s226 = sphi 0, %s223
    %s227 = sphi 0, %s226
    %s243 = sphi 0, %s227
    %s251 = sphi 0, %s253
    %s254 = sphi 0, %s251
    %s255 = sphi 0, %s254
    %s271 = sphi 0, %s255
  $region4: #{double_conv_forward.4} parent=0 // loop_header_branch
    %18 = sbr.rel (%p16) target = $region8
  $region5: #{double_conv_forward.4} parent=0 // loop_body
    %s20 = ssub.s32 %s15, 1
    %s21 = ssub.s32 %s15, 2
    %s28 = sadd.s32 1, %s23
    %p29 = scmp.ge.s32.totalorder %s28, 1
    %s30 = scalar_select %p29, 0, %s28
    %s31 = sadd.s32 1, %s22
    %s32 = scalar_select %p29, %s31, %s22
    %p33 = scmp.ge.s32.totalorder %s32, 2
    %s34 = scalar_select %p33, 0, %s32
    %s35 = ssub.s32 %s22, %s34
    %s36 = ssub.s32 %s23, %s30
    %s37 = sor.u32 %s35, %s36
    %p38 = scmp.eq.s32.totalorder %s37, 0
    %s40 = sadd.s32 %s39, 1
    %s41 = scalar_select %p38, %s39, %s40
    %p44 = pneg %p38
    %p45 = scmp.eq.s32.totalorder %s15, 1
    %p46 = por %p44, %p45
    %p47 = scmp.ne.s32.totalorder %s39, %s42
    %p48 = scmp.eq.s32.totalorder %s15, 0
    %p49 = por %p47, %p48
    %p50 = scmp.ne.s32.totalorder %s39, %s42
    %p51 = scmp.eq.s32.totalorder %s20, 1
    %p52 = por %p50, %p51
    %p53 = scmp.ne.s32.totalorder %s42, %s43
    %p54 = scmp.eq.s32.totalorder %s20, 0
    %p55 = por %p53, %p54
    %p56 = scmp.ne.s32.totalorder %s42, %s43
    %p57 = scmp.eq.s32.totalorder %s21, 1
    %p58 = por %p56, %p57
    %p60 = scmp.ne.s32.totalorder %s43, %s59
    %p61 = scmp.eq.s32.totalorder %s21, 0
    %p62 = por %p60, %p61
    %s63 = smul.u32 %s23, 16
    %s64 = ssub.s32 %s63, 1
    %p65 = scmp.gt.s32.totalorder %s64, 0
    %s66 = scalar_select %p65, %s64, 0
    %s67 = smul.u32 %s30, 16
    %s68 = ssub.s32 %s67, 1
    %p69 = scmp.gt.s32.totalorder %s68, 0
    %s70 = scalar_select %p69, %s68, 0
    %s71 = ssub.s32 %s22, %s34
    %s72 = ssub.s32 %s66, %s70
    %s73 = sor.u32 %s71, %s72
    %p74 = scmp.eq.s32.totalorder %s73, 0
    %s76 = sadd.s32 %s75, 1
    %s77 = scalar_select %p74, %s75, %s76
    %p80 = pneg %p74
    %p81 = scmp.eq.s32.totalorder %s15, 1
    %p82 = por %p80, %p81
    %p83 = scmp.ne.s32.totalorder %s75, %s78
    %p84 = scmp.eq.s32.totalorder %s15, 0
    %p85 = por %p83, %p84
    %p86 = scmp.ne.s32.totalorder %s75, %s78
    %p87 = scmp.eq.s32.totalorder %s20, 1
    %p88 = por %p86, %p87
    %p89 = scmp.ne.s32.totalorder %s78, %s79
    %p90 = scmp.eq.s32.totalorder %s20, 0
    %p91 = por %p89, %p90
    %p92 = scmp.ne.s32.totalorder %s78, %s79
    %p93 = scmp.eq.s32.totalorder %s21, 1
    %p94 = por %p92, %p93
    %p96 = scmp.ne.s32.totalorder %s79, %s95
    %p97 = scmp.eq.s32.totalorder %s21, 0
    %p98 = por %p96, %p97
    %s99 = smul.u32 %s23, 16
    %s100 = sadd.s32 %s99, 16
    %p101 = scmp.lt.s32.totalorder %s100, 15
    %s102 = scalar_select %p101, %s100, 15
    %s103 = smul.u32 %s30, 16
    %s104 = sadd.s32 %s103, 16
    %p105 = scmp.lt.s32.totalorder %s104, 15
    %s106 = scalar_select %p105, %s104, 15
    %s107 = ssub.s32 %s22, %s34
    %s108 = ssub.s32 %s102, %s106
    %s109 = sor.u32 %s107, %s108
    %p110 = scmp.eq.s32.totalorder %s109, 0
    %s112 = sadd.s32 %s111, 1
    %s113 = scalar_select %p110, %s111, %s112
    %p116 = pneg %p110
    %p117 = scmp.eq.s32.totalorder %s15, 1
    %p118 = por %p116, %p117
    %p119 = scmp.ne.s32.totalorder %s111, %s114
    %p120 = scmp.eq.s32.totalorder %s15, 0
    %p121 = por %p119, %p120
    %p122 = scmp.ne.s32.totalorder %s111, %s114
    %p123 = scmp.eq.s32.totalorder %s20, 1
    %p124 = por %p122, %p123
    %p125 = scmp.ne.s32.totalorder %s114, %s115
    %p126 = scmp.eq.s32.totalorder %s20, 0
    %p127 = por %p125, %p126
    %p128 = scmp.ne.s32.totalorder %s114, %s115
    %p129 = scmp.eq.s32.totalorder %s21, 1
    %p130 = por %p128, %p129
    %p132 = scmp.ne.s32.totalorder %s115, %s131
    %p133 = scmp.eq.s32.totalorder %s21, 0
    %p134 = por %p132, %p133
    %s136 = sadd.s32 %s135, 1
    %p139 = scmp.eq.s32.totalorder %s15, 1
    %p140 = scmp.ne.s32.totalorder %s135, %s137
    %p141 = scmp.eq.s32.totalorder %s15, 0
    %p142 = por %p140, %p141
    %p143 = scmp.ne.s32.totalorder %s135, %s137
    %p144 = scmp.eq.s32.totalorder %s20, 1
    %p145 = por %p143, %p144
    %p146 = scmp.ne.s32.totalorder %s137, %s138
    %p147 = scmp.eq.s32.totalorder %s20, 0
    %p148 = por %p146, %p147
    %p149 = scmp.ne.s32.totalorder %s137, %s138
    %p150 = scmp.eq.s32.totalorder %s21, 1
    %p151 = por %p149, %p150
    %p153 = scmp.ne.s32.totalorder %s138, %s152
    %p154 = scmp.eq.s32.totalorder %s21, 0
    %p155 = por %p153, %p154
    %s157 = sadd.s32 %s156, 1
    %p160 = scmp.eq.s32.totalorder %s15, 1
    %p161 = scmp.ne.s32.totalorder %s156, %s158
    %p162 = scmp.eq.s32.totalorder %s15, 0
    %p163 = por %p161, %p162
    %p164 = scmp.ne.s32.totalorder %s156, %s158
    %p165 = scmp.eq.s32.totalorder %s20, 1
    %p166 = por %p164, %p165
    %p167 = scmp.ne.s32.totalorder %s158, %s159
    %p168 = scmp.eq.s32.totalorder %s20, 0
    %p169 = por %p167, %p168
    %p170 = scmp.ne.s32.totalorder %s158, %s159
    %p171 = scmp.eq.s32.totalorder %s21, 1
    %p172 = por %p170, %p171
    %p174 = scmp.ne.s32.totalorder %s159, %s173
    %p175 = scmp.eq.s32.totalorder %s21, 0
    %p176 = por %p174, %p175
    %s178 = sadd.s32 %s177, 1
    %p181 = scmp.eq.s32.totalorder %s15, 1
    %p182 = scmp.ne.s32.totalorder %s177, %s179
    %p183 = scmp.eq.s32.totalorder %s15, 0
    %p184 = por %p182, %p183
    %p185 = scmp.ne.s32.totalorder %s177, %s179
    %p186 = scmp.eq.s32.totalorder %s20, 1
    %p187 = por %p185, %p186
    %p188 = scmp.ne.s32.totalorder %s179, %s180
    %p189 = scmp.eq.s32.totalorder %s20, 0
    %p190 = por %p188, %p189
    %p191 = scmp.ne.s32.totalorder %s179, %s180
    %p192 = scmp.eq.s32.totalorder %s21, 1
    %p193 = por %p191, %p192
    %p195 = scmp.ne.s32.totalorder %s180, %s194
    %p196 = scmp.eq.s32.totalorder %s21, 0
    %p197 = por %p195, %p196
    %s199 = sadd.s32 %s198, 1
    %p202 = scmp.eq.s32.totalorder %s15, 1
    %p203 = scmp.ne.s32.totalorder %s198, %s200
    %p204 = scmp.eq.s32.totalorder %s15, 0
    %p205 = por %p203, %p204
    %p206 = scmp.ne.s32.totalorder %s198, %s200
    %p207 = scmp.eq.s32.totalorder %s20, 1
    %p208 = por %p206, %p207
    %p209 = scmp.ne.s32.totalorder %s200, %s201
    %p210 = scmp.eq.s32.totalorder %s20, 0
    %p211 = por %p209, %p210
    %p212 = scmp.ne.s32.totalorder %s200, %s201
    %p213 = scmp.eq.s32.totalorder %s21, 1
    %p214 = por %p212, %p213
    %p216 = scmp.ne.s32.totalorder %s201, %s215
    %p217 = scmp.eq.s32.totalorder %s21, 0
    %p218 = por %p216, %p217
    %s219 = ssub.s32 %s22, %s34
    %s220 = ssub.s32 %s23, %s30
    %s221 = sor.u32 %s219, %s220
    %p222 = scmp.eq.s32.totalorder %s221, 0
    %s224 = sadd.s32 %s223, 1
    %s225 = scalar_select %p222, %s223, %s224
    %p228 = pneg %p222
    %p229 = scmp.eq.s32.totalorder %s15, 1
    %p230 = por %p228, %p229
    %p231 = scmp.ne.s32.totalorder %s223, %s226
    %p232 = scmp.eq.s32.totalorder %s15, 0
    %p233 = por %p231, %p232
    %p234 = scmp.ne.s32.totalorder %s223, %s226
    %p235 = scmp.eq.s32.totalorder %s20, 1
    %p236 = por %p234, %p235
    %p237 = scmp.ne.s32.totalorder %s226, %s227
    %p238 = scmp.eq.s32.totalorder %s20, 0
    %p239 = por %p237, %p238
    %p240 = scmp.ne.s32.totalorder %s226, %s227
    %p241 = scmp.eq.s32.totalorder %s21, 1
    %p242 = por %p240, %p241
    %p244 = scmp.ne.s32.totalorder %s227, %s243
    %p245 = scmp.eq.s32.totalorder %s21, 0
    %p246 = por %p244, %p245
    %s247 = ssub.s32 %s22, %s34
    %s248 = ssub.s32 %s23, %s30
    %s249 = sor.u32 %s247, %s248
    %p250 = scmp.eq.s32.totalorder %s249, 0
    %s252 = sadd.s32 %s251, 1
    %s253 = scalar_select %p250, %s251, %s252
    %p256 = pneg %p250
    %p257 = scmp.eq.s32.totalorder %s15, 1
    %p258 = por %p256, %p257
    %p259 = scmp.ne.s32.totalorder %s251, %s254
    %p260 = scmp.eq.s32.totalorder %s15, 0
    %p261 = por %p259, %p260
    %p262 = scmp.ne.s32.totalorder %s251, %s254
    %p263 = scmp.eq.s32.totalorder %s20, 1
    %p264 = por %p262, %p263
    %p265 = scmp.ne.s32.totalorder %s254, %s255
    %p266 = scmp.eq.s32.totalorder %s20, 0
    %p267 = por %p265, %p266
    %p268 = scmp.ne.s32.totalorder %s254, %s255
    %p269 = scmp.eq.s32.totalorder %s21, 1
    %p270 = por %p268, %p269
    %p272 = scmp.ne.s32.totalorder %s255, %s271
    %p273 = scmp.eq.s32.totalorder %s21, 0
    %p274 = por %p272, %p273
    %p275 = scmp.le.s32.totalorder 1, %s15
    %p276 = scmp.lt.s32.totalorder %s15, 3
    %p277 = pnand %p275, %p276
    %p278 = pneg %p277
    // Predicated region
    $region9: #{double_conv_forward.4} parent=5 // pred_check
      _
    $region10: #{double_conv_forward.4} parent=5 // pred_check_branch
      %280 = sbr.rel (%p277) target = $region12
    $region11: #{double_conv_forward.4} parent=5 // pred_region
      %s281 = ssub.s32 %s15, 1
      // Predicated region
      $region13: #{double_conv_forward.4} parent=11 // pred_check
        %p282 = pneg %p148
      $region14: #{double_conv_forward.4} parent=11 // pred_check_branch
        %284 = sbr.rel (%p282) target = $region16
      $region15: #{double_conv_forward.4} parent=11 // pred_region
        _
      $region16: #{double_conv_forward.4} parent=11 // pred_fallthru
        _
      // Predicated region
      $region17: #{double_conv_forward.4} parent=11 // pred_check
        %p285 = pneg %p169
      $region18: #{double_conv_forward.4} parent=11 // pred_check_branch
        %287 = sbr.rel (%p285) target = $region20
      $region19: #{double_conv_forward.4} parent=11 // pred_region
        _
      $region20: #{double_conv_forward.4} parent=11 // pred_fallthru
        _
      // Predicated region
      $region21: #{double_conv_forward.4} parent=11 // pred_check
        %p288 = pneg %p190
      $region22: #{double_conv_forward.4} parent=11 // pred_check_branch
        %290 = sbr.rel (%p288) target = $region24
      $region23: #{double_conv_forward.4} parent=11 // pred_region
        _
      $region24: #{double_conv_forward.4} parent=11 // pred_fallthru
        _
      // Predicated region
      $region25: #{double_conv_forward.4} parent=11 // pred_check
        %p291 = pneg %p211
      $region26: #{double_conv_forward.4} parent=11 // pred_check_branch
        %293 = sbr.rel (%p291) target = $region28
      $region27: #{double_conv_forward.4} parent=11 // pred_region
        _
      $region28: #{double_conv_forward.4} parent=11 // pred_fallthru
        _
    $region12: #{double_conv_forward.4} parent=5 // pred_fallthru
      _
    %p294 = scmp.lt.s32.totalorder %s15, 2
    // Predicated region
    $region29: #{double_conv_forward.4} parent=5 // pred_check
      %p295 = pneg %p294
    $region30: #{double_conv_forward.4} parent=5 // pred_check_branch
      %297 = sbr.rel (%p295) target = $region32
    $region31: #{double_conv_forward.4} parent=5 // pred_region
      // Predicated region
      $region33: #{double_conv_forward.4} parent=31 // pred_check
        %p298 = pneg %p49
      $region34: #{double_conv_forward.4} parent=31 // pred_check_branch
        %300 = sbr.rel (%p298) target = $region36
      $region35: #{double_conv_forward.4} parent=31 // pred_region
        %s301 = smul.u32 16, %s23
        %p302 = scmp.lt.s32.totalorder %s22, 1
        %s303 = scalar_select %p302, %s22, 1
        %p304 = scmp.lt.s32.totalorder %s301, 15
        %s305 = scalar_select %p304, %s301, 15
        %s306 = smul.addr %s305, 2
        %s307 = smul.addr %s303, 32
        %s308 = sadd.s32 %s306, %s307
        %s309 = smul.addr %s308, 4
        %s310 = scalar_lea.vmem %s0, %s309
        %s311 = smul.u32 16, %s23
      $region36: #{double_conv_forward.4} parent=31 // pred_fallthru
        _
      // Predicated region
      $region37: #{double_conv_forward.4} parent=31 // pred_check
        %p312 = pneg %p85
      $region38: #{double_conv_forward.4} parent=31 // pred_check_branch
        %314 = sbr.rel (%p312) target = $region40
      $region39: #{double_conv_forward.4} parent=31 // pred_region
        %s315 = smul.u32 %s23, 16
        %s316 = ssub.s32 %s315, 1
        %p317 = scmp.gt.s32.totalorder %s316, 0
        %s318 = scalar_select %p317, %s316, 0
        %p319 = scmp.lt.s32.totalorder %s22, 1
        %s320 = scalar_select %p319, %s22, 1
        %p321 = scmp.lt.s32.totalorder %s318, 15
        %s322 = scalar_select %p321, %s318, 15
        %s323 = smul.addr %s322, 2
        %s324 = smul.addr %s320, 32
        %s325 = sadd.s32 %s323, %s324
        %s326 = smul.addr %s325, 4
        %s327 = scalar_lea.vmem %s1, %s326
        %s328 = smul.u32 %s23, 16
        %s329 = ssub.s32 %s328, 1
        %p330 = scmp.gt.s32.totalorder %s329, 0
        %s331 = scalar_select %p330, %s329, 0
      $region40: #{double_conv_forward.4} parent=31 // pred_fallthru
        _
      // Predicated region
      $region41: #{double_conv_forward.4} parent=31 // pred_check
        %p332 = pneg %p121
      $region42: #{double_conv_forward.4} parent=31 // pred_check_branch
        %334 = sbr.rel (%p332) target = $region44
      $region43: #{double_conv_forward.4} parent=31 // pred_region
        %s335 = smul.u32 %s23, 16
        %s336 = sadd.s32 %s335, 16
        %p337 = scmp.lt.s32.totalorder %s336, 15
        %s338 = scalar_select %p337, %s336, 15
        %p339 = scmp.lt.s32.totalorder %s22, 1
        %s340 = scalar_select %p339, %s22, 1
        %p341 = scmp.lt.s32.totalorder %s338, 15
        %s342 = scalar_select %p341, %s338, 15
        %s343 = smul.addr %s342, 2
        %s344 = smul.addr %s340, 32
        %s345 = sadd.s32 %s343, %s344
        %s346 = smul.addr %s345, 4
        %s347 = scalar_lea.vmem %s2, %s346
        %s348 = smul.u32 %s23, 16
        %s349 = sadd.s32 %s348, 16
        %p350 = scmp.lt.s32.totalorder %s349, 15
        %s351 = scalar_select %p350, %s349, 15
      $region44: #{double_conv_forward.4} parent=31 // pred_fallthru
        _
    $region32: #{double_conv_forward.4} parent=5 // pred_fallthru
      _
    %p352 = scmp.le.s32.totalorder 1, %s15
    %p353 = scmp.lt.s32.totalorder %s15, 3
    %p354 = pnand %p352, %p353
    %p355 = pneg %p354
    // Predicated region
    $region45: #{double_conv_forward.4} parent=5 // pred_check
      _
    $region46: #{double_conv_forward.4} parent=5 // pred_check_branch
      %357 = sbr.rel (%p354) target = $region48
    $region47: #{double_conv_forward.4} parent=5 // pred_region
      %s358 = ssub.s32 %s15, 1
      %s359 = smul.u32 16, %s25
      %p360 = scmp.lt.s32.totalorder %s24, 1
      %s361 = scalar_select %p360, %s24, 1
      %p362 = scmp.lt.s32.totalorder %s359, 15
      %s363 = scalar_select %p362, %s359, 15
      %s364 = smul.addr %s363, 2
      %s365 = smul.addr %s361, 32
      %s366 = sadd.s32 %s364, %s365
      %s367 = smul.addr %s366, 4
      %s368 = scalar_lea.vmem %s0, %s367
      %p369 = pneg %p55
      %p370 = pneg %p52
      %s371 = smul.u32 %s25, 16
      %s372 = ssub.s32 %s371, 1
      %p373 = scmp.gt.s32.totalorder %s372, 0
      %s374 = scalar_select %p373, %s372, 0
      %p375 = scmp.lt.s32.totalorder %s24, 1
      %s376 = scalar_select %p375, %s24, 1
      %p377 = scmp.lt.s32.totalorder %s374, 15
      %s378 = scalar_select %p377, %s374, 15
      %s379 = smul.addr %s378, 2
      %s380 = smul.addr %s376, 32
      %s381 = sadd.s32 %s379, %s380
      %s382 = smul.addr %s381, 4
      %s383 = scalar_lea.vmem %s1, %s382
      %p384 = pneg %p91
      %p385 = pneg %p88
      %s386 = smul.u32 %s25, 16
      %s387 = sadd.s32 %s386, 16
      %p388 = scmp.lt.s32.totalorder %s387, 15
      %s389 = scalar_select %p388, %s387, 15
      %p390 = scmp.lt.s32.totalorder %s24, 1
      %s391 = scalar_select %p390, %s24, 1
      %p392 = scmp.lt.s32.totalorder %s389, 15
      %s393 = scalar_select %p392, %s389, 15
      %s394 = smul.addr %s393, 2
      %s395 = smul.addr %s391, 32
      %s396 = sadd.s32 %s394, %s395
      %s397 = smul.addr %s396, 4
      %s398 = scalar_lea.vmem %s2, %s397
      %p399 = pneg %p127
      %p400 = pneg %p124
      %p401 = pneg %p148
      %p402 = pneg %p145
      %p403 = pneg %p169
      %p404 = pneg %p166
      %p405 = pneg %p190
      %p406 = pneg %p187
      %p407 = pneg %p211
      %p408 = pneg %p208
      %p409 = pneg %p239
      %p410 = pneg %p236
      %s411 = smul.u32 16, %s25
      %p412 = scmp.lt.s32.totalorder %s24, 1
      %s413 = scalar_select %p412, %s24, 1
      %p414 = scmp.lt.s32.totalorder %s411, 15
      %s415 = scalar_select %p414, %s411, 15
      %s416 = smul.addr %s415, 2
      %s417 = smul.addr %s413, 32
      %s418 = sadd.s32 %s416, %s417
      %s419 = smul.addr %s418, 4
      %s420 = scalar_lea.vmem %s7, %s419
      %p421 = pneg %p267
      %p422 = pneg %p264
      %p423 = scmp.lt.s32.totalorder %s24, 1
      %s424 = scalar_select %p423, %s24, 1
      %p425 = scmp.lt.s32.totalorder %s25, 0
      %s426 = scalar_select %p425, %s25, 0
      %s427 = sadd.s32 %s426, %s424
      %s428 = smul.addr %s427, 2
      %s429 = scalar_lea.vmem %s8, %s428
      %s430 = smul.u32 16, %s25
      %p431 = scmp.lt.s32.totalorder %s24, 1
      %s432 = scalar_select %p431, %s24, 1
      %p433 = scmp.lt.s32.totalorder %s430, 15
      %s434 = scalar_select %p433, %s430, 15
      %s435 = smul.addr %s434, 2
      %s436 = smul.addr %s432, 32
      %s437 = sadd.s32 %s435, %s436
      %s438 = smul.addr %s437, 4
      %s439 = scalar_lea.vmem %s0, %s438
      %s440 = smul.u32 16, %s25
      %s441 = smul.u32 %s25, 16
      %s442 = ssub.s32 %s441, 1
      %p443 = scmp.gt.s32.totalorder %s442, 0
      %s444 = scalar_select %p443, %s442, 0
      %p445 = scmp.lt.s32.totalorder %s24, 1
      %s446 = scalar_select %p445, %s24, 1
      %p447 = scmp.lt.s32.totalorder %s444, 15
      %s448 = scalar_select %p447, %s444, 15
      %s449 = smul.addr %s448, 2
      %s450 = smul.addr %s446, 32
      %s451 = sadd.s32 %s449, %s450
      %s452 = smul.addr %s451, 4
      %s453 = scalar_lea.vmem %s1, %s452
      %s454 = smul.u32 %s25, 16
      %s455 = ssub.s32 %s454, 1
      %p456 = scmp.gt.s32.totalorder %s455, 0
      %s457 = scalar_select %p456, %s455, 0
      %s458 = smul.u32 %s25, 16
      %s459 = sadd.s32 %s458, 16
      %p460 = scmp.lt.s32.totalorder %s459, 15
      %s461 = scalar_select %p460, %s459, 15
      %p462 = scmp.lt.s32.totalorder %s24, 1
      %s463 = scalar_select %p462, %s24, 1
      %p464 = scmp.lt.s32.totalorder %s461, 15
      %s465 = scalar_select %p464, %s461, 15
      %s466 = smul.addr %s465, 2
      %s467 = smul.addr %s463, 32
      %s468 = sadd.s32 %s466, %s467
      %s469 = smul.addr %s468, 4
      %s470 = scalar_lea.vmem %s2, %s469
      %s471 = smul.u32 %s25, 16
      %s472 = sadd.s32 %s471, 16
      %p473 = scmp.lt.s32.totalorder %s472, 15
      %s474 = scalar_select %p473, %s472, 15
      %s475 = smul.u32 16, %s25
      %p476 = scmp.lt.s32.totalorder %s24, 1
      %s477 = scalar_select %p476, %s24, 1
      %p478 = scmp.lt.s32.totalorder %s475, 15
      %s479 = scalar_select %p478, %s475, 15
      %s480 = smul.addr %s479, 2
      %s481 = smul.addr %s477, 32
      %s482 = sadd.s32 %s480, %s481
      %s483 = smul.addr %s482, 4
      %s484 = scalar_lea.vmem %s7, %s483
      %s485 = smul.u32 16, %s25
      %p486 = scmp.lt.s32.totalorder %s24, 1
      %s487 = scalar_select %p486, %s24, 1
      %p488 = scmp.lt.s32.totalorder %s25, 0
      %s489 = scalar_select %p488, %s25, 0
      %s490 = sadd.s32 %s489, %s487
      %s491 = smul.addr %s490, 2
      %s492 = scalar_lea.vmem %s8, %s491
      %v494 = vld [vmem:[%s3] sm:$0x1]
      %v495 = vld [vmem:[%s4] sm:$0x1]
      %v496 = vld [vmem:[%s439] sm:$0xf]
      %v497 = vld [vmem:[%s439 + $0x4] sm:$0xf]
      %v498 = vld [vmem:[%s439 + $0x8] sm:$0xf]
      %v499 = vld [vmem:[%s439 + $0xc] sm:$0xf]
      %v500 = vld [vmem:[%s439 + $0x10] sm:$0xf]
      %v501 = vld [vmem:[%s439 + $0x14] sm:$0xf]
      %v502 = vld [vmem:[%s439 + $0x18] sm:$0xf]
      %v503 = vld [vmem:[%s439 + $0x1c] sm:$0xf]
      %v504 = vld [vmem:[%s439 + $0x20] sm:$0xf]
      %v505 = vld [vmem:[%s439 + $0x24] sm:$0xf]
      %v506 = vld [vmem:[%s439 + $0x28] sm:$0xf]
      %v507 = vld [vmem:[%s439 + $0x2c] sm:$0xf]
      %v508 = vld [vmem:[%s439 + $0x30] sm:$0xf]
      %v509 = vld [vmem:[%s439 + $0x34] sm:$0xf]
      %v510 = vld [vmem:[%s439 + $0x38] sm:$0xf]
      %v511 = vld [vmem:[%s439 + $0x3c] sm:$0xf]
      %v512 = vld [vmem:[%s439 + $0x40] sm:$0xf]
      %v513 = vld [vmem:[%s439 + $0x44] sm:$0xf]
      %v514 = vld [vmem:[%s439 + $0x48] sm:$0xf]
      %v515 = vld [vmem:[%s439 + $0x4c] sm:$0xf]
      %v516 = vld [vmem:[%s439 + $0x50] sm:$0xf]
      %v517 = vld [vmem:[%s439 + $0x54] sm:$0xf]
      %v518 = vld [vmem:[%s439 + $0x58] sm:$0xf]
      %v519 = vld [vmem:[%s439 + $0x5c] sm:$0xf]
      %v520 = vld [vmem:[%s439 + $0x60] sm:$0xf]
      %v521 = vld [vmem:[%s439 + $0x64] sm:$0xf]
      %v522 = vld [vmem:[%s439 + $0x68] sm:$0xf]
      %v523 = vld [vmem:[%s439 + $0x6c] sm:$0xf]
      %v524 = vld [vmem:[%s439 + $0x70] sm:$0xf]
      %v525 = vld [vmem:[%s439 + $0x74] sm:$0xf]
      %v526 = vld [vmem:[%s439 + $0x78] sm:$0xf]
      %v527 = vld [vmem:[%s439 + $0x7c] sm:$0xf]
      %v528 = vunpack.c.l.bf16 %v496
      %v529 = vunpack.c.l.bf16 %v497
      %v530 = vunpack.c.l.bf16 %v498
      %v531 = vunpack.c.l.bf16 %v499
      %v532 = vunpack.c.l.bf16 %v500
      %v533 = vunpack.c.l.bf16 %v501
      %v534 = vunpack.c.l.bf16 %v502
      %v535 = vunpack.c.l.bf16 %v503
      %v536 = vunpack.c.l.bf16 %v504
      %v537 = vunpack.c.l.bf16 %v505
      %v538 = vunpack.c.l.bf16 %v506
      %v539 = vunpack.c.l.bf16 %v507
      %v540 = vunpack.c.l.bf16 %v508
      %v541 = vunpack.c.l.bf16 %v509
      %v542 = vunpack.c.l.bf16 %v510
      %v543 = vunpack.c.l.bf16 %v511
      %v544 = vunpack.c.l.bf16 %v512
      %v545 = vunpack.c.l.bf16 %v513
      %v546 = vunpack.c.l.bf16 %v514
      %v547 = vunpack.c.l.bf16 %v515
      %v548 = vunpack.c.l.bf16 %v516
      %v549 = vunpack.c.l.bf16 %v517
      %v550 = vunpack.c.l.bf16 %v518
      %v551 = vunpack.c.l.bf16 %v519
      %v552 = vunpack.c.l.bf16 %v520
      %v553 = vunpack.c.l.bf16 %v521
      %v554 = vunpack.c.l.bf16 %v522
      %v555 = vunpack.c.l.bf16 %v523
      %v556 = vunpack.c.l.bf16 %v524
      %v557 = vunpack.c.l.bf16 %v525
      %v558 = vunpack.c.l.bf16 %v526
      %v559 = vunpack.c.l.bf16 %v527
      %v561 = vlaneseq
      %v562 = vshrl.u32 %v561, 7
      %v563 = vsub.s32 0, %v562
      %v564 = vrot.slane %v494, %v563
      %v566 = vmul.f32 %v528, %v564
      %v567 = vmul.f32 %v529, %v564
      %v568 = vmul.f32 %v530, %v564
      %v569 = vmul.f32 %v531, %v564
      %v570 = vmul.f32 %v532, %v564
      %v571 = vmul.f32 %v533, %v564
      %v572 = vmul.f32 %v534, %v564
      %v573 = vmul.f32 %v535, %v564
      %v574 = vmul.f32 %v536, %v564
      %v575 = vmul.f32 %v537, %v564
      %v576 = vmul.f32 %v538, %v564
      %v577 = vmul.f32 %v539, %v564
      %v578 = vmul.f32 %v540, %v564
      %v579 = vmul.f32 %v541, %v564
      %v580 = vmul.f32 %v542, %v564
      %v581 = vmul.f32 %v543, %v564
      %v582 = vmul.f32 %v544, %v564
      %v583 = vmul.f32 %v545, %v564
      %v584 = vmul.f32 %v546, %v564
      %v585 = vmul.f32 %v547, %v564
      %v586 = vmul.f32 %v548, %v564
      %v587 = vmul.f32 %v549, %v564
      %v588 = vmul.f32 %v550, %v564
      %v589 = vmul.f32 %v551, %v564
      %v590 = vmul.f32 %v552, %v564
      %v591 = vmul.f32 %v553, %v564
      %v592 = vmul.f32 %v554, %v564
      %v593 = vmul.f32 %v555, %v564
      %v594 = vmul.f32 %v556, %v564
      %v595 = vmul.f32 %v557, %v564
      %v596 = vmul.f32 %v558, %v564
      %v597 = vmul.f32 %v559, %v564
      %v599 = vlaneseq
      %v600 = vshrl.u32 %v599, 7
      %v601 = vsub.s32 0, %v600
      %v602 = vrot.slane %v495, %v601
      %v604 = vadd.f32 %v566, %v602
      %v605 = vadd.f32 %v567, %v602
      %v606 = vadd.f32 %v568, %v602
      %v607 = vadd.f32 %v569, %v602
      %v608 = vadd.f32 %v570, %v602
      %v609 = vadd.f32 %v571, %v602
      %v610 = vadd.f32 %v572, %v602
      %v611 = vadd.f32 %v573, %v602
      %v612 = vadd.f32 %v574, %v602
      %v613 = vadd.f32 %v575, %v602
      %v614 = vadd.f32 %v576, %v602
      %v615 = vadd.f32 %v577, %v602
      %v616 = vadd.f32 %v578, %v602
      %v617 = vadd.f32 %v579, %v602
      %v618 = vadd.f32 %v580, %v602
      %v619 = vadd.f32 %v581, %v602
      %v620 = vadd.f32 %v582, %v602
      %v621 = vadd.f32 %v583, %v602
      %v622 = vadd.f32 %v584, %v602
      %v623 = vadd.f32 %v585, %v602
      %v624 = vadd.f32 %v586, %v602
      %v625 = vadd.f32 %v587, %v602
      %v626 = vadd.f32 %v588, %v602
      %v627 = vadd.f32 %v589, %v602
      %v628 = vadd.f32 %v590, %v602
      %v629 = vadd.f32 %v591, %v602
      %v630 = vadd.f32 %v592, %v602
      %v631 = vadd.f32 %v593, %v602
      %v632 = vadd.f32 %v594, %v602
      %v633 = vadd.f32 %v595, %v602
      %v634 = vadd.f32 %v596, %v602
      %v635 = vadd.f32 %v597, %v602
      %v636 = vmax.f32 %v604, 0.0
      %v637 = vmax.f32 %v605, 0.0
      %v638 = vmax.f32 %v606, 0.0
      %v639 = vmax.f32 %v607, 0.0
      %v640 = vmax.f32 %v608, 0.0
      %v641 = vmax.f32 %v609, 0.0
      %v642 = vmax.f32 %v610, 0.0
      %v643 = vmax.f32 %v611, 0.0
      %v644 = vmax.f32 %v612, 0.0
      %v645 = vmax.f32 %v613, 0.0
      %v646 = vmax.f32 %v614, 0.0
      %v647 = vmax.f32 %v615, 0.0
      %v648 = vmax.f32 %v616, 0.0
      %v649 = vmax.f32 %v617, 0.0
      %v650 = vmax.f32 %v618, 0.0
      %v651 = vmax.f32 %v619, 0.0
      %v652 = vmax.f32 %v620, 0.0
      %v653 = vmax.f32 %v621, 0.0
      %v654 = vmax.f32 %v622, 0.0
      %v655 = vmax.f32 %v623, 0.0
      %v656 = vmax.f32 %v624, 0.0
      %v657 = vmax.f32 %v625, 0.0
      %v658 = vmax.f32 %v626, 0.0
      %v659 = vmax.f32 %v627, 0.0
      %v660 = vmax.f32 %v628, 0.0
      %v661 = vmax.f32 %v629, 0.0
      %v662 = vmax.f32 %v630, 0.0
      %v663 = vmax.f32 %v631, 0.0
      %v664 = vmax.f32 %v632, 0.0
      %v665 = vmax.f32 %v633, 0.0
      %v666 = vmax.f32 %v634, 0.0
      %v667 = vmax.f32 %v635, 0.0
      %v668 = vpack.c.bf16 %v637, %v636
      %v669 = vpack.c.bf16 %v639, %v638
      %v670 = vpack.c.bf16 %v641, %v640
      %v671 = vpack.c.bf16 %v643, %v642
      %v672 = vpack.c.bf16 %v645, %v644
      %v673 = vpack.c.bf16 %v647, %v646
      %v674 = vpack.c.bf16 %v649, %v648
      %v675 = vpack.c.bf16 %v651, %v650
      %v676 = vpack.c.bf16 %v653, %v652
      %v677 = vpack.c.bf16 %v655, %v654
      %v678 = vpack.c.bf16 %v657, %v656
      %v679 = vpack.c.bf16 %v659, %v658
      %v680 = vpack.c.bf16 %v661, %v660
      %v681 = vpack.c.bf16 %v663, %v662
      %v682 = vpack.c.bf16 %v665, %v664
      %v683 = vpack.c.bf16 %v667, %v666
      %v684 = vld [vmem:[%s453] sm:$0xf]
      %v685 = vld [vmem:[%s453 + $0x4] sm:$0xf]
      %v686 = vunpack.c.l.bf16 %v684
      %v687 = vunpack.c.l.bf16 %v685
      %v688 = vmul.f32 %v686, %v564
      %v689 = vmul.f32 %v687, %v564
      %v690 = vadd.f32 %v688, %v602
      %v691 = vadd.f32 %v689, %v602
      %v692 = vmax.f32 %v690, 0.0
      %v693 = vmax.f32 %v691, 0.0
      %v694 = vpack.c.bf16 %v693, %v692
      %p695 = scmp.ne.s32.totalorder %s25, 0
      %s696 = scalar_select %p695, 1, 0
      %s697 = scvt.s32.f32 %s696
      %p699 = scmp.ne.f32.partialorder %s697, %s697
      %s700 = sshrl.u32 %s697, 16
      %s701 = sand.u32 %s700, 1
      %s702 = sadd.s32 32767, %s701
      %s703 = sadd.s32 %s697, %s702
      %s704 = sand.u32 %s703, 4294901760
      %s705 = scalar_select %p699, 2143289344, %s704
      %s707 = sshrl.u32 %s705, 16
      %s708 = sshll.u32 %s707, 16
      %s709 = sor.u32 %s707, %s708
      %v710 = vstv %s709
      %v712 = vmul.bf16 %v694, %v710
      %v713 = vld [vmem:[%s470] sm:$0xf]
      %v714 = vld [vmem:[%s470 + $0x4] sm:$0xf]
      %v715 = vunpack.c.l.bf16 %v713
      %v716 = vunpack.c.l.bf16 %v714
      %v717 = vmul.f32 %v715, %v564
      %v718 = vmul.f32 %v716, %v564
      %v719 = vadd.f32 %v717, %v602
      %v720 = vadd.f32 %v718, %v602
      %v721 = vmax.f32 %v719, 0.0
      %v722 = vmax.f32 %v720, 0.0
      %v723 = vpack.c.bf16 %v722, %v721
      %v724 = vmul.bf16 %v723, %v710
      %vm725 = vcmask 57344
      %vm726 = vsmask.f32 256
      %vm727 = vmand %vm725, %vm726
      %v728 = vld [vmem:[#allocation2] sm:$0x1]
      %v729 = vsel %vm727, 0, %v728
      %730 = vst [vmem:[#allocation2] sm:$0x1] %v729
      %v731 = vld [vmem:[#allocation2 + $0x8] sm:$0x1]
      %v732 = vsel %vm727, 0, %v731
      %733 = vst [vmem:[#allocation2 + $0x8] sm:$0x1] %v732
      %v734 = vld [vmem:[#allocation2 + $0x10] sm:$0x1]
      %v735 = vsel %vm727, 0, %v734
      %736 = vst [vmem:[#allocation2 + $0x10] sm:$0x1] %v735
      %v737 = vld [vmem:[#allocation2 + $0x18] sm:$0x1]
      %v738 = vsel %vm727, 0, %v737
      %739 = vst [vmem:[#allocation2 + $0x18] sm:$0x1] %v738
      %v740 = vld [vmem:[#allocation2 + $0x20] sm:$0x1]
      %v741 = vsel %vm727, 0, %v740
      %742 = vst [vmem:[#allocation2 + $0x20] sm:$0x1] %v741
      %v743 = vld [vmem:[#allocation2 + $0x28] sm:$0x1]
      %v744 = vsel %vm727, 0, %v743
      %745 = vst [vmem:[#allocation2 + $0x28] sm:$0x1] %v744
      %v746 = vld [vmem:[#allocation2 + $0x30] sm:$0x1]
      %v747 = vsel %vm727, 0, %v746
      %748 = vst [vmem:[#allocation2 + $0x30] sm:$0x1] %v747
      %v749 = vld [vmem:[#allocation2 + $0x38] sm:$0x1]
      %v750 = vsel %vm727, 0, %v749
      %751 = vst [vmem:[#allocation2 + $0x38] sm:$0x1] %v750
      %v752 = vld [vmem:[#allocation2 + $0x40] sm:$0x1]
      %v753 = vsel %vm727, 0, %v752
      %754 = vst [vmem:[#allocation2 + $0x40] sm:$0x1] %v753
      %v755 = vld [vmem:[#allocation2 + $0x48] sm:$0x1]
      %v756 = vsel %vm727, 0, %v755
      %757 = vst [vmem:[#allocation2 + $0x48] sm:$0x1] %v756
      %v758 = vld [vmem:[#allocation2 + $0x50] sm:$0x1]
      %v759 = vsel %vm727, 0, %v758
      %760 = vst [vmem:[#allocation2 + $0x50] sm:$0x1] %v759
      %v761 = vld [vmem:[#allocation2 + $0x58] sm:$0x1]
      %v762 = vsel %vm727, 0, %v761
      %763 = vst [vmem:[#allocation2 + $0x58] sm:$0x1] %v762
      %v764 = vld [vmem:[#allocation2 + $0x60] sm:$0x1]
      %v765 = vsel %vm727, 0, %v764
      %766 = vst [vmem:[#allocation2 + $0x60] sm:$0x1] %v765
      %v767 = vld [vmem:[#allocation2 + $0x68] sm:$0x1]
      %v768 = vsel %vm727, 0, %v767
      %769 = vst [vmem:[#allocation2 + $0x68] sm:$0x1] %v768
      %v770 = vld [vmem:[#allocation2 + $0x70] sm:$0x1]
      %v771 = vsel %vm727, 0, %v770
      %772 = vst [vmem:[#allocation2 + $0x70] sm:$0x1] %v771
      %v773 = vld [vmem:[#allocation2 + $0x78] sm:$0x1]
      %v774 = vsel %vm727, 0, %v773
      %775 = vst [vmem:[#allocation2 + $0x78] sm:$0x1] %v774
      %v776 = vld [vmem:[#allocation2 + $0x80] sm:$0x1]
      %v777 = vsel %vm727, 0, %v776
      %778 = vst [vmem:[#allocation2 + $0x80] sm:$0x1] %v777
      %v779 = vld [vmem:[#allocation2 + $0x88] sm:$0x1]
      %v780 = vsel %vm727, 0, %v779
      %781 = vst [vmem:[#allocation2 + $0x88] sm:$0x1] %v780
      %v783 = vshrl.u32 %v712, 16
      %v785 = vrot.slane %v783, 7
      %v786 = vshll.u32 %v712, 16
      %v788 = vor.u32 %v785, %v786
      %v790 = vshrl.u32 %v668, 16
      %v792 = vrot.slane %v790, 7
      %v793 = vshll.u32 %v668, 16
      %v795 = vor.u32 %v792, %v793
      %v797 = vshrl.u32 %v669, 16
      %v799 = vrot.slane %v797, 7
      %v800 = vshll.u32 %v669, 16
      %v802 = vor.u32 %v799, %v800
      %v804 = vshrl.u32 %v670, 16
      %v806 = vrot.slane %v804, 7
      %v807 = vshll.u32 %v670, 16
      %v809 = vor.u32 %v806, %v807
      %v811 = vshrl.u32 %v671, 16
      %v813 = vrot.slane %v811, 7
      %v814 = vshll.u32 %v671, 16
      %v816 = vor.u32 %v813, %v814
      %v818 = vshrl.u32 %v672, 16
      %v820 = vrot.slane %v818, 7
      %v821 = vshll.u32 %v672, 16
      %v823 = vor.u32 %v820, %v821
      %v825 = vshrl.u32 %v673, 16
      %v827 = vrot.slane %v825, 7
      %v828 = vshll.u32 %v673, 16
      %v830 = vor.u32 %v827, %v828
      %v832 = vshrl.u32 %v674, 16
      %v834 = vrot.slane %v832, 7
      %v835 = vshll.u32 %v674, 16
      %v837 = vor.u32 %v834, %v835
      %v839 = vshrl.u32 %v675, 16
      %v841 = vrot.slane %v839, 7
      %v842 = vshll.u32 %v675, 16
      %v844 = vor.u32 %v841, %v842
      %v846 = vshrl.u32 %v676, 16
      %v848 = vrot.slane %v846, 7
      %v849 = vshll.u32 %v676, 16
      %v851 = vor.u32 %v848, %v849
      %v853 = vshrl.u32 %v677, 16
      %v855 = vrot.slane %v853, 7
      %v856 = vshll.u32 %v677, 16
      %v858 = vor.u32 %v855, %v856
      %v860 = vshrl.u32 %v678, 16
      %v862 = vrot.slane %v860, 7
      %v863 = vshll.u32 %v678, 16
      %v865 = vor.u32 %v862, %v863
      %v867 = vshrl.u32 %v679, 16
      %v869 = vrot.slane %v867, 7
      %v870 = vshll.u32 %v679, 16
      %v872 = vor.u32 %v869, %v870
      %v874 = vshrl.u32 %v680, 16
      %v876 = vrot.slane %v874, 7
      %v877 = vshll.u32 %v680, 16
      %v879 = vor.u32 %v876, %v877
      %v881 = vshrl.u32 %v681, 16
      %v883 = vrot.slane %v881, 7
      %v884 = vshll.u32 %v681, 16
      %v886 = vor.u32 %v883, %v884
      %v888 = vshrl.u32 %v682, 16
      %v890 = vrot.slane %v888, 7
      %v891 = vshll.u32 %v682, 16
      %v893 = vor.u32 %v890, %v891
      %v895 = vshrl.u32 %v683, 16
      %v897 = vrot.slane %v895, 7
      %v898 = vshll.u32 %v683, 16
      %v900 = vor.u32 %v897, %v898
      %v902 = vshrl.u32 %v724, 16
      %v904 = vrot.slane %v902, 7
      %v905 = vshll.u32 %v724, 16
      %v907 = vor.u32 %v904, %v905
      %vm926 = vcmask 64512
      %vm927 = vsmask.f32 7938
      %vm928 = vmand %vm926, %vm927
      %v929 = vld [vmem:[#allocation2] sm:$0xff]
      %v930 = vsel %vm928, %v788, %v929
      %931 = vst [vmem:[#allocation2] sm:$0xff] %v930
      %v932 = vld [vmem:[#allocation2 + $0x8] sm:$0xff]
      %v933 = vsel %vm928, %v795, %v932
      %934 = vst [vmem:[#allocation2 + $0x8] sm:$0xff] %v933
      %v935 = vld [vmem:[#allocation2 + $0x10] sm:$0xff]
      %v936 = vsel %vm928, %v802, %v935
      %937 = vst [vmem:[#allocation2 + $0x10] sm:$0xff] %v936
      %v938 = vld [vmem:[#allocation2 + $0x18] sm:$0xff]
      %v939 = vsel %vm928, %v809, %v938
      %940 = vst [vmem:[#allocation2 + $0x18] sm:$0xff] %v939
      %v941 = vld [vmem:[#allocation2 + $0x20] sm:$0xff]
      %v942 = vsel %vm928, %v816, %v941
      %943 = vst [vmem:[#allocation2 + $0x20] sm:$0xff] %v942
      %v944 = vld [vmem:[#allocation2 + $0x28] sm:$0xff]
      %v945 = vsel %vm928, %v823, %v944
      %946 = vst [vmem:[#allocation2 + $0x28] sm:$0xff] %v945
      %v947 = vld [vmem:[#allocation2 + $0x30] sm:$0xff]
      %v948 = vsel %vm928, %v830, %v947
      %949 = vst [vmem:[#allocation2 + $0x30] sm:$0xff] %v948
      %v950 = vld [vmem:[#allocation2 + $0x38] sm:$0xff]
      %v951 = vsel %vm928, %v837, %v950
      %952 = vst [vmem:[#allocation2 + $0x38] sm:$0xff] %v951
      %v953 = vld [vmem:[#allocation2 + $0x40] sm:$0xff]
      %v954 = vsel %vm928, %v844, %v953
      %955 = vst [vmem:[#allocation2 + $0x40] sm:$0xff] %v954
      %v956 = vld [vmem:[#allocation2 + $0x48] sm:$0xff]
      %v957 = vsel %vm928, %v851, %v956
      %958 = vst [vmem:[#allocation2 + $0x48] sm:$0xff] %v957
      %v959 = vld [vmem:[#allocation2 + $0x50] sm:$0xff]
      %v960 = vsel %vm928, %v858, %v959
      %961 = vst [vmem:[#allocation2 + $0x50] sm:$0xff] %v960
      %v962 = vld [vmem:[#allocation2 + $0x58] sm:$0xff]
      %v963 = vsel %vm928, %v865, %v962
      %964 = vst [vmem:[#allocation2 + $0x58] sm:$0xff] %v963
      %v965 = vld [vmem:[#allocation2 + $0x60] sm:$0xff]
      %v966 = vsel %vm928, %v872, %v965
      %967 = vst [vmem:[#allocation2 + $0x60] sm:$0xff] %v966
      %v968 = vld [vmem:[#allocation2 + $0x68] sm:$0xff]
      %v969 = vsel %vm928, %v879, %v968
      %970 = vst [vmem:[#allocation2 + $0x68] sm:$0xff] %v969
      %v971 = vld [vmem:[#allocation2 + $0x70] sm:$0xff]
      %v972 = vsel %vm928, %v886, %v971
      %973 = vst [vmem:[#allocation2 + $0x70] sm:$0xff] %v972
      %v974 = vld [vmem:[#allocation2 + $0x78] sm:$0xff]
      %v975 = vsel %vm928, %v893, %v974
      %976 = vst [vmem:[#allocation2 + $0x78] sm:$0xff] %v975
      %v977 = vld [vmem:[#allocation2 + $0x80] sm:$0xff]
      %v978 = vsel %vm928, %v900, %v977
      %979 = vst [vmem:[#allocation2 + $0x80] sm:$0xff] %v978
      %v980 = vld [vmem:[#allocation2 + $0x88] sm:$0xff]
      %v981 = vsel %vm928, %v907, %v980
      %982 = vst [vmem:[#allocation2 + $0x88] sm:$0xff] %v981
      %1001 = vrot.lane.b32.xlu0 %v712, 8
      %v1002 = vpop.permute.xlu0 %1001
      %1003 = vrot.lane.b32.xlu0 %v668, 8
      %v1004 = vpop.permute.xlu0 %1003
      %1005 = vrot.lane.b32.xlu0 %v669, 8
      %v1006 = vpop.permute.xlu0 %1005
      %1007 = vrot.lane.b32.xlu0 %v670, 8
      %v1008 = vpop.permute.xlu0 %1007
      %1009 = vrot.lane.b32.xlu0 %v671, 8
      %v1010 = vpop.permute.xlu0 %1009
      %1011 = vrot.lane.b32.xlu0 %v672, 8
      %v1012 = vpop.permute.xlu0 %1011
      %1013 = vrot.lane.b32.xlu0 %v673, 8
      %v1014 = vpop.permute.xlu0 %1013
      %1015 = vrot.lane.b32.xlu0 %v674, 8
      %v1016 = vpop.permute.xlu0 %1015
      %1017 = vrot.lane.b32.xlu0 %v675, 8
      %v1018 = vpop.permute.xlu0 %1017
      %1019 = vrot.lane.b32.xlu0 %v676, 8
      %v1020 = vpop.permute.xlu0 %1019
      %1021 = vrot.lane.b32.xlu0 %v677, 8
      %v1022 = vpop.permute.xlu0 %1021
      %1023 = vrot.lane.b32.xlu0 %v678, 8
      %v1024 = vpop.permute.xlu0 %1023
      %1025 = vrot.lane.b32.xlu0 %v679, 8
      %v1026 = vpop.permute.xlu0 %1025
      %1027 = vrot.lane.b32.xlu0 %v680, 8
      %v1028 = vpop.permute.xlu0 %1027
      %1029 = vrot.lane.b32.xlu0 %v681, 8
      %v1030 = vpop.permute.xlu0 %1029
      %1031 = vrot.lane.b32.xlu0 %v682, 8
      %v1032 = vpop.permute.xlu0 %1031
      %1033 = vrot.lane.b32.xlu0 %v683, 8
      %v1034 = vpop.permute.xlu0 %1033
      %1035 = vrot.lane.b32.xlu0 %v724, 8
      %v1036 = vpop.permute.xlu0 %1035
      %vm1055 = vcmask 130112
      %1056 = vst.msk [vmem:[#allocation2] sm:$0xff] %vm1055, %v1002
      %1057 = vst.msk [vmem:[#allocation2 + $0x8] sm:$0xff] %vm1055, %v1004
      %1058 = vst.msk [vmem:[#allocation2 + $0x10] sm:$0xff] %vm1055, %v1006
      %1059 = vst.msk [vmem:[#allocation2 + $0x18] sm:$0xff] %vm1055, %v1008
      %1060 = vst.msk [vmem:[#allocation2 + $0x20] sm:$0xff] %vm1055, %v1010
      %1061 = vst.msk [vmem:[#allocation2 + $0x28] sm:$0xff] %vm1055, %v1012
      %1062 = vst.msk [vmem:[#allocation2 + $0x30] sm:$0xff] %vm1055, %v1014
      %1063 = vst.msk [vmem:[#allocation2 + $0x38] sm:$0xff] %vm1055, %v1016
      %1064 = vst.msk [vmem:[#allocation2 + $0x40] sm:$0xff] %vm1055, %v1018
      %1065 = vst.msk [vmem:[#allocation2 + $0x48] sm:$0xff] %vm1055, %v1020
      %1066 = vst.msk [vmem:[#allocation2 + $0x50] sm:$0xff] %vm1055, %v1022
      %1067 = vst.msk [vmem:[#allocation2 + $0x58] sm:$0xff] %vm1055, %v1024
      %1068 = vst.msk [vmem:[#allocation2 + $0x60] sm:$0xff] %vm1055, %v1026
      %1069 = vst.msk [vmem:[#allocation2 + $0x68] sm:$0xff] %vm1055, %v1028
      %1070 = vst.msk [vmem:[#allocation2 + $0x70] sm:$0xff] %vm1055, %v1030
      %1071 = vst.msk [vmem:[#allocation2 + $0x78] sm:$0xff] %vm1055, %v1032
      %1072 = vst.msk [vmem:[#allocation2 + $0x80] sm:$0xff] %vm1055, %v1034
      %1073 = vst.msk [vmem:[#allocation2 + $0x88] sm:$0xff] %vm1055, %v1036
      %v1074 = vrot.slane %v786, 1
      %v1075 = vor.u32 %v783, %v1074
      %v1076 = vrot.slane %v793, 1
      %v1077 = vor.u32 %v790, %v1076
      %v1078 = vrot.slane %v800, 1
      %v1079 = vor.u32 %v797, %v1078
      %v1080 = vrot.slane %v807, 1
      %v1081 = vor.u32 %v804, %v1080
      %v1082 = vrot.slane %v814, 1
      %v1083 = vor.u32 %v811, %v1082
      %v1084 = vrot.slane %v821, 1
      %v1085 = vor.u32 %v818, %v1084
      %v1086 = vrot.slane %v828, 1
      %v1087 = vor.u32 %v825, %v1086
      %v1088 = vrot.slane %v835, 1
      %v1089 = vor.u32 %v832, %v1088
      %v1090 = vrot.slane %v842, 1
      %v1091 = vor.u32 %v839, %v1090
      %v1092 = vrot.slane %v849, 1
      %v1093 = vor.u32 %v846, %v1092
      %v1094 = vrot.slane %v856, 1
      %v1095 = vor.u32 %v853, %v1094
      %v1096 = vrot.slane %v863, 1
      %v1097 = vor.u32 %v860, %v1096
      %v1098 = vrot.slane %v870, 1
      %v1099 = vor.u32 %v867, %v1098
      %v1100 = vrot.slane %v877, 1
      %v1101 = vor.u32 %v874, %v1100
      %v1102 = vrot.slane %v884, 1
      %v1103 = vor.u32 %v881, %v1102
      %v1104 = vrot.slane %v891, 1
      %v1105 = vor.u32 %v888, %v1104
      %v1106 = vrot.slane %v898, 1
      %v1107 = vor.u32 %v895, %v1106
      %v1108 = vrot.slane %v905, 1
      %v1109 = vor.u32 %v902, %v1108
      %1110 = vrot.lane.b32.xlu0 %v1075, 16
      %v1111 = vpop.permute.xlu0 %1110
      %1112 = vrot.lane.b32.xlu0 %v1077, 16
      %v1113 = vpop.permute.xlu0 %1112
      %1114 = vrot.lane.b32.xlu0 %v1079, 16
      %v1115 = vpop.permute.xlu0 %1114
      %1116 = vrot.lane.b32.xlu0 %v1081, 16
      %v1117 = vpop.permute.xlu0 %1116
      %1118 = vrot.lane.b32.xlu0 %v1083, 16
      %v1119 = vpop.permute.xlu0 %1118
      %1120 = vrot.lane.b32.xlu0 %v1085, 16
      %v1121 = vpop.permute.xlu0 %1120
      %1122 = vrot.lane.b32.xlu0 %v1087, 16
      %v1123 = vpop.permute.xlu0 %1122
      %1124 = vrot.lane.b32.xlu0 %v1089, 16
      %v1125 = vpop.permute.xlu0 %1124
      %1126 = vrot.lane.b32.xlu0 %v1091, 16
      %v1127 = vpop.permute.xlu0 %1126
      %1128 = vrot.lane.b32.xlu0 %v1093, 16
      %v1129 = vpop.permute.xlu0 %1128
      %1130 = vrot.lane.b32.xlu0 %v1095, 16
      %v1131 = vpop.permute.xlu0 %1130
      %1132 = vrot.lane.b32.xlu0 %v1097, 16
      %v1133 = vpop.permute.xlu0 %1132
      %1134 = vrot.lane.b32.xlu0 %v1099, 16
      %v1135 = vpop.permute.xlu0 %1134
      %1136 = vrot.lane.b32.xlu0 %v1101, 16
      %v1137 = vpop.permute.xlu0 %1136
      %1138 = vrot.lane.b32.xlu0 %v1103, 16
      %v1139 = vpop.permute.xlu0 %1138
      %1140 = vrot.lane.b32.xlu0 %v1105, 16
      %v1141 = vpop.permute.xlu0 %1140
      %1142 = vrot.lane.b32.xlu0 %v1107, 16
      %v1143 = vpop.permute.xlu0 %1142
      %1144 = vrot.lane.b32.xlu0 %v1109, 16
      %v1145 = vpop.permute.xlu0 %1144
      %vm1164 = vcmask 195712
      %vm1165 = vsmask.f32 7424
      %vm1166 = vmand %vm1164, %vm1165
      %v1167 = vld [vmem:[#allocation2] sm:$0xff]
      %v1168 = vsel %vm1166, %v1111, %v1167
      %1169 = vst [vmem:[#allocation2] sm:$0xff] %v1168
      %v1170 = vld [vmem:[#allocation2 + $0x8] sm:$0xff]
      %v1171 = vsel %vm1166, %v1113, %v1170
      %1172 = vst [vmem:[#allocation2 + $0x8] sm:$0xff] %v1171
      %v1173 = vld [vmem:[#allocation2 + $0x10] sm:$0xff]
      %v1174 = vsel %vm1166, %v1115, %v1173
      %1175 = vst [vmem:[#allocation2 + $0x10] sm:$0xff] %v1174
      %v1176 = vld [vmem:[#allocation2 + $0x18] sm:$0xff]
      %v1177 = vsel %vm1166, %v1117, %v1176
      %1178 = vst [vmem:[#allocation2 + $0x18] sm:$0xff] %v1177
      %v1179 = vld [vmem:[#allocation2 + $0x20] sm:$0xff]
      %v1180 = vsel %vm1166, %v1119, %v1179
      %1181 = vst [vmem:[#allocation2 + $0x20] sm:$0xff] %v1180
      %v1182 = vld [vmem:[#allocation2 + $0x28] sm:$0xff]
      %v1183 = vsel %vm1166, %v1121, %v1182
      %1184 = vst [vmem:[#allocation2 + $0x28] sm:$0xff] %v1183
      %v1185 = vld [vmem:[#allocation2 + $0x30] sm:$0xff]
      %v1186 = vsel %vm1166, %v1123, %v1185
      %1187 = vst [vmem:[#allocation2 + $0x30] sm:$0xff] %v1186
      %v1188 = vld [vmem:[#allocation2 + $0x38] sm:$0xff]
      %v1189 = vsel %vm1166, %v1125, %v1188
      %1190 = vst [vmem:[#allocation2 + $0x38] sm:$0xff] %v1189
      %v1191 = vld [vmem:[#allocation2 + $0x40] sm:$0xff]
      %v1192 = vsel %vm1166, %v1127, %v1191
      %1193 = vst [vmem:[#allocation2 + $0x40] sm:$0xff] %v1192
      %v1194 = vld [vmem:[#allocation2 + $0x48] sm:$0xff]
      %v1195 = vsel %vm1166, %v1129, %v1194
      %1196 = vst [vmem:[#allocation2 + $0x48] sm:$0xff] %v1195
      %v1197 = vld [vmem:[#allocation2 + $0x50] sm:$0xff]
      %v1198 = vsel %vm1166, %v1131, %v1197
      %1199 = vst [vmem:[#allocation2 + $0x50] sm:$0xff] %v1198
      %v1200 = vld [vmem:[#allocation2 + $0x58] sm:$0xff]
      %v1201 = vsel %vm1166, %v1133, %v1200
      %1202 = vst [vmem:[#allocation2 + $0x58] sm:$0xff] %v1201
      %v1203 = vld [vmem:[#allocation2 + $0x60] sm:$0xff]
      %v1204 = vsel %vm1166, %v1135, %v1203
      %1205 = vst [vmem:[#allocation2 + $0x60] sm:$0xff] %v1204
      %v1206 = vld [vmem:[#allocation2 + $0x68] sm:$0xff]
      %v1207 = vsel %vm1166, %v1137, %v1206
      %1208 = vst [vmem:[#allocation2 + $0x68] sm:$0xff] %v1207
      %v1209 = vld [vmem:[#allocation2 + $0x70] sm:$0xff]
      %v1210 = vsel %vm1166, %v1139, %v1209
      %1211 = vst [vmem:[#allocation2 + $0x70] sm:$0xff] %v1210
      %v1212 = vld [vmem:[#allocation2 + $0x78] sm:$0xff]
      %v1213 = vsel %vm1166, %v1141, %v1212
      %1214 = vst [vmem:[#allocation2 + $0x78] sm:$0xff] %v1213
      %v1215 = vld [vmem:[#allocation2 + $0x80] sm:$0xff]
      %v1216 = vsel %vm1166, %v1143, %v1215
      %1217 = vst [vmem:[#allocation2 + $0x80] sm:$0xff] %v1216
      %v1218 = vld [vmem:[#allocation2 + $0x88] sm:$0xff]
      %v1219 = vsel %vm1166, %v1145, %v1218
      %1220 = vst [vmem:[#allocation2 + $0x88] sm:$0xff] %v1219
      %vm1221 = vcmask 195719
      %vm1222 = vsmask.f32 7966
      %vm1223 = vmand %vm1221, %vm1222
      %v1224 = vld [vmem:[#allocation2] sm:$0x80]
      %v1225 = vsel %vm1223, 0, %v1224
      %1226 = vst [vmem:[#allocation2] sm:$0x80] %v1225
      %v1227 = vld [vmem:[#allocation2 + $0x8] sm:$0x80]
      %v1228 = vsel %vm1223, 0, %v1227
      %1229 = vst [vmem:[#allocation2 + $0x8] sm:$0x80] %v1228
      %v1230 = vld [vmem:[#allocation2 + $0x10] sm:$0x80]
      %v1231 = vsel %vm1223, 0, %v1230
      %1232 = vst [vmem:[#allocation2 + $0x10] sm:$0x80] %v1231
      %v1233 = vld [vmem:[#allocation2 + $0x18] sm:$0x80]
      %v1234 = vsel %vm1223, 0, %v1233
      %1235 = vst [vmem:[#allocation2 + $0x18] sm:$0x80] %v1234
      %v1236 = vld [vmem:[#allocation2 + $0x20] sm:$0x80]
      %v1237 = vsel %vm1223, 0, %v1236
      %1238 = vst [vmem:[#allocation2 + $0x20] sm:$0x80] %v1237
      %v1239 = vld [vmem:[#allocation2 + $0x28] sm:$0x80]
      %v1240 = vsel %vm1223, 0, %v1239
      %1241 = vst [vmem:[#allocation2 + $0x28] sm:$0x80] %v1240
      %v1242 = vld [vmem:[#allocation2 + $0x30] sm:$0x80]
      %v1243 = vsel %vm1223, 0, %v1242
      %1244 = vst [vmem:[#allocation2 + $0x30] sm:$0x80] %v1243
      %v1245 = vld [vmem:[#allocation2 + $0x38] sm:$0x80]
      %v1246 = vsel %vm1223, 0, %v1245
      %1247 = vst [vmem:[#allocation2 + $0x38] sm:$0x80] %v1246
      %v1248 = vld [vmem:[#allocation2 + $0x40] sm:$0x80]
      %v1249 = vsel %vm1223, 0, %v1248
      %1250 = vst [vmem:[#allocation2 + $0x40] sm:$0x80] %v1249
      %v1251 = vld [vmem:[#allocation2 + $0x48] sm:$0x80]
      %v1252 = vsel %vm1223, 0, %v1251
      %1253 = vst [vmem:[#allocation2 + $0x48] sm:$0x80] %v1252
      %v1254 = vld [vmem:[#allocation2 + $0x50] sm:$0x80]
      %v1255 = vsel %vm1223, 0, %v1254
      %1256 = vst [vmem:[#allocation2 + $0x50] sm:$0x80] %v1255
      %v1257 = vld [vmem:[#allocation2 + $0x58] sm:$0x80]
      %v1258 = vsel %vm1223, 0, %v1257
      %1259 = vst [vmem:[#allocation2 + $0x58] sm:$0x80] %v1258
      %v1260 = vld [vmem:[#allocation2 + $0x60] sm:$0x80]
      %v1261 = vsel %vm1223, 0, %v1260
      %1262 = vst [vmem:[#allocation2 + $0x60] sm:$0x80] %v1261
      %v1263 = vld [vmem:[#allocation2 + $0x68] sm:$0x80]
      %v1264 = vsel %vm1223, 0, %v1263
      %1265 = vst [vmem:[#allocation2 + $0x68] sm:$0x80] %v1264
      %v1266 = vld [vmem:[#allocation2 + $0x70] sm:$0x80]
      %v1267 = vsel %vm1223, 0, %v1266
      %1268 = vst [vmem:[#allocation2 + $0x70] sm:$0x80] %v1267
      %v1269 = vld [vmem:[#allocation2 + $0x78] sm:$0x80]
      %v1270 = vsel %vm1223, 0, %v1269
      %1271 = vst [vmem:[#allocation2 + $0x78] sm:$0x80] %v1270
      %v1272 = vld [vmem:[#allocation2 + $0x80] sm:$0x80]
      %v1273 = vsel %vm1223, 0, %v1272
      %1274 = vst [vmem:[#allocation2 + $0x80] sm:$0x80] %v1273
      %v1275 = vld [vmem:[#allocation2 + $0x88] sm:$0x80]
      %v1276 = vsel %vm1223, 0, %v1275
      %1277 = vst [vmem:[#allocation2 + $0x88] sm:$0x80] %v1276
      %v1278 = vld [vmem:[#allocation2] sm:$0xff]
      %v1279 = vld [vmem:[#allocation2 + $0x8] sm:$0xff]
      %v1280 = vld [vmem:[#allocation2 + $0x10] sm:$0xff]
      %v1281 = vld [vmem:[#allocation2 + $0x18] sm:$0xff]
      %v1282 = vld [vmem:[#allocation2 + $0x20] sm:$0xff]
      %v1283 = vld [vmem:[#allocation2 + $0x28] sm:$0xff]
      %v1284 = vld [vmem:[#allocation2 + $0x30] sm:$0xff]
      %v1285 = vld [vmem:[#allocation2 + $0x38] sm:$0xff]
      %v1286 = vld [vmem:[#allocation2 + $0x40] sm:$0xff]
      %v1287 = vld [vmem:[#allocation2 + $0x48] sm:$0xff]
      %v1288 = vld [vmem:[#allocation2 + $0x50] sm:$0xff]
      %v1289 = vld [vmem:[#allocation2 + $0x58] sm:$0xff]
      %v1290 = vld [vmem:[#allocation2 + $0x60] sm:$0xff]
      %v1291 = vld [vmem:[#allocation2 + $0x68] sm:$0xff]
      %v1292 = vld [vmem:[#allocation2 + $0x70] sm:$0xff]
      %v1293 = vld [vmem:[#allocation2 + $0x78] sm:$0xff]
      %v1294 = vld [vmem:[%s5] sm:$0xf]
      %v1295 = vld [vmem:[%s5 + $0x4] sm:$0xf]
      %v1296 = vld [vmem:[%s5 + $0x8] sm:$0xf]
      %s1297 = scalar_lea.vmem [#allocation2], 8
      %v1298 = vld [vmem:[%s1297] sm:$0xff]
      %v1299 = vld [vmem:[%s1297 + $0x8] sm:$0xff]
      %v1300 = vld [vmem:[%s1297 + $0x10] sm:$0xff]
      %v1301 = vld [vmem:[%s1297 + $0x18] sm:$0xff]
      %v1302 = vld [vmem:[%s1297 + $0x20] sm:$0xff]
      %v1303 = vld [vmem:[%s1297 + $0x28] sm:$0xff]
      %v1304 = vld [vmem:[%s1297 + $0x30] sm:$0xff]
      %v1305 = vld [vmem:[%s1297 + $0x38] sm:$0xff]
      %v1306 = vld [vmem:[%s1297 + $0x40] sm:$0xff]
      %v1307 = vld [vmem:[%s1297 + $0x48] sm:$0xff]
      %v1308 = vld [vmem:[%s1297 + $0x50] sm:$0xff]
      %v1309 = vld [vmem:[%s1297 + $0x58] sm:$0xff]
      %v1310 = vld [vmem:[%s1297 + $0x60] sm:$0xff]
      %v1311 = vld [vmem:[%s1297 + $0x68] sm:$0xff]
      %v1312 = vld [vmem:[%s1297 + $0x70] sm:$0xff]
      %v1313 = vld [vmem:[%s1297 + $0x78] sm:$0xff]
      %s1314 = scalar_lea.vmem %s5, 12
      %v1315 = vld [vmem:[%s1314] sm:$0xf]
      %v1316 = vld [vmem:[%s1314 + $0x4] sm:$0xf]
      %v1317 = vld [vmem:[%s1314 + $0x8] sm:$0xf]
      %v1321 = vunpack.c.l.b16 %v1315
      %v1322 = vunpack.c.l.b16 %v1316
      %v1323 = vunpack.c.l.b16 %v1317
      %v1324 = vpack.c.b16 %v1322, %v1321
      %v1325 = vpack.c.b16 %v1323, %v1323
      %vm1327 = vcmask 195584
      %v1329 = vsel %vm1327, %v1298, 0
      %v1332 = vsel %vm1327, %v1299, 0
      %v1335 = vsel %vm1327, %v1300, 0
      %v1338 = vsel %vm1327, %v1301, 0
      %v1341 = vsel %vm1327, %v1302, 0
      %v1344 = vsel %vm1327, %v1303, 0
      %v1347 = vsel %vm1327, %v1304, 0
      %v1350 = vsel %vm1327, %v1305, 0
      %v1353 = vsel %vm1327, %v1306, 0
      %v1356 = vsel %vm1327, %v1307, 0
      %v1359 = vsel %vm1327, %v1308, 0
      %v1362 = vsel %vm1327, %v1309, 0
      %v1365 = vsel %vm1327, %v1310, 0
      %v1368 = vsel %vm1327, %v1311, 0
      %v1371 = vsel %vm1327, %v1312, 0
      %v1374 = vsel %vm1327, %v1313, 0
      %vm1376 = vcmask 1043456
      %v1378 = vsel %vm1376, %v1325, 0
      %1380 = vmatprep.subr.bf16.mxu0 0
      %1381 = vmatpush1.bf16.msra.mxu0 %v1324
      %1382 = vmatprep.subr.bf16.mxu0 0
      %1383 = vmatpush1.bf16.msra.mxu0 %v1378
      %1384 = vmatprep.subr.bf16.mxu0 0
      %1385 = vmatpush1.bf16.msra.mxu0 0
      %1386 = vmatprep.subr.bf16.mxu0 0
      %1387 = vmatpush1.bf16.msra.mxu0 0
      %1388 = vmatprep.subr.bf16.mxu0 0
      %1389 = vmatpush1.bf16.msra.mxu0 0
      %1390 = vmatprep.subr.bf16.mxu0 0
      %1391 = vmatpush1.bf16.msra.mxu0 0
      %1392 = vmatprep.subr.bf16.mxu0 0
      %1393 = vmatpush1.bf16.msra.mxu0 0
      %1394 = vmatprep.subr.bf16.mxu0 0
      %1395 = vmatpush1.bf16.msra.mxu0 0
      %1396 = vmatprep.subr.bf16.mxu0 0
      %1397 = vmatpush1.bf16.msra.mxu0 0
      %1398 = vmatprep.subr.bf16.mxu0 0
      %1399 = vmatpush1.bf16.msra.mxu0 0
      %1400 = vmatprep.subr.bf16.mxu0 0
      %1401 = vmatpush1.bf16.msra.mxu0 0
      %1402 = vmatprep.subr.bf16.mxu0 0
      %1403 = vmatpush1.bf16.msra.mxu0 0
      %1404 = vmatprep.subr.bf16.mxu0 0
      %1405 = vmatpush1.bf16.msra.mxu0 0
      %1406 = vmatprep.subr.bf16.mxu0 0
      %1407 = vmatpush1.bf16.msra.mxu0 0
      %1408 = vmatprep.subr.bf16.mxu0 0
      %1409 = vmatpush1.bf16.msra.mxu0 0
      %1410 = vmatprep.subr.bf16.mxu0 0
      %1411 = vmatpush1.bf16.msra.mxu0 0
      %1412 = vmatprep.mubr.bf16.mxu0 0
      %1413 = vmatmul.mubr.bf16.gmra.mrb[0].mxu0 %v1329
      %v1414 = vpop.f32.mrb[0].mxu0
      %v1415 = vadd.f32 0.0, %v1414
      %v1416 = vpop.f32.mrb[0].mxu0
      %v1417 = vpop.f32.mrb[0].mxu0
      %v1418 = vadd.f32 0.0, %v1417
      %v1419 = vpop.f32.mrb[0].mxu0
      %1420 = vmatprep.mubr.bf16.mxu0 0
      %1421 = vmatmul.mubr.bf16.gmra.mrb[0].mxu0 %v1332
      %v1422 = vpop.f32.mrb[0].mxu0
      %v1423 = vadd.f32 0.0, %v1422
      %v1424 = vpop.f32.mrb[0].mxu0
      %v1425 = vpop.f32.mrb[0].mxu0
      %v1426 = vadd.f32 0.0, %v1425
      %v1427 = vpop.f32.mrb[0].mxu0
      %1428 = vmatprep.mubr.bf16.mxu0 0
      %1429 = vmatmul.mubr.bf16.gmra.mrb[0].mxu0 %v1335
      %v1430 = vpop.f32.mrb[0].mxu0
      %v1431 = vadd.f32 0.0, %v1430
      %v1432 = vpop.f32.mrb[0].mxu0
      %v1433 = vpop.f32.mrb[0].mxu0
      %v1434 = vadd.f32 0.0, %v1433
      %v1435 = vpop.f32.mrb[0].mxu0
      %1436 = vmatprep.mubr.bf16.mxu0 0
      %1437 = vmatmul.mubr.bf16.gmra.mrb[0].mxu0 %v1338
      %v1438 = vpop.f32.mrb[0].mxu0
      %v1439 = vadd.f32 0.0, %v1438
      %v1440 = vpop.f32.mrb[0].mxu0
      %v1441 = vpop.f32.mrb[0].mxu0
      %v1442 = vadd.f32 0.0, %v1441
      %v1443 = vpop.f32.mrb[0].mxu0
      %1444 = vmatprep.mubr.bf16.mxu0 0
      %1445 = vmatmul.mubr.bf16.gmra.mrb[0].mxu0 %v1341
      %v1446 = vpop.f32.mrb[0].mxu0
      %v1447 = vadd.f32 0.0, %v1446
      %v1448 = vpop.f32.mrb[0].mxu0
      %v1449 = vpop.f32.mrb[0].mxu0
      %v1450 = vadd.f32 0.0, %v1449
      %v1451 = vpop.f32.mrb[0].mxu0
      %1452 = vmatprep.mubr.bf16.mxu0 0
      %1453 = vmatmul.mubr.bf16.gmra.mrb[0].mxu0 %v1344
      %v1454 = vpop.f32.mrb[0].mxu0
      %v1455 = vadd.f32 0.0, %v1454
      %v1456 = vpop.f32.mrb[0].mxu0
      %v1457 = vpop.f32.mrb[0].mxu0
      %v1458 = vadd.f32 0.0, %v1457
      %v1459 = vpop.f32.mrb[0].mxu0
      %1460 = vmatprep.mubr.bf16.mxu0 0
      %1461 = vmatmul.mubr.bf16.gmra.mrb[0].mxu0 %v1347
      %v1462 = vpop.f32.mrb[0].mxu0
      %v1463 = vadd.f32 0.0, %v1462
      %v1464 = vpop.f32.mrb[0].mxu0
      %v1465 = vpop.f32.mrb[0].mxu0
      %v1466 = vadd.f32 0.0, %v1465
      %v1467 = vpop.f32.mrb[0].mxu0
      %1468 = vmatprep.mubr.bf16.mxu0 0
      %1469 = vmatmul.mubr.bf16.gmra.mrb[0].mxu0 %v1350
      %v1470 = vpop.f32.mrb[0].mxu0
      %v1471 = vadd.f32 0.0, %v1470
      %v1472 = vpop.f32.mrb[0].mxu0
      %v1473 = vpop.f32.mrb[0].mxu0
      %v1474 = vadd.f32 0.0, %v1473
      %v1475 = vpop.f32.mrb[0].mxu0
      %1476 = vmatprep.mubr.bf16.mxu0 0
      %1477 = vmatmul.mubr.bf16.gmra.mrb[0].mxu0 %v1353
      %v1478 = vpop.f32.mrb[0].mxu0
      %v1479 = vadd.f32 0.0, %v1478
      %v1480 = vpop.f32.mrb[0].mxu0
      %v1481 = vpop.f32.mrb[0].mxu0
      %v1482 = vadd.f32 0.0, %v1481
      %v1483 = vpop.f32.mrb[0].mxu0
      %1484 = vmatprep.mubr.bf16.mxu0 0
      %1485 = vmatmul.mubr.bf16.gmra.mrb[0].mxu0 %v1356
      %v1486 = vpop.f32.mrb[0].mxu0
      %v1487 = vadd.f32 0.0, %v1486
      %v1488 = vpop.f32.mrb[0].mxu0
      %v1489 = vpop.f32.mrb[0].mxu0
      %v1490 = vadd.f32 0.0, %v1489
      %v1491 = vpop.f32.mrb[0].mxu0
      %1492 = vmatprep.mubr.bf16.mxu0 0
      %1493 = vmatmul.mubr.bf16.gmra.mrb[0].mxu0 %v1359
      %v1494 = vpop.f32.mrb[0].mxu0
      %v1495 = vadd.f32 0.0, %v1494
      %v1496 = vpop.f32.mrb[0].mxu0
      %v1497 = vpop.f32.mrb[0].mxu0
      %v1498 = vadd.f32 0.0, %v1497
      %v1499 = vpop.f32.mrb[0].mxu0
      %1500 = vmatprep.mubr.bf16.mxu0 0
      %1501 = vmatmul.mubr.bf16.gmra.mrb[0].mxu0 %v1362
      %v1502 = vpop.f32.mrb[0].mxu0
      %v1503 = vadd.f32 0.0, %v1502
      %v1504 = vpop.f32.mrb[0].mxu0
      %v1505 = vpop.f32.mrb[0].mxu0
      %v1506 = vadd.f32 0.0, %v1505
      %v1507 = vpop.f32.mrb[0].mxu0
      %1508 = vmatprep.mubr.bf16.mxu0 0
      %1509 = vmatmul.mubr.bf16.gmra.mrb[0].mxu0 %v1365
      %v1510 = vpop.f32.mrb[0].mxu0
      %v1511 = vadd.f32 0.0, %v1510
      %v1512 = vpop.f32.mrb[0].mxu0
      %v1513 = vpop.f32.mrb[0].mxu0
      %v1514 = vadd.f32 0.0, %v1513
      %v1515 = vpop.f32.mrb[0].mxu0
      %1516 = vmatprep.mubr.bf16.mxu0 0
      %1517 = vmatmul.mubr.bf16.gmra.mrb[0].mxu0 %v1368
      %v1518 = vpop.f32.mrb[0].mxu0
      %v1519 = vadd.f32 0.0, %v1518
      %v1520 = vpop.f32.mrb[0].mxu0
      %v1521 = vpop.f32.mrb[0].mxu0
      %v1522 = vadd.f32 0.0, %v1521
      %v1523 = vpop.f32.mrb[0].mxu0
      %1524 = vmatprep.mubr.bf16.mxu0 0
      %1525 = vmatmul.mubr.bf16.gmra.mrb[0].mxu0 %v1371
      %v1526 = vpop.f32.mrb[0].mxu0
      %v1527 = vadd.f32 0.0, %v1526
      %v1528 = vpop.f32.mrb[0].mxu0
      %v1529 = vpop.f32.mrb[0].mxu0
      %v1530 = vadd.f32 0.0, %v1529
      %v1531 = vpop.f32.mrb[0].mxu0
      %1532 = vmatprep.mubr.bf16.mxu0 0
      %1533 = vmatmul.mubr.bf16.gmra.mrb[0].mxu0 %v1374
      %v1534 = vpop.f32.mrb[0].mxu0
      %v1535 = vadd.f32 0.0, %v1534
      %v1536 = vpop.f32.mrb[0].mxu0
      %v1537 = vpop.f32.mrb[0].mxu0
      %v1538 = vadd.f32 0.0, %v1537
      %v1539 = vpop.f32.mrb[0].mxu0
      %1540 = vdwg.mxu0
      %v1544 = vunpack.c.l.b16 %v1294
      %v1545 = vunpack.c.l.b16 %v1295
      %v1546 = vunpack.c.l.b16 %v1296
      %v1547 = vpack.c.b16 %v1545, %v1544
      %v1548 = vpack.c.b16 %v1546, %v1546
      %v1551 = vsel %vm1327, %v1278, 0
      %v1554 = vsel %vm1327, %v1279, 0
      %v1557 = vsel %vm1327, %v1280, 0
      %v1560 = vsel %vm1327, %v1281, 0
      %v1563 = vsel %vm1327, %v1282, 0
      %v1566 = vsel %vm1327, %v1283, 0
      %v1569 = vsel %vm1327, %v1284, 0
      %v1572 = vsel %vm1327, %v1285, 0
      %v1575 = vsel %vm1327, %v1286, 0
      %v1578 = vsel %vm1327, %v1287, 0
      %v1581 = vsel %vm1327, %v1288, 0
      %v1584 = vsel %vm1327, %v1289, 0
      %v1587 = vsel %vm1327, %v1290, 0
      %v1590 = vsel %vm1327, %v1291, 0
      %v1593 = vsel %vm1327, %v1292, 0
      %v1596 = vsel %vm1327, %v1293, 0
      %v1599 = vsel %vm1376, %v1548, 0
      %1601 = vmatprep.subr.bf16.mxu0 0
      %1602 = vmatpush1.bf16.msra.mxu0 %v1547
      %1603 = vmatprep.subr.bf16.mxu0 0
      %1604 = vmatpush1.bf16.msra.mxu0 %v1599
      %1605 = vmatprep.subr.bf16.mxu0 0
      %1606 = vmatpush1.bf16.msra.mxu0 0
      %1607 = vmatprep.subr.bf16.mxu0 0
      %1608 = vmatpush1.bf16.msra.mxu0 0
      %1609 = vmatprep.subr.bf16.mxu0 0
      %1610 = vmatpush1.bf16.msra.mxu0 0
      %1611 = vmatprep.subr.bf16.mxu0 0
      %1612 = vmatpush1.bf16.msra.mxu0 0
      %1613 = vmatprep.subr.bf16.mxu0 0
      %1614 = vmatpush1.bf16.msra.mxu0 0
      %1615 = vmatprep.subr.bf16.mxu0 0
      %1616 = vmatpush1.bf16.msra.mxu0 0
      %1617 = vmatprep.subr.bf16.mxu0 0
      %1618 = vmatpush1.bf16.msra.mxu0 0
      %1619 = vmatprep.subr.bf16.mxu0 0
      %1620 = vmatpush1.bf16.msra.mxu0 0
      %1621 = vmatprep.subr.bf16.mxu0 0
      %1622 = vmatpush1.bf16.msra.mxu0 0
      %1623 = vmatprep.subr.bf16.mxu0 0
      %1624 = vmatpush1.bf16.msra.mxu0 0
      %1625 = vmatprep.subr.bf16.mxu0 0
      %1626 = vmatpush1.bf16.msra.mxu0 0
      %1627 = vmatprep.subr.bf16.mxu0 0
      %1628 = vmatpush1.bf16.msra.mxu0 0
      %1629 = vmatprep.subr.bf16.mxu0 0
      %1630 = vmatpush1.bf16.msra.mxu0 0
      %1631 = vmatprep.subr.bf16.mxu0 0
      %1632 = vmatpush1.bf16.msra.mxu0 0
      %1633 = vmatprep.mubr.bf16.mxu0 0
      %1634 = vmatmul.mubr.bf16.gmra.mrb[0].mxu0 %v1551
      %v1635 = vpop.f32.mrb[0].mxu0
      %v1636 = vadd.f32 %v1415, %v1635
      %v1637 = vpop.f32.mrb[0].mxu0
      %v1638 = vpop.f32.mrb[0].mxu0
      %v1639 = vadd.f32 %v1418, %v1638
      %v1640 = vpop.f32.mrb[0].mxu0
      %1641 = vmatprep.mubr.bf16.mxu0 0
      %1642 = vmatmul.mubr.bf16.gmra.mrb[0].mxu0 %v1554
      %v1643 = vpop.f32.mrb[0].mxu0
      %v1644 = vadd.f32 %v1423, %v1643
      %v1645 = vpop.f32.mrb[0].mxu0
      %v1646 = vpop.f32.mrb[0].mxu0
      %v1647 = vadd.f32 %v1426, %v1646
      %v1648 = vpop.f32.mrb[0].mxu0
      %1649 = vmatprep.mubr.bf16.mxu0 0
      %1650 = vmatmul.mubr.bf16.gmra.mrb[0].mxu0 %v1557
      %v1651 = vpop.f32.mrb[0].mxu0
      %v1652 = vadd.f32 %v1431, %v1651
      %v1653 = vpop.f32.mrb[0].mxu0
      %v1654 = vpop.f32.mrb[0].mxu0
      %v1655 = vadd.f32 %v1434, %v1654
      %v1656 = vpop.f32.mrb[0].mxu0
      %1657 = vmatprep.mubr.bf16.mxu0 0
      %1658 = vmatmul.mubr.bf16.gmra.mrb[0].mxu0 %v1560
      %v1659 = vpop.f32.mrb[0].mxu0
      %v1660 = vadd.f32 %v1439, %v1659
      %v1661 = vpop.f32.mrb[0].mxu0
      %v1662 = vpop.f32.mrb[0].mxu0
      %v1663 = vadd.f32 %v1442, %v1662
      %v1664 = vpop.f32.mrb[0].mxu0
      %1665 = vmatprep.mubr.bf16.mxu0 0
      %1666 = vmatmul.mubr.bf16.gmra.mrb[0].mxu0 %v1563
      %v1667 = vpop.f32.mrb[0].mxu0
      %v1668 = vadd.f32 %v1447, %v1667
      %v1669 = vpop.f32.mrb[0].mxu0
      %v1670 = vpop.f32.mrb[0].mxu0
      %v1671 = vadd.f32 %v1450, %v1670
      %v1672 = vpop.f32.mrb[0].mxu0
      %1673 = vmatprep.mubr.bf16.mxu0 0
      %1674 = vmatmul.mubr.bf16.gmra.mrb[0].mxu0 %v1566
      %v1675 = vpop.f32.mrb[0].mxu0
      %v1676 = vadd.f32 %v1455, %v1675
      %v1677 = vpop.f32.mrb[0].mxu0
      %v1678 = vpop.f32.mrb[0].mxu0
      %v1679 = vadd.f32 %v1458, %v1678
      %v1680 = vpop.f32.mrb[0].mxu0
      %1681 = vmatprep.mubr.bf16.mxu0 0
      %1682 = vmatmul.mubr.bf16.gmra.mrb[0].mxu0 %v1569
      %v1683 = vpop.f32.mrb[0].mxu0
      %v1684 = vadd.f32 %v1463, %v1683
      %v1685 = vpop.f32.mrb[0].mxu0
      %v1686 = vpop.f32.mrb[0].mxu0
      %v1687 = vadd.f32 %v1466, %v1686
      %v1688 = vpop.f32.mrb[0].mxu0
      %1689 = vmatprep.mubr.bf16.mxu0 0
      %1690 = vmatmul.mubr.bf16.gmra.mrb[0].mxu0 %v1572
      %v1691 = vpop.f32.mrb[0].mxu0
      %v1692 = vadd.f32 %v1471, %v1691
      %v1693 = vpop.f32.mrb[0].mxu0
      %v1694 = vpop.f32.mrb[0].mxu0
      %v1695 = vadd.f32 %v1474, %v1694
      %v1696 = vpop.f32.mrb[0].mxu0
      %1697 = vmatprep.mubr.bf16.mxu0 0
      %1698 = vmatmul.mubr.bf16.gmra.mrb[0].mxu0 %v1575
      %v1699 = vpop.f32.mrb[0].mxu0
      %v1700 = vadd.f32 %v1479, %v1699
      %v1701 = vpop.f32.mrb[0].mxu0
      %v1702 = vpop.f32.mrb[0].mxu0
      %v1703 = vadd.f32 %v1482, %v1702
      %v1704 = vpop.f32.mrb[0].mxu0
      %1705 = vmatprep.mubr.bf16.mxu0 0
      %1706 = vmatmul.mubr.bf16.gmra.mrb[0].mxu0 %v1578
      %v1707 = vpop.f32.mrb[0].mxu0
      %v1708 = vadd.f32 %v1487, %v1707
      %v1709 = vpop.f32.mrb[0].mxu0
      %v1710 = vpop.f32.mrb[0].mxu0
      %v1711 = vadd.f32 %v1490, %v1710
      %v1712 = vpop.f32.mrb[0].mxu0
      %1713 = vmatprep.mubr.bf16.mxu0 0
      %1714 = vmatmul.mubr.bf16.gmra.mrb[0].mxu0 %v1581
      %v1715 = vpop.f32.mrb[0].mxu0
      %v1716 = vadd.f32 %v1495, %v1715
      %v1717 = vpop.f32.mrb[0].mxu0
      %v1718 = vpop.f32.mrb[0].mxu0
      %v1719 = vadd.f32 %v1498, %v1718
      %v1720 = vpop.f32.mrb[0].mxu0
      %1721 = vmatprep.mubr.bf16.mxu0 0
      %1722 = vmatmul.mubr.bf16.gmra.mrb[0].mxu0 %v1584
      %v1723 = vpop.f32.mrb[0].mxu0
      %v1724 = vadd.f32 %v1503, %v1723
      %v1725 = vpop.f32.mrb[0].mxu0
      %v1726 = vpop.f32.mrb[0].mxu0
      %v1727 = vadd.f32 %v1506, %v1726
      %v1728 = vpop.f32.mrb[0].mxu0
      %1729 = vmatprep.mubr.bf16.mxu0 0
      %1730 = vmatmul.mubr.bf16.gmra.mrb[0].mxu0 %v1587
      %v1731 = vpop.f32.mrb[0].mxu0
      %v1732 = vadd.f32 %v1511, %v1731
      %v1733 = vpop.f32.mrb[0].mxu0
      %v1734 = vpop.f32.mrb[0].mxu0
      %v1735 = vadd.f32 %v1514, %v1734
      %v1736 = vpop.f32.mrb[0].mxu0
      %1737 = vmatprep.mubr.bf16.mxu0 0
      %1738 = vmatmul.mubr.bf16.gmra.mrb[0].mxu0 %v1590
      %v1739 = vpop.f32.mrb[0].mxu0
      %v1740 = vadd.f32 %v1519, %v1739
      %v1741 = vpop.f32.mrb[0].mxu0
      %v1742 = vpop.f32.mrb[0].mxu0
      %v1743 = vadd.f32 %v1522, %v1742
      %v1744 = vpop.f32.mrb[0].mxu0
      %1745 = vmatprep.mubr.bf16.mxu0 0
      %1746 = vmatmul.mubr.bf16.gmra.mrb[0].mxu0 %v1593
      %v1747 = vpop.f32.mrb[0].mxu0
      %v1748 = vadd.f32 %v1527, %v1747
      %v1749 = vpop.f32.mrb[0].mxu0
      %v1750 = vpop.f32.mrb[0].mxu0
      %v1751 = vadd.f32 %v1530, %v1750
      %v1752 = vpop.f32.mrb[0].mxu0
      %1753 = vmatprep.mubr.bf16.mxu0 0
      %1754 = vmatmul.mubr.bf16.gmra.mrb[0].mxu0 %v1596
      %v1755 = vpop.f32.mrb[0].mxu0
      %v1756 = vadd.f32 %v1535, %v1755
      %v1757 = vpop.f32.mrb[0].mxu0
      %v1758 = vpop.f32.mrb[0].mxu0
      %v1759 = vadd.f32 %v1538, %v1758
      %v1760 = vpop.f32.mrb[0].mxu0
      %1761 = vdwg.mxu0
      %s1762 = scalar_lea.vmem [#allocation2], 16
      %v1763 = vld [vmem:[%s1762] sm:$0xff]
      %v1764 = vld [vmem:[%s1762 + $0x8] sm:$0xff]
      %v1765 = vld [vmem:[%s1762 + $0x10] sm:$0xff]
      %v1766 = vld [vmem:[%s1762 + $0x18] sm:$0xff]
      %v1767 = vld [vmem:[%s1762 + $0x20] sm:$0xff]
      %v1768 = vld [vmem:[%s1762 + $0x28] sm:$0xff]
      %v1769 = vld [vmem:[%s1762 + $0x30] sm:$0xff]
      %v1770 = vld [vmem:[%s1762 + $0x38] sm:$0xff]
      %v1771 = vld [vmem:[%s1762 + $0x40] sm:$0xff]
      %v1772 = vld [vmem:[%s1762 + $0x48] sm:$0xff]
      %v1773 = vld [vmem:[%s1762 + $0x50] sm:$0xff]
      %v1774 = vld [vmem:[%s1762 + $0x58] sm:$0xff]
      %v1775 = vld [vmem:[%s1762 + $0x60] sm:$0xff]
      %v1776 = vld [vmem:[%s1762 + $0x68] sm:$0xff]
      %v1777 = vld [vmem:[%s1762 + $0x70] sm:$0xff]
      %v1778 = vld [vmem:[%s1762 + $0x78] sm:$0xff]
      %s1779 = scalar_lea.vmem %s5, 24
      %v1780 = vld [vmem:[%s1779] sm:$0xf]
      %v1781 = vld [vmem:[%s1779 + $0x4] sm:$0xf]
      %v1782 = vld [vmem:[%s1779 + $0x8] sm:$0xf]
      %v1786 = vunpack.c.l.b16 %v1780
      %v1787 = vunpack.c.l.b16 %v1781
      %v1788 = vunpack.c.l.b16 %v1782
      %v1789 = vpack.c.b16 %v1787, %v1786
      %v1790 = vpack.c.b16 %v1788, %v1788
      %v1793 = vsel %vm1327, %v1763, 0
      %v1796 = vsel %vm1327, %v1764, 0
      %v1799 = vsel %vm1327, %v1765, 0
      %v1802 = vsel %vm1327, %v1766, 0
      %v1805 = vsel %vm1327, %v1767, 0
      %v1808 = vsel %vm1327, %v1768, 0
      %v1811 = vsel %vm1327, %v1769, 0
      %v1814 = vsel %vm1327, %v1770, 0
      %v1817 = vsel %vm1327, %v1771, 0
      %v1820 = vsel %vm1327, %v1772, 0
      %v1823 = vsel %vm1327, %v1773, 0
      %v1826 = vsel %vm1327, %v1774, 0
      %v1829 = vsel %vm1327, %v1775, 0
      %v1832 = vsel %vm1327, %v1776, 0
      %v1835 = vsel %vm1327, %v1777, 0
      %v1838 = vsel %vm1327, %v1778, 0
      %v1841 = vsel %vm1376, %v1790, 0
      %1843 = vmatprep.subr.bf16.mxu0 0
      %1844 = vmatpush1.bf16.msra.mxu0 %v1789
      %1845 = vmatprep.subr.bf16.mxu0 0
      %1846 = vmatpush1.bf16.msra.mxu0 %v1841
      %1847 = vmatprep.subr.bf16.mxu0 0
      %1848 = vmatpush1.bf16.msra.mxu0 0
      %1849 = vmatprep.subr.bf16.mxu0 0
      %1850 = vmatpush1.bf16.msra.mxu0 0
      %1851 = vmatprep.subr.bf16.mxu0 0
      %1852 = vmatpush1.bf16.msra.mxu0 0
      %1853 = vmatprep.subr.bf16.mxu0 0
      %1854 = vmatpush1.bf16.msra.mxu0 0
      %1855 = vmatprep.subr.bf16.mxu0 0
      %1856 = vmatpush1.bf16.msra.mxu0 0
      %1857 = vmatprep.subr.bf16.mxu0 0
      %1858 = vmatpush1.bf16.msra.mxu0 0
      %1859 = vmatprep.subr.bf16.mxu0 0
      %1860 = vmatpush1.bf16.msra.mxu0 0
      %1861 = vmatprep.subr.bf16.mxu0 0
      %1862 = vmatpush1.bf16.msra.mxu0 0
      %1863 = vmatprep.subr.bf16.mxu0 0
      %1864 = vmatpush1.bf16.msra.mxu0 0
      %1865 = vmatprep.subr.bf16.mxu0 0
      %1866 = vmatpush1.bf16.msra.mxu0 0
      %1867 = vmatprep.subr.bf16.mxu0 0
      %1868 = vmatpush1.bf16.msra.mxu0 0
      %1869 = vmatprep.subr.bf16.mxu0 0
      %1870 = vmatpush1.bf16.msra.mxu0 0
      %1871 = vmatprep.subr.bf16.mxu0 0
      %1872 = vmatpush1.bf16.msra.mxu0 0
      %1873 = vmatprep.subr.bf16.mxu0 0
      %1874 = vmatpush1.bf16.msra.mxu0 0
      %1875 = vmatprep.mubr.bf16.mxu0 0
      %1876 = vmatmul.mubr.bf16.gmra.mrb[0].mxu0 %v1793
      %v1877 = vpop.f32.mrb[0].mxu0
      %v1878 = vadd.f32 0.0, %v1877
      %v1879 = vpop.f32.mrb[0].mxu0
      %v1880 = vpop.f32.mrb[0].mxu0
      %v1881 = vadd.f32 0.0, %v1880
      %v1882 = vpop.f32.mrb[0].mxu0
      %1883 = vmatprep.mubr.bf16.mxu0 0
      %1884 = vmatmul.mubr.bf16.gmra.mrb[0].mxu0 %v1796
      %v1885 = vpop.f32.mrb[0].mxu0
      %v1886 = vadd.f32 0.0, %v1885
      %v1887 = vpop.f32.mrb[0].mxu0
      %v1888 = vpop.f32.mrb[0].mxu0
      %v1889 = vadd.f32 0.0, %v1888
      %v1890 = vpop.f32.mrb[0].mxu0
      %1891 = vmatprep.mubr.bf16.mxu0 0
      %1892 = vmatmul.mubr.bf16.gmra.mrb[0].mxu0 %v1799
      %v1893 = vpop.f32.mrb[0].mxu0
      %v1894 = vadd.f32 0.0, %v1893
      %v1895 = vpop.f32.mrb[0].mxu0
      %v1896 = vpop.f32.mrb[0].mxu0
      %v1897 = vadd.f32 0.0, %v1896
      %v1898 = vpop.f32.mrb[0].mxu0
      %1899 = vmatprep.mubr.bf16.mxu0 0
      %1900 = vmatmul.mubr.bf16.gmra.mrb[0].mxu0 %v1802
      %v1901 = vpop.f32.mrb[0].mxu0
      %v1902 = vadd.f32 0.0, %v1901
      %v1903 = vpop.f32.mrb[0].mxu0
      %v1904 = vpop.f32.mrb[0].mxu0
      %v1905 = vadd.f32 0.0, %v1904
      %v1906 = vpop.f32.mrb[0].mxu0
      %1907 = vmatprep.mubr.bf16.mxu0 0
      %1908 = vmatmul.mubr.bf16.gmra.mrb[0].mxu0 %v1805
      %v1909 = vpop.f32.mrb[0].mxu0
      %v1910 = vadd.f32 0.0, %v1909
      %v1911 = vpop.f32.mrb[0].mxu0
      %v1912 = vpop.f32.mrb[0].mxu0
      %v1913 = vadd.f32 0.0, %v1912
      %v1914 = vpop.f32.mrb[0].mxu0
      %1915 = vmatprep.mubr.bf16.mxu0 0
      %1916 = vmatmul.mubr.bf16.gmra.mrb[0].mxu0 %v1808
      %v1917 = vpop.f32.mrb[0].mxu0
      %v1918 = vadd.f32 0.0, %v1917
      %v1919 = vpop.f32.mrb[0].mxu0
      %v1920 = vpop.f32.mrb[0].mxu0
      %v1921 = vadd.f32 0.0, %v1920
      %v1922 = vpop.f32.mrb[0].mxu0
      %1923 = vmatprep.mubr.bf16.mxu0 0
      %1924 = vmatmul.mubr.bf16.gmra.mrb[0].mxu0 %v1811
      %v1925 = vpop.f32.mrb[0].mxu0
      %v1926 = vadd.f32 0.0, %v1925
      %v1927 = vpop.f32.mrb[0].mxu0
      %v1928 = vpop.f32.mrb[0].mxu0
      %v1929 = vadd.f32 0.0, %v1928
      %v1930 = vpop.f32.mrb[0].mxu0
      %1931 = vmatprep.mubr.bf16.mxu0 0
      %1932 = vmatmul.mubr.bf16.gmra.mrb[0].mxu0 %v1814
      %v1933 = vpop.f32.mrb[0].mxu0
      %v1934 = vadd.f32 0.0, %v1933
      %v1935 = vpop.f32.mrb[0].mxu0
      %v1936 = vpop.f32.mrb[0].mxu0
      %v1937 = vadd.f32 0.0, %v1936
      %v1938 = vpop.f32.mrb[0].mxu0
      %1939 = vmatprep.mubr.bf16.mxu0 0
      %1940 = vmatmul.mubr.bf16.gmra.mrb[0].mxu0 %v1817
      %v1941 = vpop.f32.mrb[0].mxu0
      %v1942 = vadd.f32 0.0, %v1941
      %v1943 = vpop.f32.mrb[0].mxu0
      %v1944 = vpop.f32.mrb[0].mxu0
      %v1945 = vadd.f32 0.0, %v1944
      %v1946 = vpop.f32.mrb[0].mxu0
      %1947 = vmatprep.mubr.bf16.mxu0 0
      %1948 = vmatmul.mubr.bf16.gmra.mrb[0].mxu0 %v1820
      %v1949 = vpop.f32.mrb[0].mxu0
      %v1950 = vadd.f32 0.0, %v1949
      %v1951 = vpop.f32.mrb[0].mxu0
      %v1952 = vpop.f32.mrb[0].mxu0
      %v1953 = vadd.f32 0.0, %v1952
      %v1954 = vpop.f32.mrb[0].mxu0
      %1955 = vmatprep.mubr.bf16.mxu0 0
      %1956 = vmatmul.mubr.bf16.gmra.mrb[0].mxu0 %v1823
      %v1957 = vpop.f32.mrb[0].mxu0
      %v1958 = vadd.f32 0.0, %v1957
      %v1959 = vpop.f32.mrb[0].mxu0
      %v1960 = vpop.f32.mrb[0].mxu0
      %v1961 = vadd.f32 0.0, %v1960
      %v1962 = vpop.f32.mrb[0].mxu0
      %1963 = vmatprep.mubr.bf16.mxu0 0
      %1964 = vmatmul.mubr.bf16.gmra.mrb[0].mxu0 %v1826
      %v1965 = vpop.f32.mrb[0].mxu0
      %v1966 = vadd.f32 0.0, %v1965
      %v1967 = vpop.f32.mrb[0].mxu0
      %v1968 = vpop.f32.mrb[0].mxu0
      %v1969 = vadd.f32 0.0, %v1968
      %v1970 = vpop.f32.mrb[0].mxu0
      %1971 = vmatprep.mubr.bf16.mxu0 0
      %1972 = vmatmul.mubr.bf16.gmra.mrb[0].mxu0 %v1829
      %v1973 = vpop.f32.mrb[0].mxu0
      %v1974 = vadd.f32 0.0, %v1973
      %v1975 = vpop.f32.mrb[0].mxu0
      %v1976 = vpop.f32.mrb[0].mxu0
      %v1977 = vadd.f32 0.0, %v1976
      %v1978 = vpop.f32.mrb[0].mxu0
      %1979 = vmatprep.mubr.bf16.mxu0 0
      %1980 = vmatmul.mubr.bf16.gmra.mrb[0].mxu0 %v1832
      %v1981 = vpop.f32.mrb[0].mxu0
      %v1982 = vadd.f32 0.0, %v1981
      %v1983 = vpop.f32.mrb[0].mxu0
      %v1984 = vpop.f32.mrb[0].mxu0
      %v1985 = vadd.f32 0.0, %v1984
      %v1986 = vpop.f32.mrb[0].mxu0
      %1987 = vmatprep.mubr.bf16.mxu0 0
      %1988 = vmatmul.mubr.bf16.gmra.mrb[0].mxu0 %v1835
      %v1989 = vpop.f32.mrb[0].mxu0
      %v1990 = vadd.f32 0.0, %v1989
      %v1991 = vpop.f32.mrb[0].mxu0
      %v1992 = vpop.f32.mrb[0].mxu0
      %v1993 = vadd.f32 0.0, %v1992
      %v1994 = vpop.f32.mrb[0].mxu0
      %1995 = vmatprep.mubr.bf16.mxu0 0
      %1996 = vmatmul.mubr.bf16.gmra.mrb[0].mxu0 %v1838
      %v1997 = vpop.f32.mrb[0].mxu0
      %v1998 = vadd.f32 0.0, %v1997
      %v1999 = vpop.f32.mrb[0].mxu0
      %v2000 = vpop.f32.mrb[0].mxu0
      %v2001 = vadd.f32 0.0, %v2000
      %v2002 = vpop.f32.mrb[0].mxu0
      %2003 = vdwg.mxu0
      %v2004 = vadd.f32 %v1636, %v1878
      %v2005 = vadd.f32 %v1639, %v1881
      %v2006 = vadd.f32 %v1644, %v1886
      %v2007 = vadd.f32 %v1647, %v1889
      %v2008 = vadd.f32 %v1652, %v1894
      %v2009 = vadd.f32 %v1655, %v1897
      %v2010 = vadd.f32 %v1660, %v1902
      %v2011 = vadd.f32 %v1663, %v1905
      %v2012 = vadd.f32 %v1668, %v1910
      %v2013 = vadd.f32 %v1671, %v1913
      %v2014 = vadd.f32 %v1676, %v1918
      %v2015 = vadd.f32 %v1679, %v1921
      %v2016 = vadd.f32 %v1684, %v1926
      %v2017 = vadd.f32 %v1687, %v1929
      %v2018 = vadd.f32 %v1692, %v1934
      %v2019 = vadd.f32 %v1695, %v1937
      %v2020 = vadd.f32 %v1700, %v1942
      %v2021 = vadd.f32 %v1703, %v1945
      %v2022 = vadd.f32 %v1708, %v1950
      %v2023 = vadd.f32 %v1711, %v1953
      %v2024 = vadd.f32 %v1716, %v1958
      %v2025 = vadd.f32 %v1719, %v1961
      %v2026 = vadd.f32 %v1724, %v1966
      %v2027 = vadd.f32 %v1727, %v1969
      %v2028 = vadd.f32 %v1732, %v1974
      %v2029 = vadd.f32 %v1735, %v1977
      %v2030 = vadd.f32 %v1740, %v1982
      %v2031 = vadd.f32 %v1743, %v1985
      %v2032 = vadd.f32 %v1748, %v1990
      %v2033 = vadd.f32 %v1751, %v1993
      %v2034 = vadd.f32 %v1756, %v1998
      %v2035 = vadd.f32 %v1759, %v2001
      %v2036 = vld [vmem:[%s6] sm:$0x1]
      %v2038 = vlaneseq
      %v2039 = vshrl.u32 %v2038, 7
      %v2040 = vsub.s32 0, %v2039
      %v2041 = vrot.slane %v2036, %v2040
      %v2043 = vadd.f32 %v2004, %v2041
      %v2044 = vadd.f32 %v2005, %v2041
      %v2045 = vadd.f32 %v2006, %v2041
      %v2046 = vadd.f32 %v2007, %v2041
      %v2047 = vadd.f32 %v2008, %v2041
      %v2048 = vadd.f32 %v2009, %v2041
      %v2049 = vadd.f32 %v2010, %v2041
      %v2050 = vadd.f32 %v2011, %v2041
      %v2051 = vadd.f32 %v2012, %v2041
      %v2052 = vadd.f32 %v2013, %v2041
      %v2053 = vadd.f32 %v2014, %v2041
      %v2054 = vadd.f32 %v2015, %v2041
      %v2055 = vadd.f32 %v2016, %v2041
      %v2056 = vadd.f32 %v2017, %v2041
      %v2057 = vadd.f32 %v2018, %v2041
      %v2058 = vadd.f32 %v2019, %v2041
      %v2059 = vadd.f32 %v2020, %v2041
      %v2060 = vadd.f32 %v2021, %v2041
      %v2061 = vadd.f32 %v2022, %v2041
      %v2062 = vadd.f32 %v2023, %v2041
      %v2063 = vadd.f32 %v2024, %v2041
      %v2064 = vadd.f32 %v2025, %v2041
      %v2065 = vadd.f32 %v2026, %v2041
      %v2066 = vadd.f32 %v2027, %v2041
      %v2067 = vadd.f32 %v2028, %v2041
      %v2068 = vadd.f32 %v2029, %v2041
      %v2069 = vadd.f32 %v2030, %v2041
      %v2070 = vadd.f32 %v2031, %v2041
      %v2071 = vadd.f32 %v2032, %v2041
      %v2072 = vadd.f32 %v2033, %v2041
      %v2073 = vadd.f32 %v2034, %v2041
      %v2074 = vadd.f32 %v2035, %v2041
      %vm2075 = vcmask 64512
      %v2076 = vsel %vm2075, %v2043, 0.0
      %v2077 = vsel %vm2075, %v2044, 0.0
      %v2078 = vadd.f32 %v2076, %v2077
      %v2079 = vsel %vm2075, %v2045, 0.0
      %v2080 = vadd.f32 %v2078, %v2079
      %v2081 = vsel %vm2075, %v2046, 0.0
      %v2082 = vadd.f32 %v2080, %v2081
      %v2083 = vsel %vm2075, %v2047, 0.0
      %v2084 = vadd.f32 %v2082, %v2083
      %v2085 = vsel %vm2075, %v2048, 0.0
      %v2086 = vadd.f32 %v2084, %v2085
      %v2087 = vsel %vm2075, %v2049, 0.0
      %v2088 = vadd.f32 %v2086, %v2087
      %v2089 = vsel %vm2075, %v2050, 0.0
      %v2090 = vadd.f32 %v2088, %v2089
      %v2091 = vsel %vm2075, %v2051, 0.0
      %v2092 = vadd.f32 %v2090, %v2091
      %v2093 = vsel %vm2075, %v2052, 0.0
      %v2094 = vadd.f32 %v2092, %v2093
      %v2095 = vsel %vm2075, %v2053, 0.0
      %v2096 = vadd.f32 %v2094, %v2095
      %v2097 = vsel %vm2075, %v2054, 0.0
      %v2098 = vadd.f32 %v2096, %v2097
      %v2099 = vsel %vm2075, %v2055, 0.0
      %v2100 = vadd.f32 %v2098, %v2099
      %v2101 = vsel %vm2075, %v2056, 0.0
      %v2102 = vadd.f32 %v2100, %v2101
      %v2103 = vsel %vm2075, %v2057, 0.0
      %v2104 = vadd.f32 %v2102, %v2103
      %v2105 = vsel %vm2075, %v2058, 0.0
      %v2106 = vadd.f32 %v2104, %v2105
      %v2107 = vsel %vm2075, %v2059, 0.0
      %v2108 = vadd.f32 %v2106, %v2107
      %v2109 = vsel %vm2075, %v2060, 0.0
      %v2110 = vadd.f32 %v2108, %v2109
      %v2111 = vsel %vm2075, %v2061, 0.0
      %v2112 = vadd.f32 %v2110, %v2111
      %v2113 = vsel %vm2075, %v2062, 0.0
      %v2114 = vadd.f32 %v2112, %v2113
      %v2115 = vsel %vm2075, %v2063, 0.0
      %v2116 = vadd.f32 %v2114, %v2115
      %v2117 = vsel %vm2075, %v2064, 0.0
      %v2118 = vadd.f32 %v2116, %v2117
      %v2119 = vsel %vm2075, %v2065, 0.0
      %v2120 = vadd.f32 %v2118, %v2119
      %v2121 = vsel %vm2075, %v2066, 0.0
      %v2122 = vadd.f32 %v2120, %v2121
      %v2123 = vsel %vm2075, %v2067, 0.0
      %v2124 = vadd.f32 %v2122, %v2123
      %v2125 = vsel %vm2075, %v2068, 0.0
      %v2126 = vadd.f32 %v2124, %v2125
      %v2127 = vsel %vm2075, %v2069, 0.0
      %v2128 = vadd.f32 %v2126, %v2127
      %v2129 = vsel %vm2075, %v2070, 0.0
      %v2130 = vadd.f32 %v2128, %v2129
      %v2131 = vsel %vm2075, %v2071, 0.0
      %v2132 = vadd.f32 %v2130, %v2131
      %v2133 = vsel %vm2075, %v2072, 0.0
      %v2134 = vadd.f32 %v2132, %v2133
      %v2135 = vsel %vm2075, %v2073, 0.0
      %v2136 = vadd.f32 %v2134, %v2135
      %v2137 = vsel %vm2075, %v2074, 0.0
      %v2138 = vadd.f32 %v2136, %v2137
      %v2139 = vrot.slane %v2138, 4
      %v2140 = vadd.f32 %v2138, %v2139
      %v2141 = vrot.slane %v2140, 2
      %v2142 = vadd.f32 %v2140, %v2141
      %v2143 = vrot.slane %v2142, 1
      %v2144 = vadd.f32 %v2142, %v2143
      %vm2145 = vcmask 57344
      %2146 = vst.msk [vmem:[%s492] sm:$0x1] %vm2145, %v2144
      %v2147 = vmul.f32 %v2043, %v2043
      %v2148 = vmul.f32 %v2044, %v2044
      %v2149 = vmul.f32 %v2045, %v2045
      %v2150 = vmul.f32 %v2046, %v2046
      %v2151 = vmul.f32 %v2047, %v2047
      %v2152 = vmul.f32 %v2048, %v2048
      %v2153 = vmul.f32 %v2049, %v2049
      %v2154 = vmul.f32 %v2050, %v2050
      %v2155 = vmul.f32 %v2051, %v2051
      %v2156 = vmul.f32 %v2052, %v2052
      %v2157 = vmul.f32 %v2053, %v2053
      %v2158 = vmul.f32 %v2054, %v2054
      %v2159 = vmul.f32 %v2055, %v2055
      %v2160 = vmul.f32 %v2056, %v2056
      %v2161 = vmul.f32 %v2057, %v2057
      %v2162 = vmul.f32 %v2058, %v2058
      %v2163 = vmul.f32 %v2059, %v2059
      %v2164 = vmul.f32 %v2060, %v2060
      %v2165 = vmul.f32 %v2061, %v2061
      %v2166 = vmul.f32 %v2062, %v2062
      %v2167 = vmul.f32 %v2063, %v2063
      %v2168 = vmul.f32 %v2064, %v2064
      %v2169 = vmul.f32 %v2065, %v2065
      %v2170 = vmul.f32 %v2066, %v2066
      %v2171 = vmul.f32 %v2067, %v2067
      %v2172 = vmul.f32 %v2068, %v2068
      %v2173 = vmul.f32 %v2069, %v2069
      %v2174 = vmul.f32 %v2070, %v2070
      %v2175 = vmul.f32 %v2071, %v2071
      %v2176 = vmul.f32 %v2072, %v2072
      %v2177 = vmul.f32 %v2073, %v2073
      %v2178 = vmul.f32 %v2074, %v2074
      %v2179 = vsel %vm2075, %v2147, 0.0
      %v2180 = vsel %vm2075, %v2148, 0.0
      %v2181 = vadd.f32 %v2179, %v2180
      %v2182 = vsel %vm2075, %v2149, 0.0
      %v2183 = vadd.f32 %v2181, %v2182
      %v2184 = vsel %vm2075, %v2150, 0.0
      %v2185 = vadd.f32 %v2183, %v2184
      %v2186 = vsel %vm2075, %v2151, 0.0
      %v2187 = vadd.f32 %v2185, %v2186
      %v2188 = vsel %vm2075, %v2152, 0.0
      %v2189 = vadd.f32 %v2187, %v2188
      %v2190 = vsel %vm2075, %v2153, 0.0
      %v2191 = vadd.f32 %v2189, %v2190
      %v2192 = vsel %vm2075, %v2154, 0.0
      %v2193 = vadd.f32 %v2191, %v2192
      %v2194 = vsel %vm2075, %v2155, 0.0
      %v2195 = vadd.f32 %v2193, %v2194
      %v2196 = vsel %vm2075, %v2156, 0.0
      %v2197 = vadd.f32 %v2195, %v2196
      %v2198 = vsel %vm2075, %v2157, 0.0
      %v2199 = vadd.f32 %v2197, %v2198
      %v2200 = vsel %vm2075, %v2158, 0.0
      %v2201 = vadd.f32 %v2199, %v2200
      %v2202 = vsel %vm2075, %v2159, 0.0
      %v2203 = vadd.f32 %v2201, %v2202
      %v2204 = vsel %vm2075, %v2160, 0.0
      %v2205 = vadd.f32 %v2203, %v2204
      %v2206 = vsel %vm2075, %v2161, 0.0
      %v2207 = vadd.f32 %v2205, %v2206
      %v2208 = vsel %vm2075, %v2162, 0.0
      %v2209 = vadd.f32 %v2207, %v2208
      %v2210 = vsel %vm2075, %v2163, 0.0
      %v2211 = vadd.f32 %v2209, %v2210
      %v2212 = vsel %vm2075, %v2164, 0.0
      %v2213 = vadd.f32 %v2211, %v2212
      %v2214 = vsel %vm2075, %v2165, 0.0
      %v2215 = vadd.f32 %v2213, %v2214
      %v2216 = vsel %vm2075, %v2166, 0.0
      %v2217 = vadd.f32 %v2215, %v2216
      %v2218 = vsel %vm2075, %v2167, 0.0
      %v2219 = vadd.f32 %v2217, %v2218
      %v2220 = vsel %vm2075, %v2168, 0.0
      %v2221 = vadd.f32 %v2219, %v2220
      %v2222 = vsel %vm2075, %v2169, 0.0
      %v2223 = vadd.f32 %v2221, %v2222
      %v2224 = vsel %vm2075, %v2170, 0.0
      %v2225 = vadd.f32 %v2223, %v2224
      %v2226 = vsel %vm2075, %v2171, 0.0
      %v2227 = vadd.f32 %v2225, %v2226
      %v2228 = vsel %vm2075, %v2172, 0.0
      %v2229 = vadd.f32 %v2227, %v2228
      %v2230 = vsel %vm2075, %v2173, 0.0
      %v2231 = vadd.f32 %v2229, %v2230
      %v2232 = vsel %vm2075, %v2174, 0.0
      %v2233 = vadd.f32 %v2231, %v2232
      %v2234 = vsel %vm2075, %v2175, 0.0
      %v2235 = vadd.f32 %v2233, %v2234
      %v2236 = vsel %vm2075, %v2176, 0.0
      %v2237 = vadd.f32 %v2235, %v2236
      %v2238 = vsel %vm2075, %v2177, 0.0
      %v2239 = vadd.f32 %v2237, %v2238
      %v2240 = vsel %vm2075, %v2178, 0.0
      %v2241 = vadd.f32 %v2239, %v2240
      %v2242 = vrot.slane %v2241, 4
      %v2243 = vadd.f32 %v2241, %v2242
      %v2244 = vrot.slane %v2243, 2
      %v2245 = vadd.f32 %v2243, %v2244
      %v2246 = vrot.slane %v2245, 1
      %v2247 = vadd.f32 %v2245, %v2246
      %2248 = vst.msk [vmem:[%s492 + $0x1] sm:$0x1] %vm2145, %v2247
      %v2249 = vpack.c.bf16 %v2044, %v2043
      %v2250 = vpack.c.bf16 %v2046, %v2045
      %v2251 = vpack.c.bf16 %v2048, %v2047
      %v2252 = vpack.c.bf16 %v2050, %v2049
      %v2253 = vpack.c.bf16 %v2052, %v2051
      %v2254 = vpack.c.bf16 %v2054, %v2053
      %v2255 = vpack.c.bf16 %v2056, %v2055
      %v2256 = vpack.c.bf16 %v2058, %v2057
      %v2257 = vpack.c.bf16 %v2060, %v2059
      %v2258 = vpack.c.bf16 %v2062, %v2061
      %v2259 = vpack.c.bf16 %v2064, %v2063
      %v2260 = vpack.c.bf16 %v2066, %v2065
      %v2261 = vpack.c.bf16 %v2068, %v2067
      %v2262 = vpack.c.bf16 %v2070, %v2069
      %v2263 = vpack.c.bf16 %v2072, %v2071
      %v2264 = vpack.c.bf16 %v2074, %v2073
      %v2281 = vunpack.c.l.b16 %v2249
      %v2282 = vunpack.c.h.b16 %v2249
      %v2283 = vunpack.c.l.b16 %v2250
      %v2284 = vunpack.c.h.b16 %v2250
      %v2285 = vunpack.c.l.b16 %v2251
      %v2286 = vunpack.c.h.b16 %v2251
      %v2287 = vunpack.c.l.b16 %v2252
      %v2288 = vunpack.c.h.b16 %v2252
      %v2289 = vunpack.c.l.b16 %v2253
      %v2290 = vunpack.c.h.b16 %v2253
      %v2291 = vunpack.c.l.b16 %v2254
      %v2292 = vunpack.c.h.b16 %v2254
      %v2293 = vunpack.c.l.b16 %v2255
      %v2294 = vunpack.c.h.b16 %v2255
      %v2295 = vunpack.c.l.b16 %v2256
      %v2296 = vunpack.c.h.b16 %v2256
      %v2297 = vunpack.c.l.b16 %v2257
      %v2298 = vunpack.c.h.b16 %v2257
      %v2299 = vunpack.c.l.b16 %v2258
      %v2300 = vunpack.c.h.b16 %v2258
      %v2301 = vunpack.c.l.b16 %v2259
      %v2302 = vunpack.c.h.b16 %v2259
      %v2303 = vunpack.c.l.b16 %v2260
      %v2304 = vunpack.c.h.b16 %v2260
      %v2305 = vunpack.c.l.b16 %v2261
      %v2306 = vunpack.c.h.b16 %v2261
      %v2307 = vunpack.c.l.b16 %v2262
      %v2308 = vunpack.c.h.b16 %v2262
      %v2309 = vunpack.c.l.b16 %v2263
      %v2310 = vunpack.c.h.b16 %v2263
      %v2311 = vunpack.c.l.b16 %v2264
      %v2312 = vunpack.c.h.b16 %v2264
      %v2313 = vpack.c.b16 %v2281, %v2281
      %v2314 = vpack.c.b16 %v2282, %v2282
      %v2315 = vpack.c.b16 %v2283, %v2283
      %v2316 = vpack.c.b16 %v2284, %v2284
      %v2317 = vpack.c.b16 %v2285, %v2285
      %v2318 = vpack.c.b16 %v2286, %v2286
      %v2319 = vpack.c.b16 %v2287, %v2287
      %v2320 = vpack.c.b16 %v2288, %v2288
      %v2321 = vpack.c.b16 %v2289, %v2289
      %v2322 = vpack.c.b16 %v2290, %v2290
      %v2323 = vpack.c.b16 %v2291, %v2291
      %v2324 = vpack.c.b16 %v2292, %v2292
      %v2325 = vpack.c.b16 %v2293, %v2293
      %v2326 = vpack.c.b16 %v2294, %v2294
      %v2327 = vpack.c.b16 %v2295, %v2295
      %v2328 = vpack.c.b16 %v2296, %v2296
      %v2329 = vpack.c.b16 %v2297, %v2297
      %v2330 = vpack.c.b16 %v2298, %v2298
      %v2331 = vpack.c.b16 %v2299, %v2299
      %v2332 = vpack.c.b16 %v2300, %v2300
      %v2333 = vpack.c.b16 %v2301, %v2301
      %v2334 = vpack.c.b16 %v2302, %v2302
      %v2335 = vpack.c.b16 %v2303, %v2303
      %v2336 = vpack.c.b16 %v2304, %v2304
      %v2337 = vpack.c.b16 %v2305, %v2305
      %v2338 = vpack.c.b16 %v2306, %v2306
      %v2339 = vpack.c.b16 %v2307, %v2307
      %v2340 = vpack.c.b16 %v2308, %v2308
      %v2341 = vpack.c.b16 %v2309, %v2309
      %v2342 = vpack.c.b16 %v2310, %v2310
      %v2343 = vpack.c.b16 %v2311, %v2311
      %v2344 = vpack.c.b16 %v2312, %v2312
      %vm2377 = vcmask 60416
      %2378 = vst.msk [vmem:[%s484] sm:$0xf] %vm2377, %v2313
      %2379 = vst.msk [vmem:[%s484 + $0x4] sm:$0xf] %vm2377, %v2314
      %2380 = vst.msk [vmem:[%s484 + $0x8] sm:$0xf] %vm2377, %v2315
      %2381 = vst.msk [vmem:[%s484 + $0xc] sm:$0xf] %vm2377, %v2316
      %2382 = vst.msk [vmem:[%s484 + $0x10] sm:$0xf] %vm2377, %v2317
      %2383 = vst.msk [vmem:[%s484 + $0x14] sm:$0xf] %vm2377, %v2318
      %2384 = vst.msk [vmem:[%s484 + $0x18] sm:$0xf] %vm2377, %v2319
      %2385 = vst.msk [vmem:[%s484 + $0x1c] sm:$0xf] %vm2377, %v2320
      %2386 = vst.msk [vmem:[%s484 + $0x20] sm:$0xf] %vm2377, %v2321
      %2387 = vst.msk [vmem:[%s484 + $0x24] sm:$0xf] %vm2377, %v2322
      %2388 = vst.msk [vmem:[%s484 + $0x28] sm:$0xf] %vm2377, %v2323
      %2389 = vst.msk [vmem:[%s484 + $0x2c] sm:$0xf] %vm2377, %v2324
      %2390 = vst.msk [vmem:[%s484 + $0x30] sm:$0xf] %vm2377, %v2325
      %2391 = vst.msk [vmem:[%s484 + $0x34] sm:$0xf] %vm2377, %v2326
      %2392 = vst.msk [vmem:[%s484 + $0x38] sm:$0xf] %vm2377, %v2327
      %2393 = vst.msk [vmem:[%s484 + $0x3c] sm:$0xf] %vm2377, %v2328
      %2394 = vst.msk [vmem:[%s484 + $0x40] sm:$0xf] %vm2377, %v2329
      %2395 = vst.msk [vmem:[%s484 + $0x44] sm:$0xf] %vm2377, %v2330
      %2396 = vst.msk [vmem:[%s484 + $0x48] sm:$0xf] %vm2377, %v2331
      %2397 = vst.msk [vmem:[%s484 + $0x4c] sm:$0xf] %vm2377, %v2332
      %2398 = vst.msk [vmem:[%s484 + $0x50] sm:$0xf] %vm2377, %v2333
      %2399 = vst.msk [vmem:[%s484 + $0x54] sm:$0xf] %vm2377, %v2334
      %2400 = vst.msk [vmem:[%s484 + $0x58] sm:$0xf] %vm2377, %v2335
      %2401 = vst.msk [vmem:[%s484 + $0x5c] sm:$0xf] %vm2377, %v2336
      %2402 = vst.msk [vmem:[%s484 + $0x60] sm:$0xf] %vm2377, %v2337
      %2403 = vst.msk [vmem:[%s484 + $0x64] sm:$0xf] %vm2377, %v2338
      %2404 = vst.msk [vmem:[%s484 + $0x68] sm:$0xf] %vm2377, %v2339
      %2405 = vst.msk [vmem:[%s484 + $0x6c] sm:$0xf] %vm2377, %v2340
      %2406 = vst.msk [vmem:[%s484 + $0x70] sm:$0xf] %vm2377, %v2341
      %2407 = vst.msk [vmem:[%s484 + $0x74] sm:$0xf] %vm2377, %v2342
      %2408 = vst.msk [vmem:[%s484 + $0x78] sm:$0xf] %vm2377, %v2343
      %2409 = vst.msk [vmem:[%s484 + $0x7c] sm:$0xf] %vm2377, %v2344
      %s2410 = smul.u32 16, %s25
      %p2411 = scmp.lt.s32.totalorder %s24, 1
      %s2412 = scalar_select %p2411, %s24, 1
      %p2413 = scmp.lt.s32.totalorder %s2410, 15
      %s2414 = scalar_select %p2413, %s2410, 15
      %s2415 = smul.addr %s2414, 2
      %s2416 = smul.addr %s2412, 32
      %s2417 = sadd.s32 %s2415, %s2416
      %s2418 = smul.addr %s2417, 4
      %s2419 = scalar_lea.vmem %s7, %s2418
      %p2420 = scmp.lt.s32.totalorder %s24, 1
      %s2421 = scalar_select %p2420, %s24, 1
      %p2422 = scmp.lt.s32.totalorder %s25, 0
      %s2423 = scalar_select %p2422, %s25, 0
      %s2424 = sadd.s32 %s2423, %s2421
      %s2425 = smul.addr %s2424, 2
      %s2426 = scalar_lea.vmem %s8, %s2425
      // Predicated region
      $region49: #{double_conv_forward.4} parent=47 // pred_check
        %p2427 = pneg %p236
      $region50: #{double_conv_forward.4} parent=47 // pred_check_branch
        %2429 = sbr.rel (%p2427) target = $region52
      $region51: #{double_conv_forward.4} parent=47 // pred_region
        %s2430 = smul.u32 16, %s25
      $region52: #{double_conv_forward.4} parent=47 // pred_fallthru
        _
      // Predicated region
      $region53: #{double_conv_forward.4} parent=47 // pred_check
        %p2431 = pneg %p264
      $region54: #{double_conv_forward.4} parent=47 // pred_check_branch
        %2433 = sbr.rel (%p2431) target = $region56
      $region55: #{double_conv_forward.4} parent=47 // pred_region
        _
      $region56: #{double_conv_forward.4} parent=47 // pred_fallthru
        _
    $region48: #{double_conv_forward.4} parent=5 // pred_fallthru
      _
    %p2434 = scmp.le.s32.totalorder 2, %s15
    // Predicated region
    $region57: #{double_conv_forward.4} parent=5 // pred_check
      %p2435 = pneg %p2434
    $region58: #{double_conv_forward.4} parent=5 // pred_check_branch
      %2437 = sbr.rel (%p2435) target = $region60
    $region59: #{double_conv_forward.4} parent=5 // pred_region
      %s2438 = ssub.s32 %s15, 2
      // Predicated region
      $region61: #{double_conv_forward.4} parent=59 // pred_check
        %p2439 = pneg %p242
      $region62: #{double_conv_forward.4} parent=59 // pred_check_branch
        %2441 = sbr.rel (%p2439) target = $region64
      $region63: #{double_conv_forward.4} parent=59 // pred_region
        %s2442 = smul.u32 16, %s27
        %p2443 = scmp.lt.s32.totalorder %s26, 1
        %s2444 = scalar_select %p2443, %s26, 1
        %p2445 = scmp.lt.s32.totalorder %s2442, 15
        %s2446 = scalar_select %p2445, %s2442, 15
        %s2447 = smul.addr %s2446, 2
        %s2448 = smul.addr %s2444, 32
        %s2449 = sadd.s32 %s2447, %s2448
        %s2450 = smul.addr %s2449, 4
        %s2451 = scalar_lea.vmem %s7, %s2450
      $region64: #{double_conv_forward.4} parent=59 // pred_fallthru
        _
      // Predicated region
      $region65: #{double_conv_forward.4} parent=59 // pred_check
        %p2452 = pneg %p270
      $region66: #{double_conv_forward.4} parent=59 // pred_check_branch
        %2454 = sbr.rel (%p2452) target = $region68
      $region67: #{double_conv_forward.4} parent=59 // pred_region
        %p2455 = scmp.lt.s32.totalorder %s26, 1
        %s2456 = scalar_select %p2455, %s26, 1
        %p2457 = scmp.lt.s32.totalorder %s27, 0
        %s2458 = scalar_select %p2457, %s27, 0
        %s2459 = sadd.s32 %s2458, %s2456
        %s2460 = smul.addr %s2459, 2
        %s2461 = scalar_lea.vmem %s8, %s2460
      $region68: #{double_conv_forward.4} parent=59 // pred_fallthru
        _
    $region60: #{double_conv_forward.4} parent=5 // pred_fallthru
      _
  $region6: #{double_conv_forward.4} parent=0 // loop_footer
    %s19 = sadd.s32 1, %s15
  $region7: #{double_conv_forward.4} parent=0 // loop_footer_branch
    %14 = sbr.rel target = $region3
  $region8: #{double_conv_forward.4} parent=0 // loop_exit
    _

</llo_original>
